<compile_context>
chip_gen: v7x
topology: tpu7x:2x2x1
jax: 0.10.0
libtpu: 0.0.40
codegen_flags: <defaults>
</compile_context>

<pallas_src>
import math
import numpy as np
import jax
import jax.numpy as jnp
from jax.experimental import pallas as pl
from jax.experimental.pallas import tpu as pltpu

EPSILON = float(jnp.finfo(jnp.float32).eps)   # == torch.finfo(torch.float32).eps


def _round_up(x, m):
    return (x + m - 1) // m * m


def _cdiv(a, b):
    return -(-a // b)


# ----------------------------------------------------------------------------
# Weight construction (numpy port of init_kernels(), forward STFT only)
# ----------------------------------------------------------------------------
def _periodic_hamming(n):
    # scipy.signal.get_window('hamming', n, fftbins=True)
    k = np.arange(n)
    return 0.54 - 0.46 * np.cos(2.0 * np.pi * k / n)


def init_stft_kernels(win_len, fft_len, win_type="hamming"):
    if win_type is None or win_type == "None":
        window = np.ones(win_len)
    elif win_type == "hamming":
        window = _periodic_hamming(win_len)
    elif win_type in ("hann", "hanning"):
        k = np.arange(win_len)
        window = 0.5 - 0.5 * np.cos(2.0 * np.pi * k / win_len)
    else:
        raise ValueError(f"unsupported win_type: {win_type}")
    fourier_basis = np.fft.rfft(np.eye(fft_len))[:win_len]       # (win_len, F) complex
    real_kernel = np.real(fourier_basis)
    imag_kernel = np.imag(fourier_basis)
    kernel = np.concatenate([real_kernel, imag_kernel], 1).T     # (2F, win_len)
    kernel = kernel * window                                     # window the taps
    return kernel.astype(np.float32), window.astype(np.float32)


# ----------------------------------------------------------------------------
# In-kernel math helpers
# ----------------------------------------------------------------------------
def _atan_poly(t):
    # SLEEF-style single-precision minimax polynomial for atan on [0, 1].
    s = t * t
    u = jnp.float32(0.00282363896258175373077393)
    for c in (-0.0159569028764963150024414,
              0.0425049886107444763183594,
              -0.0748900920152664184570312,
              0.106347933411598205566406,
              -0.142027363181114196777344,
              0.199926957488059997558594,
              -0.333331018686294555664062):
        u = u * s + jnp.float32(c)
    return t + t * s * u


def _atan2(y, x):
    # TODO(synk): Mosaic has no lowering for lax.atan2_p; polynomial version here.
    abs_y = jnp.abs(y)
    abs_x = jnp.abs(x)
    swap = abs_y > abs_x
    num = jnp.where(swap, abs_x, abs_y)
    den = jnp.where(swap, abs_y, abs_x)
    # den >= EPSILON for all real data (r/i carry a +EPSILON offset, padded
    # regions are exactly (EPS, EPS)); keep the divide on the EUP slot.
    t = num * pl.reciprocal(den, approx=True)
    r = _atan_poly(t)
    r = jnp.where(swap, jnp.float32(0.5 * math.pi) - r, r)
    r = jnp.where(x < 0, jnp.float32(math.pi) - r, r)
    return jnp.where(y < 0, -r, r)


# ----------------------------------------------------------------------------
# Fused framing + windowed-DFT GEMM + mag/phase epilogue
# ----------------------------------------------------------------------------
def _stft_pallas(windows, weights, n_freq, fp, tt, m, cplx):
    """windows: (R, NT, Kp, tt+m-1); weights: (m, 2*Fp, Kp).

    Per grid step (r, tb) the kernel computes
        acc[f, t] = sum_j  W_j[f, :] @ windows[r, tb, :, t+j]          (MXU)
    i.e. the STFT of tt frames with the frame extraction done by lane-offset
    slices of the small, VMEM-resident window slab -- no frames array in HBM.
    Outputs are written directly in (row, freq, time) layout.
    """
    R, NT, kp, ttm = windows.shape
    t_pad = NT * tt
    assert weights.shape[2] == kp and ttm == tt + m - 1

    def kernel(win_ref, w_ref, o1_ref, o2_ref):
        acc = jnp.dot(w_ref[0], win_ref[0, 0, :, pl.ds(0, tt)],
                      preferred_element_type=jnp.float32)
        for j in range(1, m):                       # static unroll (m is tiny)
            a_j = win_ref[0, 0, :, pl.ds(j, tt)]    # (Kp, tt), shifted by j hops
            acc = acc + jnp.dot(w_ref[j], a_j, preferred_element_type=jnp.float32)
        re = acc[:n_freq, :]                        # only valid freq rows
        im = acc[fp:fp + n_freq, :]
        if cplx:
            o1_ref[0] = re
            o2_ref[0] = im
        else:
            o1_ref[0] = jnp.sqrt(jnp.maximum(re * re + im * im, EPSILON))
            o2_ref[0] = _atan2(im + EPSILON, re + EPSILON)

    return pl.pallas_call(
        kernel,
        out_shape=(jax.ShapeDtypeStruct((R, n_freq, t_pad), jnp.float32),
                   jax.ShapeDtypeStruct((R, n_freq, t_pad), jnp.float32)),
        grid=(R, NT),
        in_specs=[
            pl.BlockSpec((1, 1, kp, ttm), lambda r, t: (r, t, 0, 0)),
            # Combined real+imag weight slab, constant block index -> stays
            # VMEM-resident across the whole grid.
            pl.BlockSpec((m, weights.shape[1], kp), lambda r, t: (0, 0, 0)),
        ],
        out_specs=(
            pl.BlockSpec((1, n_freq, tt), lambda r, t: (r, 0, t)),
            pl.BlockSpec((1, n_freq, tt), lambda r, t: (r, 0, t)),
        ),
        compiler_params=pltpu.CompilerParams(
            dimension_semantics=("parallel", "parallel"),
            vmem_limit_bytes=48 * 1024 * 1024,      # <=48MiB: headroom on v7x
        ),
    )(windows, weights)


def _pick_tt(T, R, tt_max):
    """Time-tile (frames per grid step): big to amortize per-step overhead,
    but never collapse the grid to a single tile (keep v7x megacore busy)."""
    tt = max(128, min(tt_max, _round_up(T, 128)))
    if R * _cdiv(T, tt) < 2 and tt > 128:
        tt = max(128, _round_up(_cdiv(T, 2), 128))
    return tt


def _build_windows(flat, win_len, stride, pad, tt, m, kp):
    """(R, L) signal -> (R, NT, Kp, tt+m-1) hop-blocked, transposed windows.

    windows[r, tb, s, u] = x_pad[r, (tb*tt + u)*stride + s]  (zero for s>=stride)
    Only ~1.3x the signal size; the full frames array is never materialized.
    """
    R, L = flat.shape
    lp = L + 2 * pad
    T = (lp - win_len) // stride + 1
    NT = _cdiv(T, tt)
    nb = NT * tt + m - 1
    lp2 = nb * stride
    right = max(lp2 - (L + pad), 0)
    x2 = jnp.pad(flat, ((0, 0), (pad, right)))[:, :lp2]
    blocks = x2.reshape(R, nb, stride)
    if kp > stride:
        blocks = jnp.pad(blocks, ((0, 0), (0, 0), (0, kp - stride)))
    # Overlap between consecutive tiles is only (m-1) hops -> negligible dup.
    idx = np.arange(NT)[:, None] * tt + np.arange(tt + m - 1)[None, :]
    win = blocks[:, idx, :]                       # (R, NT, tt+m-1, Kp)
    win = jnp.transpose(win, (0, 1, 3, 2))        # (R, NT, Kp, tt+m-1)
    return win, NT


# ----------------------------------------------------------------------------
# ConvSTFT forward (matches the torch module's semantics)
# ----------------------------------------------------------------------------
def make_conv_stft(win_len, win_inc, fft_len=None, win_type="hamming",
                   tt_max=512, compute_dtype=jnp.float32):
    assert win_len >= win_inc, "win_len must be >= win_inc"
    if fft_len is None:
        fft_len = int(2 ** math.ceil(math.log2(win_len)))
    n_freq = fft_len // 2 + 1
    fp = _round_up(n_freq, 128)
    stride = win_inc
    pad = win_len - win_inc
    m = _cdiv(win_len, stride)
    kp = _round_up(stride, 128)                    # explicit zero-padded taps

    kernel_np, _ = init_stft_kernels(win_len, fft_len, win_type)   # (2F, win_len)
    wt = np.zeros((m, 2 * fp, kp), np.float32)
    for j in range(m):
        k0 = j * stride
        n_tap = min(stride, win_len - k0)
        wt[j, :n_freq, :n_tap] = kernel_np[:n_freq, k0:k0 + n_tap]        # cos*win
        wt[j, fp:fp + n_freq, :n_tap] = kernel_np[n_freq:, k0:k0 + n_tap]  # -sin*win
    wt = jnp.asarray(wt, dtype=compute_dtype)

    def forward(inputs, cplx=False):
        if inputs.ndim == 2:
            lead = inputs.shape[:1]
        elif inputs.ndim == 3:
            lead = inputs.shape[:2]
        else:
            raise ValueError("ConvSTFT expects a 2-D (N, L) or 3-D (N, C, L) input")
        flat = inputs.reshape(-1, inputs.shape[-1])
        R, L = flat.shape
        T = (L + 2 * pad - win_len) // stride + 1
        tt = _pick_tt(T, R, tt_max)
        windows, NT = _build_windows(flat, win_len, stride, pad, tt, m, kp)
        if compute_dtype != jnp.float32:
            windows = windows.astype(compute_dtype)
        o1, o2 = _stft_pallas(windows, wt, n_freq, fp, tt, m, bool(cplx))
        o1 = o1.reshape(*lead, n_freq, NT * tt)
        o2 = o2.reshape(*lead, n_freq, NT * tt)
        if NT * tt != T:                            # drop the ragged tail frames
            o1 = o1[..., :T]
            o2 = o2[..., :T]
        return o1, o2   # (mags, phase) if not cplx else (real, imag)

    return forward


# ----------------------------------------------------------------------------
# Demo / self-check
# ----------------------------------------------------------------------------
if __name__ == "__main__":
    win_len, win_inc, fft_len = 400, 100, 512
    forward = make_conv_stft(win_len, win_inc, fft_len, win_type="hamming")
    fwd = jax.jit(forward, static_argnames=("cplx",))

    key = jax.random.PRNGKey(0)
    k2, k3 = jax.random.split(key)

    pad = win_len - win_inc
    Fr = fft_len // 2 + 1
    kernel_np, _ = init_stft_kernels(win_len, fft_len, "hamming")
    kernel_j = jnp.asarray(kernel_np)

    def reference(x_flat, L):
        T = (L + 2 * pad - win_len) // win_inc + 1
        xp = jnp.pad(x_flat, ((0, 0), (pad, pad)))
        idx = np.arange(T)[:, None] * win_inc + np.arange(win_len)[None, :]
        frames = xp[:, idx]                                      # (R, T, win_len)
        out = jnp.einsum("rtk,ck->rct", frames, kernel_j,
                         precision=jax.lax.Precision.HIGHEST)    # (R, 2F, T)
        return out[:, :Fr], out[:, Fr:]

    # --- 2-D input path: (N, L) -> (mags, phase), each (N, F, T) -------------
    N, L = 2, 4000
    x2 = jax.random.normal(k2, (N, L), jnp.float32)
    mags, phase = jax.block_until_ready(fwd(x2))
    T = (L + 2 * pad - win_len) // win_inc + 1
    assert mags.shape == (N, Fr, T), mags.shape
    assert phase.shape == (N, Fr, T), phase.shape

    r_ref, i_ref = reference(x2, L)
    mags_ref = jnp.sqrt(jnp.maximum(r_ref ** 2 + i_ref ** 2, EPSILON))
    phase_ref = jnp.arctan2(i_ref + EPSILON, r_ref + EPSILON)
    mag_err = float(jnp.max(jnp.abs(mags - mags_ref) / (1.0 + jnp.abs(mags_ref))))
    assert mag_err < 5e-2, mag_err
    wrap = jnp.abs(jnp.mod(phase - phase_ref + math.pi, 2.0 * math.pi) - math.pi)
    ph_err = float(jnp.max(jnp.where(mags_ref > 1.0, wrap, 0.0)))
    assert ph_err < 5e-2, ph_err
    assert bool(jnp.all(jnp.isfinite(phase)))
    assert float(jnp.max(jnp.abs(phase))) <= math.pi + 1e-3

    # --- 3-D input path, cplx=True: (N, C, L) -> (r, i), each (N, C, F, T) ---
    Nc, C, L3 = 2, 2, 2000
    x3 = jax.random.normal(k3, (Nc, C, L3), jnp.float32)
    r3, i3 = jax.block_until_ready(fwd(x3, cplx=True))
    T3 = (L3 + 2 * pad - win_len) // win_inc + 1
    assert r3.shape == (Nc, C, Fr, T3) and i3.shape == (Nc, C, Fr, T3)
    r_ref3, i_ref3 = reference(x3.reshape(-1, L3), L3)
    r_err = float(jnp.max(jnp.abs(r3.reshape(-1, Fr, T3) - r_ref3)
                          / (1.0 + jnp.abs(r_ref3))))
    i_err = float(jnp.max(jnp.abs(i3.reshape(-1, Fr, T3) - i_ref3)
                          / (1.0 + jnp.abs(i_ref3))))
    assert r_err < 5e-2 and i_err < 5e-2, (r_err, i_err)

    print("KERNEL_OK")
</pallas_src>

<mosaic_0001>
module attributes {stable_mosaic.version = 11 : i64} {
  func.func @kernel(%arg0: i32, %arg1: i32, %arg2: memref<1x1x128x131xf32, #tpu.memory_space<vmem>>, %arg3: memref<4x768x128xf32, #tpu.memory_space<vmem>>, %arg4: memref<1x257x128xf32, #tpu.memory_space<vmem>>, %arg5: memref<1x257x128xf32, #tpu.memory_space<vmem>>) attributes {dimension_semantics = [#tpu.dimension_semantics<parallel>, #tpu.dimension_semantics<parallel>], iteration_bounds = array<i64: 2, 1>, scalar_prefetch = 0 : i64, scratch_operands = 0 : i64, tpu.core_type = #tpu.core_type<tc>, window_params = [{transform_indices = @transform_0, window_bounds = array<i64: 1, 1, 128, 131>}, {pipeline_mode = #tpu.pipeline_mode<synchronous>, transform_indices = @transform_1, window_bounds = array<i64: 4, 768, 128>}, {transform_indices = @transform_2, window_bounds = array<i64: 1, 257, 128>}, {transform_indices = @transform_3, window_bounds = array<i64: 1, 257, 128>}]} {
    %c0 = arith.constant 0 : index
    %c0_0 = arith.constant 0 : index
    %c0_1 = arith.constant 0 : index
    %0 = vector.load %arg3[%c0, %c0_0, %c0_1] : memref<4x768x128xf32, #tpu.memory_space<vmem>>, vector<1x768x128xf32>
    %1 = vector.shape_cast %0 : vector<1x768x128xf32> to vector<768x128xf32>
    %c0_2 = arith.constant 0 : index
    %c0_3 = arith.constant 0 : index
    %c0_4 = arith.constant 0 : index
    %c0_5 = arith.constant 0 : index
    %2 = vector.load %arg2[%c0_2, %c0_3, %c0_4, %c0_5] : memref<1x1x128x131xf32, #tpu.memory_space<vmem>>, vector<1x1x128x128xf32>
    %3 = vector.shape_cast %2 : vector<1x1x128x128xf32> to vector<128x128xf32>
    %cst = arith.constant dense<0.000000e+00> : vector<768x128xf32>
    %4 = tpu.matmul %1, %3, %cst {dimension_numbers = #tpu.dot_dimension_numbers<[1], [0], [0], [1], [0, 0, 1, 1], [], []>} : vector<768x128xf32>, vector<128x128xf32>, vector<768x128xf32> -> vector<768x128xf32>
    %c0_6 = arith.constant 0 : index
    %c0_7 = arith.constant 0 : index
    %c0_8 = arith.constant 0 : index
    %c1 = arith.constant 1 : index
    %5 = vector.load %arg2[%c0_6, %c0_7, %c0_8, %c1] : memref<1x1x128x131xf32, #tpu.memory_space<vmem>>, vector<1x1x128x128xf32>
    %6 = vector.shape_cast %5 : vector<1x1x128x128xf32> to vector<128x128xf32>
    %c1_9 = arith.constant 1 : index
    %c0_10 = arith.constant 0 : index
    %c0_11 = arith.constant 0 : index
    %7 = vector.load %arg3[%c1_9, %c0_10, %c0_11] : memref<4x768x128xf32, #tpu.memory_space<vmem>>, vector<1x768x128xf32>
    %8 = vector.shape_cast %7 : vector<1x768x128xf32> to vector<768x128xf32>
    %cst_12 = arith.constant dense<0.000000e+00> : vector<768x128xf32>
    %9 = tpu.matmul %8, %6, %cst_12 {dimension_numbers = #tpu.dot_dimension_numbers<[1], [0], [0], [1], [0, 0, 1, 1], [], []>} : vector<768x128xf32>, vector<128x128xf32>, vector<768x128xf32> -> vector<768x128xf32>
    %10 = arith.addf %4, %9 : vector<768x128xf32>
    %c0_13 = arith.constant 0 : index
    %c0_14 = arith.constant 0 : index
    %c0_15 = arith.constant 0 : index
    %c2 = arith.constant 2 : index
    %11 = vector.load %arg2[%c0_13, %c0_14, %c0_15, %c2] : memref<1x1x128x131xf32, #tpu.memory_space<vmem>>, vector<1x1x128x128xf32>
    %12 = vector.shape_cast %11 : vector<1x1x128x128xf32> to vector<128x128xf32>
    %c2_16 = arith.constant 2 : index
    %c0_17 = arith.constant 0 : index
    %c0_18 = arith.constant 0 : index
    %13 = vector.load %arg3[%c2_16, %c0_17, %c0_18] : memref<4x768x128xf32, #tpu.memory_space<vmem>>, vector<1x768x128xf32>
    %14 = vector.shape_cast %13 : vector<1x768x128xf32> to vector<768x128xf32>
    %cst_19 = arith.constant dense<0.000000e+00> : vector<768x128xf32>
    %15 = tpu.matmul %14, %12, %cst_19 {dimension_numbers = #tpu.dot_dimension_numbers<[1], [0], [0], [1], [0, 0, 1, 1], [], []>} : vector<768x128xf32>, vector<128x128xf32>, vector<768x128xf32> -> vector<768x128xf32>
    %16 = arith.addf %10, %15 : vector<768x128xf32>
    %c0_20 = arith.constant 0 : index
    %c0_21 = arith.constant 0 : index
    %c0_22 = arith.constant 0 : index
    %c3 = arith.constant 3 : index
    %17 = vector.load %arg2[%c0_20, %c0_21, %c0_22, %c3] : memref<1x1x128x131xf32, #tpu.memory_space<vmem>>, vector<1x1x128x128xf32>
    %18 = vector.shape_cast %17 : vector<1x1x128x128xf32> to vector<128x128xf32>
    %c3_23 = arith.constant 3 : index
    %c0_24 = arith.constant 0 : index
    %c0_25 = arith.constant 0 : index
    %19 = vector.load %arg3[%c3_23, %c0_24, %c0_25] : memref<4x768x128xf32, #tpu.memory_space<vmem>>, vector<1x768x128xf32>
    %20 = vector.shape_cast %19 : vector<1x768x128xf32> to vector<768x128xf32>
    %cst_26 = arith.constant dense<0.000000e+00> : vector<768x128xf32>
    %21 = tpu.matmul %20, %18, %cst_26 {dimension_numbers = #tpu.dot_dimension_numbers<[1], [0], [0], [1], [0, 0, 1, 1], [], []>} : vector<768x128xf32>, vector<128x128xf32>, vector<768x128xf32> -> vector<768x128xf32>
    %22 = arith.addf %16, %21 : vector<768x128xf32>
    %23 = vector.extract_strided_slice %22 {offsets = [0, 0], sizes = [257, 128], strides = [1, 1]} : vector<768x128xf32> to vector<257x128xf32>
    %24 = vector.extract_strided_slice %22 {offsets = [384, 0], sizes = [257, 128], strides = [1, 1]} : vector<768x128xf32> to vector<257x128xf32>
    %25 = arith.mulf %23, %23 : vector<257x128xf32>
    %26 = arith.mulf %24, %24 : vector<257x128xf32>
    %27 = arith.addf %25, %26 : vector<257x128xf32>
    %cst_27 = arith.constant 1.1920929E-7 : f32
    %28 = vector.broadcast %cst_27 : f32 to vector<257x128xf32>
    %29 = arith.maximumf %27, %28 : vector<257x128xf32>
    %30 = math.sqrt %29 : vector<257x128xf32>
    %c0_28 = arith.constant 0 : index
    %c0_29 = arith.constant 0 : index
    %c0_30 = arith.constant 0 : index
    %31 = vector.load %arg4[%c0_28, %c0_29, %c0_30] : memref<1x257x128xf32, #tpu.memory_space<vmem>>, vector<1x257x128xf32>
    %32 = vector.shape_cast %31 : vector<1x257x128xf32> to vector<257x128xf32>
    %33 = vector.shape_cast %30 : vector<257x128xf32> to vector<1x257x128xf32>
    tpu.vector_store %arg4[%c0_28, %c0_29, %c0_30], %33 {strides = array<i32>} : memref<1x257x128xf32, #tpu.memory_space<vmem>>, vector<1x257x128xf32>,
    %cst_31 = arith.constant 1.1920929E-7 : f32
    %34 = vector.broadcast %cst_31 : f32 to vector<257x128xf32>
    %35 = arith.addf %24, %34 : vector<257x128xf32>
    %cst_32 = arith.constant 1.1920929E-7 : f32
    %36 = vector.broadcast %cst_32 : f32 to vector<257x128xf32>
    %37 = arith.addf %23, %36 : vector<257x128xf32>
    %38 = math.absf %35 : vector<257x128xf32>
    %39 = math.absf %37 : vector<257x128xf32>
    %40 = arith.cmpf ogt, %38, %39 : vector<257x128xf32>
    %41 = arith.select %40, %39, %38 : vector<257x128xi1>, vector<257x128xf32>
    %42 = arith.select %40, %38, %39 : vector<257x128xi1>, vector<257x128xf32>
    %43 = tpu.reciprocal %42 {approx = true} : vector<257x128xf32> -> vector<257x128xf32>
    %44 = arith.mulf %41, %43 : vector<257x128xf32>
    %45 = arith.mulf %44, %44 : vector<257x128xf32>
    %cst_33 = arith.constant 0.00282363896 : f32
    %46 = vector.broadcast %cst_33 : f32 to vector<257x128xf32>
    %47 = arith.mulf %46, %45 : vector<257x128xf32>
    %cst_34 = arith.constant -0.0159569029 : f32
    %48 = vector.broadcast %cst_34 : f32 to vector<257x128xf32>
    %49 = arith.addf %47, %48 : vector<257x128xf32>
    %50 = arith.mulf %49, %45 : vector<257x128xf32>
    %cst_35 = arith.constant 0.0425049886 : f32
    %51 = vector.broadcast %cst_35 : f32 to vector<257x128xf32>
    %52 = arith.addf %50, %51 : vector<257x128xf32>
    %53 = arith.mulf %52, %45 : vector<257x128xf32>
    %cst_36 = arith.constant -0.074890092 : f32
    %54 = vector.broadcast %cst_36 : f32 to vector<257x128xf32>
    %55 = arith.addf %53, %54 : vector<257x128xf32>
    %56 = arith.mulf %55, %45 : vector<257x128xf32>
    %cst_37 = arith.constant 0.106347933 : f32
    %57 = vector.broadcast %cst_37 : f32 to vector<257x128xf32>
    %58 = arith.addf %56, %57 : vector<257x128xf32>
    %59 = arith.mulf %58, %45 : vector<257x128xf32>
    %cst_38 = arith.constant -0.142027363 : f32
    %60 = vector.broadcast %cst_38 : f32 to vector<257x128xf32>
    %61 = arith.addf %59, %60 : vector<257x128xf32>
    %62 = arith.mulf %61, %45 : vector<257x128xf32>
    %cst_39 = arith.constant 0.199926957 : f32
    %63 = vector.broadcast %cst_39 : f32 to vector<257x128xf32>
    %64 = arith.addf %62, %63 : vector<257x128xf32>
    %65 = arith.mulf %64, %45 : vector<257x128xf32>
    %cst_40 = arith.constant -0.333331019 : f32
    %66 = vector.broadcast %cst_40 : f32 to vector<257x128xf32>
    %67 = arith.addf %65, %66 : vector<257x128xf32>
    %68 = arith.mulf %44, %45 : vector<257x128xf32>
    %69 = arith.mulf %68, %67 : vector<257x128xf32>
    %70 = arith.addf %44, %69 : vector<257x128xf32>
    %cst_41 = arith.constant 1.57079637 : f32
    %71 = vector.broadcast %cst_41 : f32 to vector<257x128xf32>
    %72 = arith.subf %71, %70 : vector<257x128xf32>
    %73 = arith.select %40, %72, %70 : vector<257x128xi1>, vector<257x128xf32>
    %cst_42 = arith.constant 0.000000e+00 : f32
    %74 = vector.broadcast %cst_42 : f32 to vector<257x128xf32>
    %75 = arith.cmpf olt, %37, %74 : vector<257x128xf32>
    %cst_43 = arith.constant 3.14159274 : f32
    %76 = vector.broadcast %cst_43 : f32 to vector<257x128xf32>
    %77 = arith.subf %76, %73 : vector<257x128xf32>
    %78 = arith.select %75, %77, %73 : vector<257x128xi1>, vector<257x128xf32>
    %cst_44 = arith.constant 0.000000e+00 : f32
    %79 = vector.broadcast %cst_44 : f32 to vector<257x128xf32>
    %80 = arith.cmpf olt, %35, %79 : vector<257x128xf32>
    %cst_45 = arith.constant 0.000000e+00 : f32
    %81 = vector.broadcast %cst_45 : f32 to vector<257x128xf32>
    %82 = arith.subf %81, %78 : vector<257x128xf32>
    %83 = arith.select %80, %82, %78 : vector<257x128xi1>, vector<257x128xf32>
    %c0_46 = arith.constant 0 : index
    %c0_47 = arith.constant 0 : index
    %c0_48 = arith.constant 0 : index
    %84 = vector.load %arg5[%c0_46, %c0_47, %c0_48] : memref<1x257x128xf32, #tpu.memory_space<vmem>>, vector<1x257x128xf32>
    %85 = vector.shape_cast %84 : vector<1x257x128xf32> to vector<257x128xf32>
    %86 = vector.shape_cast %83 : vector<257x128xf32> to vector<1x257x128xf32>
    tpu.vector_store %arg5[%c0_46, %c0_47, %c0_48], %86 {strides = array<i32>} : memref<1x257x128xf32, #tpu.memory_space<vmem>>, vector<1x257x128xf32>,
    return
  }
  func.func @transform_0(%arg0: i32, %arg1: i32) -> (i32, i32, i32, i32) {
    %c0_i32 = arith.constant 0 : i32
    %c0_i32_0 = arith.constant 0 : i32
    %c0_i32_1 = arith.constant 0 : i32
    return %arg0, %arg1, %c0_i32, %c0_i32_0 : i32, i32, i32, i32
  }
  func.func @transform_1(%arg0: i32, %arg1: i32) -> (i32, i32, i32) {
    %c0_i32 = arith.constant 0 : i32
    %c0_i32_0 = arith.constant 0 : i32
    %c0_i32_1 = arith.constant 0 : i32
    %c0_i32_2 = arith.constant 0 : i32
    return %c0_i32, %c0_i32_0, %c0_i32_1 : i32, i32, i32
  }
  func.func @transform_2(%arg0: i32, %arg1: i32) -> (i32, i32, i32) {
    %c0_i32 = arith.constant 0 : i32
    %c0_i32_0 = arith.constant 0 : i32
    return %arg0, %c0_i32, %arg1 : i32, i32, i32
  }
  func.func @transform_3(%arg0: i32, %arg1: i32) -> (i32, i32, i32) {
    %c0_i32 = arith.constant 0 : i32
    %c0_i32_0 = arith.constant 0 : i32
    return %arg0, %c0_i32, %arg1 : i32, i32, i32
  }
}

</mosaic_0001>

<llo_original>
// kernel: forward.1
$region0: #{forward.1}
  #allocation0 [shape = 'u32[]', space=smem, size = 0x4, offset = 0x4, fixed_abs, tag = 'smem constant byte address 0x4 - core index']
  #allocation1 [shape = 'u32[144,128]{1,0:T(1,128)}', space=vmem, size = 0x12000, scoped, tag = 'internal scratch']
  %s0 = inlined_call_operand.vmem [shape: f32[2,1,128,131], index: 0, kind: input, shape index: {}]
  %s1 = inlined_call_operand.vmem [shape: f32[4,768,128], index: 1, kind: input, shape index: {}]
  %s2 = inlined_call_operand.vmem [shape: f32[2,257,128], index: 2, kind: output, shape index: {0}]
  %s3 = inlined_call_operand.vmem [shape: f32[2,257,128], index: 3, kind: output, shape index: {1}]
  %4 = xla_tuple %s2, %s3
  %s5 = sld [smem:[#allocation0]]
  $region49: #{forward.1} parent=0
    _
  %s7 = ssub.s32 1, %s5
  %s8 = scalar_select 0, %s7, %s5
  loop: start=0, step=1, limit=4
  $region2: #{forward.1} parent=0 // loop_pre_header
    _
  $region3: #{forward.1} parent=0 // loop_header
    %s10 = sphi 0, %s14
    %p11 = scmp.ge.s32.totalorder %s10, 4
    %s17 = sphi 0, %s29
    %s18 = sphi 0, %s25
    %s19 = sphi 0, %s17
    %s20 = sphi 0, %s18
    %s21 = sphi 0, %s19
    %s22 = sphi 0, %s20
    %s34 = sphi 0, %s36
    %s37 = sphi 0, %s34
    %s38 = sphi 0, %s37
    %s54 = sphi 0, %s38
    %s58 = sphi 0, %s58
    %s60 = sphi 0, %s58
    %s61 = sphi 0, %s60
    %s75 = sphi 0, %s61
    %s83 = sphi 0, %s85
    %s86 = sphi 0, %s83
    %s87 = sphi 0, %s86
    %s103 = sphi 0, %s87
    %s111 = sphi 0, %s113
    %s114 = sphi 0, %s111
    %s115 = sphi 0, %s114
    %s131 = sphi 0, %s115
  $region4: #{forward.1} parent=0 // loop_header_branch
    %13 = sbr.rel (%p11) target = $region8
  $region5: #{forward.1} parent=0 // loop_body
    %s15 = ssub.s32 %s10, 1
    %s16 = ssub.s32 %s10, 2
    %s23 = sadd.s32 1, %s18
    %p24 = scmp.ge.s32.totalorder %s23, 1
    %s25 = scalar_select %p24, 0, %s23
    %s26 = sadd.s32 1, %s17
    %s27 = scalar_select %p24, %s26, %s17
    %p28 = scmp.ge.s32.totalorder %s27, 2
    %s29 = scalar_select %p28, 0, %s27
    %s30 = ssub.s32 %s17, %s29
    %s31 = ssub.s32 %s18, %s25
    %s32 = sor.u32 %s30, %s31
    %p33 = scmp.eq.s32.totalorder %s32, 0
    %s35 = sadd.s32 %s34, 1
    %s36 = scalar_select %p33, %s34, %s35
    %p39 = pneg %p33
    %p40 = scmp.eq.s32.totalorder %s10, 1
    %p41 = por %p39, %p40
    %p42 = scmp.ne.s32.totalorder %s34, %s37
    %p43 = scmp.eq.s32.totalorder %s10, 0
    %p44 = por %p42, %p43
    %p45 = scmp.ne.s32.totalorder %s34, %s37
    %p46 = scmp.eq.s32.totalorder %s15, 1
    %p47 = por %p45, %p46
    %p48 = scmp.ne.s32.totalorder %s37, %s38
    %p49 = scmp.eq.s32.totalorder %s15, 0
    %p50 = por %p48, %p49
    %p51 = scmp.ne.s32.totalorder %s37, %s38
    %p52 = scmp.eq.s32.totalorder %s16, 1
    %p53 = por %p51, %p52
    %p55 = scmp.ne.s32.totalorder %s38, %s54
    %p56 = scmp.eq.s32.totalorder %s16, 0
    %p57 = por %p55, %p56
    %s59 = sadd.s32 %s58, 1
    %p62 = scmp.eq.s32.totalorder %s10, 1
    %p63 = scmp.ne.s32.totalorder %s58, %s60
    %p64 = scmp.eq.s32.totalorder %s10, 0
    %p65 = por %p63, %p64
    %p66 = scmp.ne.s32.totalorder %s58, %s60
    %p67 = scmp.eq.s32.totalorder %s15, 1
    %p68 = por %p66, %p67
    %p69 = scmp.ne.s32.totalorder %s60, %s61
    %p70 = scmp.eq.s32.totalorder %s15, 0
    %p71 = por %p69, %p70
    %p72 = scmp.ne.s32.totalorder %s60, %s61
    %p73 = scmp.eq.s32.totalorder %s16, 1
    %p74 = por %p72, %p73
    %p76 = scmp.ne.s32.totalorder %s61, %s75
    %p77 = scmp.eq.s32.totalorder %s16, 0
    %p78 = por %p76, %p77
    %s79 = ssub.s32 %s17, %s29
    %s80 = ssub.s32 %s18, %s25
    %s81 = sor.u32 %s79, %s80
    %p82 = scmp.eq.s32.totalorder %s81, 0
    %s84 = sadd.s32 %s83, 1
    %s85 = scalar_select %p82, %s83, %s84
    %p88 = pneg %p82
    %p89 = scmp.eq.s32.totalorder %s10, 1
    %p90 = por %p88, %p89
    %p91 = scmp.ne.s32.totalorder %s83, %s86
    %p92 = scmp.eq.s32.totalorder %s10, 0
    %p93 = por %p91, %p92
    %p94 = scmp.ne.s32.totalorder %s83, %s86
    %p95 = scmp.eq.s32.totalorder %s15, 1
    %p96 = por %p94, %p95
    %p97 = scmp.ne.s32.totalorder %s86, %s87
    %p98 = scmp.eq.s32.totalorder %s15, 0
    %p99 = por %p97, %p98
    %p100 = scmp.ne.s32.totalorder %s86, %s87
    %p101 = scmp.eq.s32.totalorder %s16, 1
    %p102 = por %p100, %p101
    %p104 = scmp.ne.s32.totalorder %s87, %s103
    %p105 = scmp.eq.s32.totalorder %s16, 0
    %p106 = por %p104, %p105
    %s107 = ssub.s32 %s17, %s29
    %s108 = ssub.s32 %s18, %s25
    %s109 = sor.u32 %s107, %s108
    %p110 = scmp.eq.s32.totalorder %s109, 0
    %s112 = sadd.s32 %s111, 1
    %s113 = scalar_select %p110, %s111, %s112
    %p116 = pneg %p110
    %p117 = scmp.eq.s32.totalorder %s10, 1
    %p118 = por %p116, %p117
    %p119 = scmp.ne.s32.totalorder %s111, %s114
    %p120 = scmp.eq.s32.totalorder %s10, 0
    %p121 = por %p119, %p120
    %p122 = scmp.ne.s32.totalorder %s111, %s114
    %p123 = scmp.eq.s32.totalorder %s15, 1
    %p124 = por %p122, %p123
    %p125 = scmp.ne.s32.totalorder %s114, %s115
    %p126 = scmp.eq.s32.totalorder %s15, 0
    %p127 = por %p125, %p126
    %p128 = scmp.ne.s32.totalorder %s114, %s115
    %p129 = scmp.eq.s32.totalorder %s16, 1
    %p130 = por %p128, %p129
    %p132 = scmp.ne.s32.totalorder %s115, %s131
    %p133 = scmp.eq.s32.totalorder %s16, 0
    %p134 = por %p132, %p133
    %p135 = scmp.le.s32.totalorder 1, %s10
    %p136 = scmp.lt.s32.totalorder %s10, 3
    %p137 = pnand %p135, %p136
    %p138 = pneg %p137
    // Predicated region
    $region9: #{forward.1} parent=5 // pred_check
      _
    $region10: #{forward.1} parent=5 // pred_check_branch
      %140 = sbr.rel (%p137) target = $region12
    $region11: #{forward.1} parent=5 // pred_region
      %s141 = ssub.s32 %s10, 1
      // Predicated region
      $region13: #{forward.1} parent=11 // pred_check
        %p142 = pneg %p71
      $region14: #{forward.1} parent=11 // pred_check_branch
        %144 = sbr.rel (%p142) target = $region16
      $region15: #{forward.1} parent=11 // pred_region
        _
      $region16: #{forward.1} parent=11 // pred_fallthru
        _
    $region12: #{forward.1} parent=5 // pred_fallthru
      _
    %p145 = scmp.lt.s32.totalorder %s10, 2
    // Predicated region
    $region17: #{forward.1} parent=5 // pred_check
      %p146 = pneg %p145
    $region18: #{forward.1} parent=5 // pred_check_branch
      %148 = sbr.rel (%p146) target = $region20
    $region19: #{forward.1} parent=5 // pred_region
      // Predicated region
      $region21: #{forward.1} parent=19 // pred_check
        %p149 = pneg %p44
      $region22: #{forward.1} parent=19 // pred_check_branch
        %151 = sbr.rel (%p149) target = $region24
      $region23: #{forward.1} parent=19 // pred_region
        %p152 = scmp.lt.s32.totalorder %s17, 1
        %s153 = scalar_select %p152, %s17, 1
        %p154 = scmp.lt.s32.totalorder %s18, 0
        %s155 = scalar_select %p154, %s18, 0
        %s156 = smul.addr %s155, 32
        %s157 = smul.addr %s153, 32
        %s158 = sadd.s32 %s156, %s157
        %s159 = smul.addr %s158, 8
        %s160 = scalar_lea.vmem %s0, %s159
      $region24: #{forward.1} parent=19 // pred_fallthru
        _
    $region20: #{forward.1} parent=5 // pred_fallthru
      _
    %p161 = scmp.le.s32.totalorder 1, %s10
    %p162 = scmp.lt.s32.totalorder %s10, 3
    %p163 = pnand %p161, %p162
    %p164 = pneg %p163
    // Predicated region
    $region25: #{forward.1} parent=5 // pred_check
      _
    $region26: #{forward.1} parent=5 // pred_check_branch
      %166 = sbr.rel (%p163) target = $region28
    $region27: #{forward.1} parent=5 // pred_region
      %s167 = ssub.s32 %s10, 1
      %p168 = scmp.lt.s32.totalorder %s19, 1
      %s169 = scalar_select %p168, %s19, 1
      %p170 = scmp.lt.s32.totalorder %s20, 0
      %s171 = scalar_select %p170, %s20, 0
      %s172 = smul.addr %s171, 32
      %s173 = smul.addr %s169, 32
      %s174 = sadd.s32 %s172, %s173
      %s175 = smul.addr %s174, 8
      %s176 = scalar_lea.vmem %s0, %s175
      %p177 = pneg %p50
      %p178 = pneg %p47
      %p179 = pneg %p71
      %p180 = pneg %p68
      %p181 = pneg %p99
      %p182 = pneg %p96
      %p183 = scmp.lt.s32.totalorder %s19, 1
      %s184 = scalar_select %p183, %s19, 1
      %p185 = scmp.lt.s32.totalorder %s20, 0
      %s186 = scalar_select %p185, %s20, 0
      %s187 = smul.addr %s184, 33
      %s188 = sadd.s32 %s186, %s187
      %s189 = smul.addr %s188, 8
      %s190 = scalar_lea.vmem %s2, %s189
      %p191 = pneg %p127
      %p192 = pneg %p124
      %p193 = scmp.lt.s32.totalorder %s19, 1
      %s194 = scalar_select %p193, %s19, 1
      %p195 = scmp.lt.s32.totalorder %s20, 0
      %s196 = scalar_select %p195, %s20, 0
      %s197 = smul.addr %s194, 33
      %s198 = sadd.s32 %s196, %s197
      %s199 = smul.addr %s198, 8
      %s200 = scalar_lea.vmem %s3, %s199
      %p201 = scmp.lt.s32.totalorder %s19, 1
      %s202 = scalar_select %p201, %s19, 1
      %p203 = scmp.lt.s32.totalorder %s20, 0
      %s204 = scalar_select %p203, %s20, 0
      %s205 = smul.addr %s204, 32
      %s206 = smul.addr %s202, 32
      %s207 = sadd.s32 %s205, %s206
      %s208 = smul.addr %s207, 8
      %s209 = scalar_lea.vmem %s0, %s208
      %p210 = scmp.lt.s32.totalorder %s19, 1
      %s211 = scalar_select %p210, %s19, 1
      %p212 = scmp.lt.s32.totalorder %s20, 0
      %s213 = scalar_select %p212, %s20, 0
      %s214 = smul.addr %s211, 33
      %s215 = sadd.s32 %s213, %s214
      %s216 = smul.addr %s215, 8
      %s217 = scalar_lea.vmem %s2, %s216
      %p218 = scmp.lt.s32.totalorder %s19, 1
      %s219 = scalar_select %p218, %s19, 1
      %p220 = scmp.lt.s32.totalorder %s20, 0
      %s221 = scalar_select %p220, %s20, 0
      %s222 = smul.addr %s219, 33
      %s223 = sadd.s32 %s221, %s222
      %s224 = smul.addr %s223, 8
      %s225 = scalar_lea.vmem %s3, %s224
      %v226 = vld [vmem:[%s1] sm:$0xff]
      %v227 = vld [vmem:[%s1 + $0x8] sm:$0xff]
      %v228 = vld [vmem:[%s1 + $0x10] sm:$0xff]
      %v229 = vld [vmem:[%s1 + $0x18] sm:$0xff]
      %v230 = vld [vmem:[%s1 + $0x20] sm:$0xff]
      %v231 = vld [vmem:[%s1 + $0x28] sm:$0xff]
      %v232 = vld [vmem:[%s1 + $0x30] sm:$0xff]
      %v233 = vld [vmem:[%s1 + $0x38] sm:$0xff]
      %v234 = vld [vmem:[%s1 + $0x40] sm:$0xff]
      %v235 = vld [vmem:[%s1 + $0x48] sm:$0xff]
      %v236 = vld [vmem:[%s1 + $0x50] sm:$0xff]
      %v237 = vld [vmem:[%s1 + $0x58] sm:$0xff]
      %v238 = vld [vmem:[%s1 + $0x60] sm:$0xff]
      %v239 = vld [vmem:[%s1 + $0x68] sm:$0xff]
      %v240 = vld [vmem:[%s1 + $0x70] sm:$0xff]
      %v241 = vld [vmem:[%s1 + $0x78] sm:$0xff]
      %v242 = vld [vmem:[%s1 + $0x80] sm:$0xff]
      %v243 = vld [vmem:[%s1 + $0x88] sm:$0xff]
      %v244 = vld [vmem:[%s1 + $0x90] sm:$0xff]
      %v245 = vld [vmem:[%s1 + $0x98] sm:$0xff]
      %v246 = vld [vmem:[%s1 + $0xa0] sm:$0xff]
      %v247 = vld [vmem:[%s1 + $0xa8] sm:$0xff]
      %v248 = vld [vmem:[%s1 + $0xb0] sm:$0xff]
      %v249 = vld [vmem:[%s1 + $0xb8] sm:$0xff]
      %v250 = vld [vmem:[%s1 + $0xc0] sm:$0xff]
      %v251 = vld [vmem:[%s1 + $0xc8] sm:$0xff]
      %v252 = vld [vmem:[%s1 + $0xd0] sm:$0xff]
      %v253 = vld [vmem:[%s1 + $0xd8] sm:$0xff]
      %v254 = vld [vmem:[%s1 + $0xe0] sm:$0xff]
      %v255 = vld [vmem:[%s1 + $0xe8] sm:$0xff]
      %v256 = vld [vmem:[%s1 + $0xf0] sm:$0xff]
      %v257 = vld [vmem:[%s1 + $0xf8] sm:$0xff]
      %v258 = vld [vmem:[%s1 + $0x100] sm:$0xff]
      %v259 = vld [vmem:[%s1 + $0x108] sm:$0xff]
      %v260 = vld [vmem:[%s1 + $0x110] sm:$0xff]
      %v261 = vld [vmem:[%s1 + $0x118] sm:$0xff]
      %v262 = vld [vmem:[%s1 + $0x120] sm:$0xff]
      %v263 = vld [vmem:[%s1 + $0x128] sm:$0xff]
      %v264 = vld [vmem:[%s1 + $0x130] sm:$0xff]
      %v265 = vld [vmem:[%s1 + $0x138] sm:$0xff]
      %v266 = vld [vmem:[%s1 + $0x140] sm:$0xff]
      %v267 = vld [vmem:[%s1 + $0x148] sm:$0xff]
      %v268 = vld [vmem:[%s1 + $0x150] sm:$0xff]
      %v269 = vld [vmem:[%s1 + $0x158] sm:$0xff]
      %v270 = vld [vmem:[%s1 + $0x160] sm:$0xff]
      %v271 = vld [vmem:[%s1 + $0x168] sm:$0xff]
      %v272 = vld [vmem:[%s1 + $0x170] sm:$0xff]
      %v273 = vld [vmem:[%s1 + $0x178] sm:$0xff]
      %v274 = vld [vmem:[%s1 + $0x180] sm:$0xff]
      %v275 = vld [vmem:[%s1 + $0x188] sm:$0xff]
      %v276 = vld [vmem:[%s1 + $0x190] sm:$0xff]
      %v277 = vld [vmem:[%s1 + $0x198] sm:$0xff]
      %v278 = vld [vmem:[%s1 + $0x1a0] sm:$0xff]
      %v279 = vld [vmem:[%s1 + $0x1a8] sm:$0xff]
      %v280 = vld [vmem:[%s1 + $0x1b0] sm:$0xff]
      %v281 = vld [vmem:[%s1 + $0x1b8] sm:$0xff]
      %v282 = vld [vmem:[%s1 + $0x1c0] sm:$0xff]
      %v283 = vld [vmem:[%s1 + $0x1c8] sm:$0xff]
      %v284 = vld [vmem:[%s1 + $0x1d0] sm:$0xff]
      %v285 = vld [vmem:[%s1 + $0x1d8] sm:$0xff]
      %v286 = vld [vmem:[%s1 + $0x1e0] sm:$0xff]
      %v287 = vld [vmem:[%s1 + $0x1e8] sm:$0xff]
      %v288 = vld [vmem:[%s1 + $0x1f0] sm:$0xff]
      %v289 = vld [vmem:[%s1 + $0x1f8] sm:$0xff]
      %v290 = vld [vmem:[%s1 + $0x200] sm:$0xff]
      %v291 = vld [vmem:[%s1 + $0x208] sm:$0xff]
      %v292 = vld [vmem:[%s1 + $0x210] sm:$0xff]
      %v293 = vld [vmem:[%s1 + $0x218] sm:$0xff]
      %v294 = vld [vmem:[%s1 + $0x220] sm:$0xff]
      %v295 = vld [vmem:[%s1 + $0x228] sm:$0xff]
      %v296 = vld [vmem:[%s1 + $0x230] sm:$0xff]
      %v297 = vld [vmem:[%s1 + $0x238] sm:$0xff]
      %v298 = vld [vmem:[%s1 + $0x240] sm:$0xff]
      %v299 = vld [vmem:[%s1 + $0x248] sm:$0xff]
      %v300 = vld [vmem:[%s1 + $0x250] sm:$0xff]
      %v301 = vld [vmem:[%s1 + $0x258] sm:$0xff]
      %v302 = vld [vmem:[%s1 + $0x260] sm:$0xff]
      %v303 = vld [vmem:[%s1 + $0x268] sm:$0xff]
      %v304 = vld [vmem:[%s1 + $0x270] sm:$0xff]
      %v305 = vld [vmem:[%s1 + $0x278] sm:$0xff]
      %v306 = vld [vmem:[%s1 + $0x280] sm:$0xff]
      %v307 = vld [vmem:[%s1 + $0x288] sm:$0xff]
      %v308 = vld [vmem:[%s1 + $0x290] sm:$0xff]
      %v309 = vld [vmem:[%s1 + $0x298] sm:$0xff]
      %v310 = vld [vmem:[%s1 + $0x2a0] sm:$0xff]
      %v311 = vld [vmem:[%s1 + $0x2a8] sm:$0xff]
      %v312 = vld [vmem:[%s1 + $0x2b0] sm:$0xff]
      %v313 = vld [vmem:[%s1 + $0x2b8] sm:$0xff]
      %v314 = vld [vmem:[%s1 + $0x2c0] sm:$0xff]
      %v315 = vld [vmem:[%s1 + $0x2c8] sm:$0xff]
      %v316 = vld [vmem:[%s1 + $0x2d0] sm:$0xff]
      %v317 = vld [vmem:[%s1 + $0x2d8] sm:$0xff]
      %v318 = vld [vmem:[%s1 + $0x2e0] sm:$0xff]
      %v319 = vld [vmem:[%s1 + $0x2e8] sm:$0xff]
      %v320 = vld [vmem:[%s1 + $0x2f0] sm:$0xff]
      %v321 = vld [vmem:[%s1 + $0x2f8] sm:$0xff]
      %v322 = vld [vmem:[%s209] sm:$0xff]
      %v323 = vld [vmem:[%s209 + $0x10] sm:$0xff]
      %v324 = vld [vmem:[%s209 + $0x20] sm:$0xff]
      %v325 = vld [vmem:[%s209 + $0x30] sm:$0xff]
      %v326 = vld [vmem:[%s209 + $0x40] sm:$0xff]
      %v327 = vld [vmem:[%s209 + $0x50] sm:$0xff]
      %v328 = vld [vmem:[%s209 + $0x60] sm:$0xff]
      %v329 = vld [vmem:[%s209 + $0x70] sm:$0xff]
      %v330 = vld [vmem:[%s209 + $0x80] sm:$0xff]
      %v331 = vld [vmem:[%s209 + $0x90] sm:$0xff]
      %v332 = vld [vmem:[%s209 + $0xa0] sm:$0xff]
      %v333 = vld [vmem:[%s209 + $0xb0] sm:$0xff]
      %v334 = vld [vmem:[%s209 + $0xc0] sm:$0xff]
      %v335 = vld [vmem:[%s209 + $0xd0] sm:$0xff]
      %v336 = vld [vmem:[%s209 + $0xe0] sm:$0xff]
      %v337 = vld [vmem:[%s209 + $0xf0] sm:$0xff]
      %v338 = vld [vmem:[%s209 + $0x8] sm:$0xff]
      %v339 = vld [vmem:[%s209 + $0x18] sm:$0xff]
      %v340 = vld [vmem:[%s209 + $0x28] sm:$0xff]
      %v341 = vld [vmem:[%s209 + $0x38] sm:$0xff]
      %v342 = vld [vmem:[%s209 + $0x48] sm:$0xff]
      %v343 = vld [vmem:[%s209 + $0x58] sm:$0xff]
      %v344 = vld [vmem:[%s209 + $0x68] sm:$0xff]
      %v345 = vld [vmem:[%s209 + $0x78] sm:$0xff]
      %v346 = vld [vmem:[%s209 + $0x88] sm:$0xff]
      %v347 = vld [vmem:[%s209 + $0x98] sm:$0xff]
      %v348 = vld [vmem:[%s209 + $0xa8] sm:$0xff]
      %v349 = vld [vmem:[%s209 + $0xb8] sm:$0xff]
      %v350 = vld [vmem:[%s209 + $0xc8] sm:$0xff]
      %v351 = vld [vmem:[%s209 + $0xd8] sm:$0xff]
      %v352 = vld [vmem:[%s209 + $0xe8] sm:$0xff]
      %v353 = vld [vmem:[%s209 + $0xf8] sm:$0xff]
      %s354 = scalar_lea.vmem %s1, 768
      %v355 = vld [vmem:[%s354] sm:$0xff]
      %v356 = vld [vmem:[%s354 + $0x8] sm:$0xff]
      %v357 = vld [vmem:[%s354 + $0x10] sm:$0xff]
      %v358 = vld [vmem:[%s354 + $0x18] sm:$0xff]
      %v359 = vld [vmem:[%s354 + $0x20] sm:$0xff]
      %v360 = vld [vmem:[%s354 + $0x28] sm:$0xff]
      %v361 = vld [vmem:[%s354 + $0x30] sm:$0xff]
      %v362 = vld [vmem:[%s354 + $0x38] sm:$0xff]
      %v363 = vld [vmem:[%s354 + $0x40] sm:$0xff]
      %v364 = vld [vmem:[%s354 + $0x48] sm:$0xff]
      %v365 = vld [vmem:[%s354 + $0x50] sm:$0xff]
      %v366 = vld [vmem:[%s354 + $0x58] sm:$0xff]
      %v367 = vld [vmem:[%s354 + $0x60] sm:$0xff]
      %v368 = vld [vmem:[%s354 + $0x68] sm:$0xff]
      %v369 = vld [vmem:[%s354 + $0x70] sm:$0xff]
      %v370 = vld [vmem:[%s354 + $0x78] sm:$0xff]
      %v371 = vld [vmem:[%s354 + $0x80] sm:$0xff]
      %v372 = vld [vmem:[%s354 + $0x88] sm:$0xff]
      %v373 = vld [vmem:[%s354 + $0x90] sm:$0xff]
      %v374 = vld [vmem:[%s354 + $0x98] sm:$0xff]
      %v375 = vld [vmem:[%s354 + $0xa0] sm:$0xff]
      %v376 = vld [vmem:[%s354 + $0xa8] sm:$0xff]
      %v377 = vld [vmem:[%s354 + $0xb0] sm:$0xff]
      %v378 = vld [vmem:[%s354 + $0xb8] sm:$0xff]
      %v379 = vld [vmem:[%s354 + $0xc0] sm:$0xff]
      %v380 = vld [vmem:[%s354 + $0xc8] sm:$0xff]
      %v381 = vld [vmem:[%s354 + $0xd0] sm:$0xff]
      %v382 = vld [vmem:[%s354 + $0xd8] sm:$0xff]
      %v383 = vld [vmem:[%s354 + $0xe0] sm:$0xff]
      %v384 = vld [vmem:[%s354 + $0xe8] sm:$0xff]
      %v385 = vld [vmem:[%s354 + $0xf0] sm:$0xff]
      %v386 = vld [vmem:[%s354 + $0xf8] sm:$0xff]
      %v387 = vld [vmem:[%s354 + $0x100] sm:$0xff]
      %v388 = vld [vmem:[%s354 + $0x108] sm:$0xff]
      %v389 = vld [vmem:[%s354 + $0x110] sm:$0xff]
      %v390 = vld [vmem:[%s354 + $0x118] sm:$0xff]
      %v391 = vld [vmem:[%s354 + $0x120] sm:$0xff]
      %v392 = vld [vmem:[%s354 + $0x128] sm:$0xff]
      %v393 = vld [vmem:[%s354 + $0x130] sm:$0xff]
      %v394 = vld [vmem:[%s354 + $0x138] sm:$0xff]
      %v395 = vld [vmem:[%s354 + $0x140] sm:$0xff]
      %v396 = vld [vmem:[%s354 + $0x148] sm:$0xff]
      %v397 = vld [vmem:[%s354 + $0x150] sm:$0xff]
      %v398 = vld [vmem:[%s354 + $0x158] sm:$0xff]
      %v399 = vld [vmem:[%s354 + $0x160] sm:$0xff]
      %v400 = vld [vmem:[%s354 + $0x168] sm:$0xff]
      %v401 = vld [vmem:[%s354 + $0x170] sm:$0xff]
      %v402 = vld [vmem:[%s354 + $0x178] sm:$0xff]
      %v403 = vld [vmem:[%s354 + $0x180] sm:$0xff]
      %v404 = vld [vmem:[%s354 + $0x188] sm:$0xff]
      %v405 = vld [vmem:[%s354 + $0x190] sm:$0xff]
      %v406 = vld [vmem:[%s354 + $0x198] sm:$0xff]
      %v407 = vld [vmem:[%s354 + $0x1a0] sm:$0xff]
      %v408 = vld [vmem:[%s354 + $0x1a8] sm:$0xff]
      %v409 = vld [vmem:[%s354 + $0x1b0] sm:$0xff]
      %v410 = vld [vmem:[%s354 + $0x1b8] sm:$0xff]
      %v411 = vld [vmem:[%s354 + $0x1c0] sm:$0xff]
      %v412 = vld [vmem:[%s354 + $0x1c8] sm:$0xff]
      %v413 = vld [vmem:[%s354 + $0x1d0] sm:$0xff]
      %v414 = vld [vmem:[%s354 + $0x1d8] sm:$0xff]
      %v415 = vld [vmem:[%s354 + $0x1e0] sm:$0xff]
      %v416 = vld [vmem:[%s354 + $0x1e8] sm:$0xff]
      %v417 = vld [vmem:[%s354 + $0x1f0] sm:$0xff]
      %v418 = vld [vmem:[%s354 + $0x1f8] sm:$0xff]
      %v419 = vld [vmem:[%s354 + $0x200] sm:$0xff]
      %v420 = vld [vmem:[%s354 + $0x208] sm:$0xff]
      %v421 = vld [vmem:[%s354 + $0x210] sm:$0xff]
      %v422 = vld [vmem:[%s354 + $0x218] sm:$0xff]
      %v423 = vld [vmem:[%s354 + $0x220] sm:$0xff]
      %v424 = vld [vmem:[%s354 + $0x228] sm:$0xff]
      %v425 = vld [vmem:[%s354 + $0x230] sm:$0xff]
      %v426 = vld [vmem:[%s354 + $0x238] sm:$0xff]
      %v427 = vld [vmem:[%s354 + $0x240] sm:$0xff]
      %v428 = vld [vmem:[%s354 + $0x248] sm:$0xff]
      %v429 = vld [vmem:[%s354 + $0x250] sm:$0xff]
      %v430 = vld [vmem:[%s354 + $0x258] sm:$0xff]
      %v431 = vld [vmem:[%s354 + $0x260] sm:$0xff]
      %v432 = vld [vmem:[%s354 + $0x268] sm:$0xff]
      %v433 = vld [vmem:[%s354 + $0x270] sm:$0xff]
      %v434 = vld [vmem:[%s354 + $0x278] sm:$0xff]
      %v435 = vld [vmem:[%s354 + $0x280] sm:$0xff]
      %v436 = vld [vmem:[%s354 + $0x288] sm:$0xff]
      %v437 = vld [vmem:[%s354 + $0x290] sm:$0xff]
      %v438 = vld [vmem:[%s354 + $0x298] sm:$0xff]
      %v439 = vld [vmem:[%s354 + $0x2a0] sm:$0xff]
      %v440 = vld [vmem:[%s354 + $0x2a8] sm:$0xff]
      %v441 = vld [vmem:[%s354 + $0x2b0] sm:$0xff]
      %v442 = vld [vmem:[%s354 + $0x2b8] sm:$0xff]
      %v443 = vld [vmem:[%s354 + $0x2c0] sm:$0xff]
      %v444 = vld [vmem:[%s354 + $0x2c8] sm:$0xff]
      %v445 = vld [vmem:[%s354 + $0x2d0] sm:$0xff]
      %v446 = vld [vmem:[%s354 + $0x2d8] sm:$0xff]
      %v447 = vld [vmem:[%s354 + $0x2e0] sm:$0xff]
      %v448 = vld [vmem:[%s354 + $0x2e8] sm:$0xff]
      %v449 = vld [vmem:[%s354 + $0x2f0] sm:$0xff]
      %v450 = vld [vmem:[%s354 + $0x2f8] sm:$0xff]
      %483 = vrot.lane.b32.xlu0 %v322, 127
      %v484 = vpop.permute.xlu0 %483
      %485 = vrot.lane.b32.xlu0 %v338, 127
      %v486 = vpop.permute.xlu0 %485
      %487 = vrot.lane.b32.xlu0 %v323, 127
      %v488 = vpop.permute.xlu0 %487
      %489 = vrot.lane.b32.xlu0 %v339, 127
      %v490 = vpop.permute.xlu0 %489
      %491 = vrot.lane.b32.xlu0 %v324, 127
      %v492 = vpop.permute.xlu0 %491
      %493 = vrot.lane.b32.xlu0 %v340, 127
      %v494 = vpop.permute.xlu0 %493
      %495 = vrot.lane.b32.xlu0 %v325, 127
      %v496 = vpop.permute.xlu0 %495
      %497 = vrot.lane.b32.xlu0 %v341, 127
      %v498 = vpop.permute.xlu0 %497
      %499 = vrot.lane.b32.xlu0 %v326, 127
      %v500 = vpop.permute.xlu0 %499
      %501 = vrot.lane.b32.xlu0 %v342, 127
      %v502 = vpop.permute.xlu0 %501
      %503 = vrot.lane.b32.xlu0 %v327, 127
      %v504 = vpop.permute.xlu0 %503
      %505 = vrot.lane.b32.xlu0 %v343, 127
      %v506 = vpop.permute.xlu0 %505
      %507 = vrot.lane.b32.xlu0 %v328, 127
      %v508 = vpop.permute.xlu0 %507
      %509 = vrot.lane.b32.xlu0 %v344, 127
      %v510 = vpop.permute.xlu0 %509
      %511 = vrot.lane.b32.xlu0 %v329, 127
      %v512 = vpop.permute.xlu0 %511
      %513 = vrot.lane.b32.xlu0 %v345, 127
      %v514 = vpop.permute.xlu0 %513
      %515 = vrot.lane.b32.xlu0 %v330, 127
      %v516 = vpop.permute.xlu0 %515
      %517 = vrot.lane.b32.xlu0 %v346, 127
      %v518 = vpop.permute.xlu0 %517
      %519 = vrot.lane.b32.xlu0 %v331, 127
      %v520 = vpop.permute.xlu0 %519
      %521 = vrot.lane.b32.xlu0 %v347, 127
      %v522 = vpop.permute.xlu0 %521
      %523 = vrot.lane.b32.xlu0 %v332, 127
      %v524 = vpop.permute.xlu0 %523
      %525 = vrot.lane.b32.xlu0 %v348, 127
      %v526 = vpop.permute.xlu0 %525
      %527 = vrot.lane.b32.xlu0 %v333, 127
      %v528 = vpop.permute.xlu0 %527
      %529 = vrot.lane.b32.xlu0 %v349, 127
      %v530 = vpop.permute.xlu0 %529
      %531 = vrot.lane.b32.xlu0 %v334, 127
      %v532 = vpop.permute.xlu0 %531
      %533 = vrot.lane.b32.xlu0 %v350, 127
      %v534 = vpop.permute.xlu0 %533
      %535 = vrot.lane.b32.xlu0 %v335, 127
      %v536 = vpop.permute.xlu0 %535
      %537 = vrot.lane.b32.xlu0 %v351, 127
      %v538 = vpop.permute.xlu0 %537
      %539 = vrot.lane.b32.xlu0 %v336, 127
      %v540 = vpop.permute.xlu0 %539
      %541 = vrot.lane.b32.xlu0 %v352, 127
      %v542 = vpop.permute.xlu0 %541
      %543 = vrot.lane.b32.xlu0 %v337, 127
      %v544 = vpop.permute.xlu0 %543
      %545 = vrot.lane.b32.xlu0 %v353, 127
      %v546 = vpop.permute.xlu0 %545
      %vm547 = vcmask 1039360
      %v548 = vsel %vm547, %v484, %v486
      %v549 = vsel %vm547, %v488, %v490
      %v550 = vsel %vm547, %v492, %v494
      %v551 = vsel %vm547, %v496, %v498
      %v552 = vsel %vm547, %v500, %v502
      %v553 = vsel %vm547, %v504, %v506
      %v554 = vsel %vm547, %v508, %v510
      %v555 = vsel %vm547, %v512, %v514
      %v556 = vsel %vm547, %v516, %v518
      %v557 = vsel %vm547, %v520, %v522
      %v558 = vsel %vm547, %v524, %v526
      %v559 = vsel %vm547, %v528, %v530
      %v560 = vsel %vm547, %v532, %v534
      %v561 = vsel %vm547, %v536, %v538
      %v562 = vsel %vm547, %v540, %v542
      %v563 = vsel %vm547, %v544, %v546
      %580 = vmatprep.subr.mxu0 0.0
      %581 = vmatpush1.msra.mxu0 %v548
      %582 = vmatprep.subr.mxu0 0.0
      %583 = vmatpush1.msra.mxu0 %v549
      %584 = vmatprep.subr.mxu0 0.0
      %585 = vmatpush1.msra.mxu0 %v550
      %586 = vmatprep.subr.mxu0 0.0
      %587 = vmatpush1.msra.mxu0 %v551
      %588 = vmatprep.subr.mxu0 0.0
      %589 = vmatpush1.msra.mxu0 %v552
      %590 = vmatprep.subr.mxu0 0.0
      %591 = vmatpush1.msra.mxu0 %v553
      %592 = vmatprep.subr.mxu0 0.0
      %593 = vmatpush1.msra.mxu0 %v554
      %594 = vmatprep.subr.mxu0 0.0
      %595 = vmatpush1.msra.mxu0 %v555
      %596 = vmatprep.subr.mxu0 0.0
      %597 = vmatpush1.msra.mxu0 %v556
      %598 = vmatprep.subr.mxu0 0.0
      %599 = vmatpush1.msra.mxu0 %v557
      %600 = vmatprep.subr.mxu0 0.0
      %601 = vmatpush1.msra.mxu0 %v558
      %602 = vmatprep.subr.mxu0 0.0
      %603 = vmatpush1.msra.mxu0 %v559
      %604 = vmatprep.subr.mxu0 0.0
      %605 = vmatpush1.msra.mxu0 %v560
      %606 = vmatprep.subr.mxu0 0.0
      %607 = vmatpush1.msra.mxu0 %v561
      %608 = vmatprep.subr.mxu0 0.0
      %609 = vmatpush1.msra.mxu0 %v562
      %610 = vmatprep.subr.mxu0 0.0
      %611 = vmatpush1.msra.mxu0 %v563
      %612 = vmatprep.subr.mxu0 0.0
      %613 = vmatpush1.msra.mxu0 0.0
      %614 = vmatprep.subr.mxu0 0.0
      %615 = vmatpush1.msra.mxu0 0.0
      %616 = vmatprep.subr.mxu0 0.0
      %617 = vmatpush1.msra.mxu0 0.0
      %618 = vmatprep.subr.mxu0 0.0
      %619 = vmatpush1.msra.mxu0 0.0
      %620 = vmatprep.subr.mxu0 0.0
      %621 = vmatpush1.msra.mxu0 0.0
      %622 = vmatprep.subr.mxu0 0.0
      %623 = vmatpush1.msra.mxu0 0.0
      %624 = vmatprep.subr.mxu0 0.0
      %625 = vmatpush1.msra.mxu0 0.0
      %626 = vmatprep.subr.mxu0 0.0
      %627 = vmatpush1.msra.mxu0 0.0
      %628 = vmatprep.subr.mxu0 0.0
      %629 = vmatpush1.msra.mxu0 0.0
      %630 = vmatprep.subr.mxu0 0.0
      %631 = vmatpush1.msra.mxu0 0.0
      %632 = vmatprep.subr.mxu0 0.0
      %633 = vmatpush1.msra.mxu0 0.0
      %634 = vmatprep.subr.mxu0 0.0
      %635 = vmatpush1.msra.mxu0 0.0
      %636 = vmatprep.subr.mxu0 0.0
      %637 = vmatpush1.msra.mxu0 0.0
      %638 = vmatprep.subr.mxu0 0.0
      %639 = vmatpush1.msra.mxu0 0.0
      %640 = vmatprep.subr.mxu0 0.0
      %641 = vmatpush1.msra.mxu0 0.0
      %642 = vmatprep.subr.mxu0 0.0
      %643 = vmatpush1.msra.mxu0 0.0
      %644 = vmatprep.mubr.f32.mxu0 0.0
      %645 = vmatmul.mubr.f32.gmra.mrb[0].mxu0 %v355
      %v646 = vpop.f32.mrb[0].mxu0
      %v647 = vadd.f32 0.0, %v646
      %v648 = vpop.f32.mrb[0].mxu0
      %649 = vmatprep.mubr.f32.mxu0 0.0
      %650 = vmatmul.mubr.f32.gmra.mrb[0].mxu0 %v356
      %v651 = vpop.f32.mrb[0].mxu0
      %v652 = vadd.f32 0.0, %v651
      %v653 = vpop.f32.mrb[0].mxu0
      %654 = vmatprep.mubr.f32.mxu0 0.0
      %655 = vmatmul.mubr.f32.gmra.mrb[0].mxu0 %v357
      %v656 = vpop.f32.mrb[0].mxu0
      %v657 = vadd.f32 0.0, %v656
      %v658 = vpop.f32.mrb[0].mxu0
      %659 = vmatprep.mubr.f32.mxu0 0.0
      %660 = vmatmul.mubr.f32.gmra.mrb[0].mxu0 %v358
      %v661 = vpop.f32.mrb[0].mxu0
      %v662 = vadd.f32 0.0, %v661
      %v663 = vpop.f32.mrb[0].mxu0
      %664 = vmatprep.mubr.f32.mxu0 0.0
      %665 = vmatmul.mubr.f32.gmra.mrb[0].mxu0 %v359
      %v666 = vpop.f32.mrb[0].mxu0
      %v667 = vadd.f32 0.0, %v666
      %v668 = vpop.f32.mrb[0].mxu0
      %669 = vmatprep.mubr.f32.mxu0 0.0
      %670 = vmatmul.mubr.f32.gmra.mrb[0].mxu0 %v360
      %v671 = vpop.f32.mrb[0].mxu0
      %v672 = vadd.f32 0.0, %v671
      %v673 = vpop.f32.mrb[0].mxu0
      %674 = vmatprep.mubr.f32.mxu0 0.0
      %675 = vmatmul.mubr.f32.gmra.mrb[0].mxu0 %v361
      %v676 = vpop.f32.mrb[0].mxu0
      %v677 = vadd.f32 0.0, %v676
      %v678 = vpop.f32.mrb[0].mxu0
      %679 = vmatprep.mubr.f32.mxu0 0.0
      %680 = vmatmul.mubr.f32.gmra.mrb[0].mxu0 %v362
      %v681 = vpop.f32.mrb[0].mxu0
      %v682 = vadd.f32 0.0, %v681
      %v683 = vpop.f32.mrb[0].mxu0
      %684 = vmatprep.mubr.f32.mxu0 0.0
      %685 = vmatmul.mubr.f32.gmra.mrb[0].mxu0 %v363
      %v686 = vpop.f32.mrb[0].mxu0
      %v687 = vadd.f32 0.0, %v686
      %v688 = vpop.f32.mrb[0].mxu0
      %689 = vmatprep.mubr.f32.mxu0 0.0
      %690 = vmatmul.mubr.f32.gmra.mrb[0].mxu0 %v364
      %v691 = vpop.f32.mrb[0].mxu0
      %v692 = vadd.f32 0.0, %v691
      %v693 = vpop.f32.mrb[0].mxu0
      %694 = vmatprep.mubr.f32.mxu0 0.0
      %695 = vmatmul.mubr.f32.gmra.mrb[0].mxu0 %v365
      %v696 = vpop.f32.mrb[0].mxu0
      %v697 = vadd.f32 0.0, %v696
      %v698 = vpop.f32.mrb[0].mxu0
      %699 = vmatprep.mubr.f32.mxu0 0.0
      %700 = vmatmul.mubr.f32.gmra.mrb[0].mxu0 %v366
      %v701 = vpop.f32.mrb[0].mxu0
      %v702 = vadd.f32 0.0, %v701
      %v703 = vpop.f32.mrb[0].mxu0
      %704 = vmatprep.mubr.f32.mxu0 0.0
      %705 = vmatmul.mubr.f32.gmra.mrb[0].mxu0 %v367
      %v706 = vpop.f32.mrb[0].mxu0
      %v707 = vadd.f32 0.0, %v706
      %v708 = vpop.f32.mrb[0].mxu0
      %709 = vmatprep.mubr.f32.mxu0 0.0
      %710 = vmatmul.mubr.f32.gmra.mrb[0].mxu0 %v368
      %v711 = vpop.f32.mrb[0].mxu0
      %v712 = vadd.f32 0.0, %v711
      %v713 = vpop.f32.mrb[0].mxu0
      %714 = vmatprep.mubr.f32.mxu0 0.0
      %715 = vmatmul.mubr.f32.gmra.mrb[0].mxu0 %v369
      %v716 = vpop.f32.mrb[0].mxu0
      %v717 = vadd.f32 0.0, %v716
      %v718 = vpop.f32.mrb[0].mxu0
      %719 = vmatprep.mubr.f32.mxu0 0.0
      %720 = vmatmul.mubr.f32.gmra.mrb[0].mxu0 %v370
      %v721 = vpop.f32.mrb[0].mxu0
      %v722 = vadd.f32 0.0, %v721
      %v723 = vpop.f32.mrb[0].mxu0
      %724 = vmatprep.mubr.f32.mxu0 0.0
      %725 = vmatmul.mubr.f32.gmra.mrb[0].mxu0 %v371
      %v726 = vpop.f32.mrb[0].mxu0
      %v727 = vadd.f32 0.0, %v726
      %v728 = vpop.f32.mrb[0].mxu0
      %729 = vmatprep.mubr.f32.mxu0 0.0
      %730 = vmatmul.mubr.f32.gmra.mrb[0].mxu0 %v372
      %v731 = vpop.f32.mrb[0].mxu0
      %v732 = vadd.f32 0.0, %v731
      %v733 = vpop.f32.mrb[0].mxu0
      %734 = vmatprep.mubr.f32.mxu0 0.0
      %735 = vmatmul.mubr.f32.gmra.mrb[0].mxu0 %v373
      %v736 = vpop.f32.mrb[0].mxu0
      %v737 = vadd.f32 0.0, %v736
      %v738 = vpop.f32.mrb[0].mxu0
      %739 = vmatprep.mubr.f32.mxu0 0.0
      %740 = vmatmul.mubr.f32.gmra.mrb[0].mxu0 %v374
      %v741 = vpop.f32.mrb[0].mxu0
      %v742 = vadd.f32 0.0, %v741
      %v743 = vpop.f32.mrb[0].mxu0
      %744 = vmatprep.mubr.f32.mxu0 0.0
      %745 = vmatmul.mubr.f32.gmra.mrb[0].mxu0 %v375
      %v746 = vpop.f32.mrb[0].mxu0
      %v747 = vadd.f32 0.0, %v746
      %v748 = vpop.f32.mrb[0].mxu0
      %749 = vmatprep.mubr.f32.mxu0 0.0
      %750 = vmatmul.mubr.f32.gmra.mrb[0].mxu0 %v376
      %v751 = vpop.f32.mrb[0].mxu0
      %v752 = vadd.f32 0.0, %v751
      %v753 = vpop.f32.mrb[0].mxu0
      %754 = vmatprep.mubr.f32.mxu0 0.0
      %755 = vmatmul.mubr.f32.gmra.mrb[0].mxu0 %v377
      %v756 = vpop.f32.mrb[0].mxu0
      %v757 = vadd.f32 0.0, %v756
      %v758 = vpop.f32.mrb[0].mxu0
      %759 = vmatprep.mubr.f32.mxu0 0.0
      %760 = vmatmul.mubr.f32.gmra.mrb[0].mxu0 %v378
      %v761 = vpop.f32.mrb[0].mxu0
      %v762 = vadd.f32 0.0, %v761
      %v763 = vpop.f32.mrb[0].mxu0
      %764 = vmatprep.mubr.f32.mxu0 0.0
      %765 = vmatmul.mubr.f32.gmra.mrb[0].mxu0 %v379
      %v766 = vpop.f32.mrb[0].mxu0
      %v767 = vadd.f32 0.0, %v766
      %v768 = vpop.f32.mrb[0].mxu0
      %769 = vmatprep.mubr.f32.mxu0 0.0
      %770 = vmatmul.mubr.f32.gmra.mrb[0].mxu0 %v380
      %v771 = vpop.f32.mrb[0].mxu0
      %v772 = vadd.f32 0.0, %v771
      %v773 = vpop.f32.mrb[0].mxu0
      %774 = vmatprep.mubr.f32.mxu0 0.0
      %775 = vmatmul.mubr.f32.gmra.mrb[0].mxu0 %v381
      %v776 = vpop.f32.mrb[0].mxu0
      %v777 = vadd.f32 0.0, %v776
      %v778 = vpop.f32.mrb[0].mxu0
      %779 = vmatprep.mubr.f32.mxu0 0.0
      %780 = vmatmul.mubr.f32.gmra.mrb[0].mxu0 %v382
      %v781 = vpop.f32.mrb[0].mxu0
      %v782 = vadd.f32 0.0, %v781
      %v783 = vpop.f32.mrb[0].mxu0
      %784 = vmatprep.mubr.f32.mxu0 0.0
      %785 = vmatmul.mubr.f32.gmra.mrb[0].mxu0 %v383
      %v786 = vpop.f32.mrb[0].mxu0
      %v787 = vadd.f32 0.0, %v786
      %v788 = vpop.f32.mrb[0].mxu0
      %789 = vmatprep.mubr.f32.mxu0 0.0
      %790 = vmatmul.mubr.f32.gmra.mrb[0].mxu0 %v384
      %v791 = vpop.f32.mrb[0].mxu0
      %v792 = vadd.f32 0.0, %v791
      %v793 = vpop.f32.mrb[0].mxu0
      %794 = vmatprep.mubr.f32.mxu0 0.0
      %795 = vmatmul.mubr.f32.gmra.mrb[0].mxu0 %v385
      %v796 = vpop.f32.mrb[0].mxu0
      %v797 = vadd.f32 0.0, %v796
      %v798 = vpop.f32.mrb[0].mxu0
      %799 = vmatprep.mubr.f32.mxu0 0.0
      %800 = vmatmul.mubr.f32.gmra.mrb[0].mxu0 %v386
      %v801 = vpop.f32.mrb[0].mxu0
      %v802 = vadd.f32 0.0, %v801
      %v803 = vpop.f32.mrb[0].mxu0
      %804 = vmatprep.mubr.f32.mxu0 0.0
      %805 = vmatmul.mubr.f32.gmra.mrb[0].mxu0 %v387
      %v806 = vpop.f32.mrb[0].mxu0
      %v807 = vadd.f32 0.0, %v806
      %v808 = vpop.f32.mrb[0].mxu0
      %809 = vmatprep.mubr.f32.mxu0 0.0
      %810 = vmatmul.mubr.f32.gmra.mrb[0].mxu0 %v388
      %v811 = vpop.f32.mrb[0].mxu0
      %v812 = vpop.f32.mrb[0].mxu0
      %813 = vmatprep.mubr.f32.mxu0 0.0
      %814 = vmatmul.mubr.f32.gmra.mrb[0].mxu0 %v389
      %v815 = vpop.f32.mrb[0].mxu0
      %v816 = vpop.f32.mrb[0].mxu0
      %817 = vmatprep.mubr.f32.mxu0 0.0
      %818 = vmatmul.mubr.f32.gmra.mrb[0].mxu0 %v390
      %v819 = vpop.f32.mrb[0].mxu0
      %v820 = vpop.f32.mrb[0].mxu0
      %821 = vmatprep.mubr.f32.mxu0 0.0
      %822 = vmatmul.mubr.f32.gmra.mrb[0].mxu0 %v391
      %v823 = vpop.f32.mrb[0].mxu0
      %v824 = vpop.f32.mrb[0].mxu0
      %825 = vmatprep.mubr.f32.mxu0 0.0
      %826 = vmatmul.mubr.f32.gmra.mrb[0].mxu0 %v392
      %v827 = vpop.f32.mrb[0].mxu0
      %v828 = vpop.f32.mrb[0].mxu0
      %829 = vmatprep.mubr.f32.mxu0 0.0
      %830 = vmatmul.mubr.f32.gmra.mrb[0].mxu0 %v393
      %v831 = vpop.f32.mrb[0].mxu0
      %v832 = vpop.f32.mrb[0].mxu0
      %833 = vmatprep.mubr.f32.mxu0 0.0
      %834 = vmatmul.mubr.f32.gmra.mrb[0].mxu0 %v394
      %v835 = vpop.f32.mrb[0].mxu0
      %v836 = vpop.f32.mrb[0].mxu0
      %837 = vmatprep.mubr.f32.mxu0 0.0
      %838 = vmatmul.mubr.f32.gmra.mrb[0].mxu0 %v395
      %v839 = vpop.f32.mrb[0].mxu0
      %v840 = vpop.f32.mrb[0].mxu0
      %841 = vmatprep.mubr.f32.mxu0 0.0
      %842 = vmatmul.mubr.f32.gmra.mrb[0].mxu0 %v396
      %v843 = vpop.f32.mrb[0].mxu0
      %v844 = vpop.f32.mrb[0].mxu0
      %845 = vmatprep.mubr.f32.mxu0 0.0
      %846 = vmatmul.mubr.f32.gmra.mrb[0].mxu0 %v397
      %v847 = vpop.f32.mrb[0].mxu0
      %v848 = vpop.f32.mrb[0].mxu0
      %849 = vmatprep.mubr.f32.mxu0 0.0
      %850 = vmatmul.mubr.f32.gmra.mrb[0].mxu0 %v398
      %v851 = vpop.f32.mrb[0].mxu0
      %v852 = vpop.f32.mrb[0].mxu0
      %853 = vmatprep.mubr.f32.mxu0 0.0
      %854 = vmatmul.mubr.f32.gmra.mrb[0].mxu0 %v399
      %v855 = vpop.f32.mrb[0].mxu0
      %v856 = vpop.f32.mrb[0].mxu0
      %857 = vmatprep.mubr.f32.mxu0 0.0
      %858 = vmatmul.mubr.f32.gmra.mrb[0].mxu0 %v400
      %v859 = vpop.f32.mrb[0].mxu0
      %v860 = vpop.f32.mrb[0].mxu0
      %861 = vmatprep.mubr.f32.mxu0 0.0
      %862 = vmatmul.mubr.f32.gmra.mrb[0].mxu0 %v401
      %v863 = vpop.f32.mrb[0].mxu0
      %v864 = vpop.f32.mrb[0].mxu0
      %865 = vmatprep.mubr.f32.mxu0 0.0
      %866 = vmatmul.mubr.f32.gmra.mrb[0].mxu0 %v402
      %v867 = vpop.f32.mrb[0].mxu0
      %v868 = vpop.f32.mrb[0].mxu0
      %869 = vmatprep.mubr.f32.mxu0 0.0
      %870 = vmatmul.mubr.f32.gmra.mrb[0].mxu0 %v403
      %v871 = vpop.f32.mrb[0].mxu0
      %v872 = vadd.f32 0.0, %v871
      %v873 = vpop.f32.mrb[0].mxu0
      %874 = vmatprep.mubr.f32.mxu0 0.0
      %875 = vmatmul.mubr.f32.gmra.mrb[0].mxu0 %v404
      %v876 = vpop.f32.mrb[0].mxu0
      %v877 = vadd.f32 0.0, %v876
      %v878 = vpop.f32.mrb[0].mxu0
      %879 = vmatprep.mubr.f32.mxu0 0.0
      %880 = vmatmul.mubr.f32.gmra.mrb[0].mxu0 %v405
      %v881 = vpop.f32.mrb[0].mxu0
      %v882 = vadd.f32 0.0, %v881
      %v883 = vpop.f32.mrb[0].mxu0
      %884 = vmatprep.mubr.f32.mxu0 0.0
      %885 = vmatmul.mubr.f32.gmra.mrb[0].mxu0 %v406
      %v886 = vpop.f32.mrb[0].mxu0
      %v887 = vadd.f32 0.0, %v886
      %v888 = vpop.f32.mrb[0].mxu0
      %889 = vmatprep.mubr.f32.mxu0 0.0
      %890 = vmatmul.mubr.f32.gmra.mrb[0].mxu0 %v407
      %v891 = vpop.f32.mrb[0].mxu0
      %v892 = vadd.f32 0.0, %v891
      %v893 = vpop.f32.mrb[0].mxu0
      %894 = vmatprep.mubr.f32.mxu0 0.0
      %895 = vmatmul.mubr.f32.gmra.mrb[0].mxu0 %v408
      %v896 = vpop.f32.mrb[0].mxu0
      %v897 = vadd.f32 0.0, %v896
      %v898 = vpop.f32.mrb[0].mxu0
      %899 = vmatprep.mubr.f32.mxu0 0.0
      %900 = vmatmul.mubr.f32.gmra.mrb[0].mxu0 %v409
      %v901 = vpop.f32.mrb[0].mxu0
      %v902 = vadd.f32 0.0, %v901
      %v903 = vpop.f32.mrb[0].mxu0
      %904 = vmatprep.mubr.f32.mxu0 0.0
      %905 = vmatmul.mubr.f32.gmra.mrb[0].mxu0 %v410
      %v906 = vpop.f32.mrb[0].mxu0
      %v907 = vadd.f32 0.0, %v906
      %v908 = vpop.f32.mrb[0].mxu0
      %909 = vmatprep.mubr.f32.mxu0 0.0
      %910 = vmatmul.mubr.f32.gmra.mrb[0].mxu0 %v411
      %v911 = vpop.f32.mrb[0].mxu0
      %v912 = vadd.f32 0.0, %v911
      %v913 = vpop.f32.mrb[0].mxu0
      %914 = vmatprep.mubr.f32.mxu0 0.0
      %915 = vmatmul.mubr.f32.gmra.mrb[0].mxu0 %v412
      %v916 = vpop.f32.mrb[0].mxu0
      %v917 = vadd.f32 0.0, %v916
      %v918 = vpop.f32.mrb[0].mxu0
      %919 = vmatprep.mubr.f32.mxu0 0.0
      %920 = vmatmul.mubr.f32.gmra.mrb[0].mxu0 %v413
      %v921 = vpop.f32.mrb[0].mxu0
      %v922 = vadd.f32 0.0, %v921
      %v923 = vpop.f32.mrb[0].mxu0
      %924 = vmatprep.mubr.f32.mxu0 0.0
      %925 = vmatmul.mubr.f32.gmra.mrb[0].mxu0 %v414
      %v926 = vpop.f32.mrb[0].mxu0
      %v927 = vadd.f32 0.0, %v926
      %v928 = vpop.f32.mrb[0].mxu0
      %929 = vmatprep.mubr.f32.mxu0 0.0
      %930 = vmatmul.mubr.f32.gmra.mrb[0].mxu0 %v415
      %v931 = vpop.f32.mrb[0].mxu0
      %v932 = vadd.f32 0.0, %v931
      %v933 = vpop.f32.mrb[0].mxu0
      %934 = vmatprep.mubr.f32.mxu0 0.0
      %935 = vmatmul.mubr.f32.gmra.mrb[0].mxu0 %v416
      %v936 = vpop.f32.mrb[0].mxu0
      %v937 = vadd.f32 0.0, %v936
      %v938 = vpop.f32.mrb[0].mxu0
      %939 = vmatprep.mubr.f32.mxu0 0.0
      %940 = vmatmul.mubr.f32.gmra.mrb[0].mxu0 %v417
      %v941 = vpop.f32.mrb[0].mxu0
      %v942 = vadd.f32 0.0, %v941
      %v943 = vpop.f32.mrb[0].mxu0
      %944 = vmatprep.mubr.f32.mxu0 0.0
      %945 = vmatmul.mubr.f32.gmra.mrb[0].mxu0 %v418
      %v946 = vpop.f32.mrb[0].mxu0
      %v947 = vadd.f32 0.0, %v946
      %v948 = vpop.f32.mrb[0].mxu0
      %949 = vmatprep.mubr.f32.mxu0 0.0
      %950 = vmatmul.mubr.f32.gmra.mrb[0].mxu0 %v419
      %v951 = vpop.f32.mrb[0].mxu0
      %v952 = vadd.f32 0.0, %v951
      %v953 = vpop.f32.mrb[0].mxu0
      %954 = vmatprep.mubr.f32.mxu0 0.0
      %955 = vmatmul.mubr.f32.gmra.mrb[0].mxu0 %v420
      %v956 = vpop.f32.mrb[0].mxu0
      %v957 = vadd.f32 0.0, %v956
      %v958 = vpop.f32.mrb[0].mxu0
      %959 = vmatprep.mubr.f32.mxu0 0.0
      %960 = vmatmul.mubr.f32.gmra.mrb[0].mxu0 %v421
      %v961 = vpop.f32.mrb[0].mxu0
      %v962 = vadd.f32 0.0, %v961
      %v963 = vpop.f32.mrb[0].mxu0
      %964 = vmatprep.mubr.f32.mxu0 0.0
      %965 = vmatmul.mubr.f32.gmra.mrb[0].mxu0 %v422
      %v966 = vpop.f32.mrb[0].mxu0
      %v967 = vadd.f32 0.0, %v966
      %v968 = vpop.f32.mrb[0].mxu0
      %969 = vmatprep.mubr.f32.mxu0 0.0
      %970 = vmatmul.mubr.f32.gmra.mrb[0].mxu0 %v423
      %v971 = vpop.f32.mrb[0].mxu0
      %v972 = vadd.f32 0.0, %v971
      %v973 = vpop.f32.mrb[0].mxu0
      %974 = vmatprep.mubr.f32.mxu0 0.0
      %975 = vmatmul.mubr.f32.gmra.mrb[0].mxu0 %v424
      %v976 = vpop.f32.mrb[0].mxu0
      %v977 = vadd.f32 0.0, %v976
      %v978 = vpop.f32.mrb[0].mxu0
      %979 = vmatprep.mubr.f32.mxu0 0.0
      %980 = vmatmul.mubr.f32.gmra.mrb[0].mxu0 %v425
      %v981 = vpop.f32.mrb[0].mxu0
      %v982 = vadd.f32 0.0, %v981
      %v983 = vpop.f32.mrb[0].mxu0
      %984 = vmatprep.mubr.f32.mxu0 0.0
      %985 = vmatmul.mubr.f32.gmra.mrb[0].mxu0 %v426
      %v986 = vpop.f32.mrb[0].mxu0
      %v987 = vadd.f32 0.0, %v986
      %v988 = vpop.f32.mrb[0].mxu0
      %989 = vmatprep.mubr.f32.mxu0 0.0
      %990 = vmatmul.mubr.f32.gmra.mrb[0].mxu0 %v427
      %v991 = vpop.f32.mrb[0].mxu0
      %v992 = vadd.f32 0.0, %v991
      %v993 = vpop.f32.mrb[0].mxu0
      %994 = vmatprep.mubr.f32.mxu0 0.0
      %995 = vmatmul.mubr.f32.gmra.mrb[0].mxu0 %v428
      %v996 = vpop.f32.mrb[0].mxu0
      %v997 = vadd.f32 0.0, %v996
      %v998 = vpop.f32.mrb[0].mxu0
      %999 = vmatprep.mubr.f32.mxu0 0.0
      %1000 = vmatmul.mubr.f32.gmra.mrb[0].mxu0 %v429
      %v1001 = vpop.f32.mrb[0].mxu0
      %v1002 = vadd.f32 0.0, %v1001
      %v1003 = vpop.f32.mrb[0].mxu0
      %1004 = vmatprep.mubr.f32.mxu0 0.0
      %1005 = vmatmul.mubr.f32.gmra.mrb[0].mxu0 %v430
      %v1006 = vpop.f32.mrb[0].mxu0
      %v1007 = vadd.f32 0.0, %v1006
      %v1008 = vpop.f32.mrb[0].mxu0
      %1009 = vmatprep.mubr.f32.mxu0 0.0
      %1010 = vmatmul.mubr.f32.gmra.mrb[0].mxu0 %v431
      %v1011 = vpop.f32.mrb[0].mxu0
      %v1012 = vadd.f32 0.0, %v1011
      %v1013 = vpop.f32.mrb[0].mxu0
      %1014 = vmatprep.mubr.f32.mxu0 0.0
      %1015 = vmatmul.mubr.f32.gmra.mrb[0].mxu0 %v432
      %v1016 = vpop.f32.mrb[0].mxu0
      %v1017 = vadd.f32 0.0, %v1016
      %v1018 = vpop.f32.mrb[0].mxu0
      %1019 = vmatprep.mubr.f32.mxu0 0.0
      %1020 = vmatmul.mubr.f32.gmra.mrb[0].mxu0 %v433
      %v1021 = vpop.f32.mrb[0].mxu0
      %v1022 = vadd.f32 0.0, %v1021
      %v1023 = vpop.f32.mrb[0].mxu0
      %1024 = vmatprep.mubr.f32.mxu0 0.0
      %1025 = vmatmul.mubr.f32.gmra.mrb[0].mxu0 %v434
      %v1026 = vpop.f32.mrb[0].mxu0
      %v1027 = vadd.f32 0.0, %v1026
      %v1028 = vpop.f32.mrb[0].mxu0
      %1029 = vmatprep.mubr.f32.mxu0 0.0
      %1030 = vmatmul.mubr.f32.gmra.mrb[0].mxu0 %v435
      %v1031 = vpop.f32.mrb[0].mxu0
      %v1032 = vadd.f32 0.0, %v1031
      %v1033 = vpop.f32.mrb[0].mxu0
      %1034 = vmatprep.mubr.f32.mxu0 0.0
      %1035 = vmatmul.mubr.f32.gmra.mrb[0].mxu0 %v436
      %v1036 = vpop.f32.mrb[0].mxu0
      %v1037 = vpop.f32.mrb[0].mxu0
      %1038 = vmatprep.mubr.f32.mxu0 0.0
      %1039 = vmatmul.mubr.f32.gmra.mrb[0].mxu0 %v437
      %v1040 = vpop.f32.mrb[0].mxu0
      %v1041 = vpop.f32.mrb[0].mxu0
      %1042 = vmatprep.mubr.f32.mxu0 0.0
      %1043 = vmatmul.mubr.f32.gmra.mrb[0].mxu0 %v438
      %v1044 = vpop.f32.mrb[0].mxu0
      %v1045 = vpop.f32.mrb[0].mxu0
      %1046 = vmatprep.mubr.f32.mxu0 0.0
      %1047 = vmatmul.mubr.f32.gmra.mrb[0].mxu0 %v439
      %v1048 = vpop.f32.mrb[0].mxu0
      %v1049 = vpop.f32.mrb[0].mxu0
      %1050 = vmatprep.mubr.f32.mxu0 0.0
      %1051 = vmatmul.mubr.f32.gmra.mrb[0].mxu0 %v440
      %v1052 = vpop.f32.mrb[0].mxu0
      %v1053 = vpop.f32.mrb[0].mxu0
      %1054 = vmatprep.mubr.f32.mxu0 0.0
      %1055 = vmatmul.mubr.f32.gmra.mrb[0].mxu0 %v441
      %v1056 = vpop.f32.mrb[0].mxu0
      %v1057 = vpop.f32.mrb[0].mxu0
      %1058 = vmatprep.mubr.f32.mxu0 0.0
      %1059 = vmatmul.mubr.f32.gmra.mrb[0].mxu0 %v442
      %v1060 = vpop.f32.mrb[0].mxu0
      %v1061 = vpop.f32.mrb[0].mxu0
      %1062 = vmatprep.mubr.f32.mxu0 0.0
      %1063 = vmatmul.mubr.f32.gmra.mrb[0].mxu0 %v443
      %v1064 = vpop.f32.mrb[0].mxu0
      %v1065 = vpop.f32.mrb[0].mxu0
      %1066 = vmatprep.mubr.f32.mxu0 0.0
      %1067 = vmatmul.mubr.f32.gmra.mrb[0].mxu0 %v444
      %v1068 = vpop.f32.mrb[0].mxu0
      %v1069 = vpop.f32.mrb[0].mxu0
      %1070 = vmatprep.mubr.f32.mxu0 0.0
      %1071 = vmatmul.mubr.f32.gmra.mrb[0].mxu0 %v445
      %v1072 = vpop.f32.mrb[0].mxu0
      %v1073 = vpop.f32.mrb[0].mxu0
      %1074 = vmatprep.mubr.f32.mxu0 0.0
      %1075 = vmatmul.mubr.f32.gmra.mrb[0].mxu0 %v446
      %v1076 = vpop.f32.mrb[0].mxu0
      %v1077 = vpop.f32.mrb[0].mxu0
      %1078 = vmatprep.mubr.f32.mxu0 0.0
      %1079 = vmatmul.mubr.f32.gmra.mrb[0].mxu0 %v447
      %v1080 = vpop.f32.mrb[0].mxu0
      %v1081 = vpop.f32.mrb[0].mxu0
      %1082 = vmatprep.mubr.f32.mxu0 0.0
      %1083 = vmatmul.mubr.f32.gmra.mrb[0].mxu0 %v448
      %v1084 = vpop.f32.mrb[0].mxu0
      %v1085 = vpop.f32.mrb[0].mxu0
      %1086 = vmatprep.mubr.f32.mxu0 0.0
      %1087 = vmatmul.mubr.f32.gmra.mrb[0].mxu0 %v449
      %v1088 = vpop.f32.mrb[0].mxu0
      %v1089 = vpop.f32.mrb[0].mxu0
      %1090 = vmatprep.mubr.f32.mxu0 0.0
      %1091 = vmatmul.mubr.f32.gmra.mrb[0].mxu0 %v450
      %v1092 = vpop.f32.mrb[0].mxu0
      %v1093 = vpop.f32.mrb[0].mxu0
      %1094 = vdwg.mxu0
      %1095 = vmatprep.subr.mxu0 0.0
      %1096 = vmatpush1.msra.mxu0 %v322
      %1097 = vmatprep.subr.mxu0 0.0
      %1098 = vmatpush1.msra.mxu0 %v323
      %1099 = vmatprep.subr.mxu0 0.0
      %1100 = vmatpush1.msra.mxu0 %v324
      %1101 = vmatprep.subr.mxu0 0.0
      %1102 = vmatpush1.msra.mxu0 %v325
      %1103 = vmatprep.subr.mxu0 0.0
      %1104 = vmatpush1.msra.mxu0 %v326
      %1105 = vmatprep.subr.mxu0 0.0
      %1106 = vmatpush1.msra.mxu0 %v327
      %1107 = vmatprep.subr.mxu0 0.0
      %1108 = vmatpush1.msra.mxu0 %v328
      %1109 = vmatprep.subr.mxu0 0.0
      %1110 = vmatpush1.msra.mxu0 %v329
      %1111 = vmatprep.subr.mxu0 0.0
      %1112 = vmatpush1.msra.mxu0 %v330
      %1113 = vmatprep.subr.mxu0 0.0
      %1114 = vmatpush1.msra.mxu0 %v331
      %1115 = vmatprep.subr.mxu0 0.0
      %1116 = vmatpush1.msra.mxu0 %v332
      %1117 = vmatprep.subr.mxu0 0.0
      %1118 = vmatpush1.msra.mxu0 %v333
      %1119 = vmatprep.subr.mxu0 0.0
      %1120 = vmatpush1.msra.mxu0 %v334
      %1121 = vmatprep.subr.mxu0 0.0
      %1122 = vmatpush1.msra.mxu0 %v335
      %1123 = vmatprep.subr.mxu0 0.0
      %1124 = vmatpush1.msra.mxu0 %v336
      %1125 = vmatprep.subr.mxu0 0.0
      %1126 = vmatpush1.msra.mxu0 %v337
      %1127 = vmatprep.subr.mxu0 0.0
      %1128 = vmatpush1.msra.mxu0 0.0
      %1129 = vmatprep.subr.mxu0 0.0
      %1130 = vmatpush1.msra.mxu0 0.0
      %1131 = vmatprep.subr.mxu0 0.0
      %1132 = vmatpush1.msra.mxu0 0.0
      %1133 = vmatprep.subr.mxu0 0.0
      %1134 = vmatpush1.msra.mxu0 0.0
      %1135 = vmatprep.subr.mxu0 0.0
      %1136 = vmatpush1.msra.mxu0 0.0
      %1137 = vmatprep.subr.mxu0 0.0
      %1138 = vmatpush1.msra.mxu0 0.0
      %1139 = vmatprep.subr.mxu0 0.0
      %1140 = vmatpush1.msra.mxu0 0.0
      %1141 = vmatprep.subr.mxu0 0.0
      %1142 = vmatpush1.msra.mxu0 0.0
      %1143 = vmatprep.subr.mxu0 0.0
      %1144 = vmatpush1.msra.mxu0 0.0
      %1145 = vmatprep.subr.mxu0 0.0
      %1146 = vmatpush1.msra.mxu0 0.0
      %1147 = vmatprep.subr.mxu0 0.0
      %1148 = vmatpush1.msra.mxu0 0.0
      %1149 = vmatprep.subr.mxu0 0.0
      %1150 = vmatpush1.msra.mxu0 0.0
      %1151 = vmatprep.subr.mxu0 0.0
      %1152 = vmatpush1.msra.mxu0 0.0
      %1153 = vmatprep.subr.mxu0 0.0
      %1154 = vmatpush1.msra.mxu0 0.0
      %1155 = vmatprep.subr.mxu0 0.0
      %1156 = vmatpush1.msra.mxu0 0.0
      %1157 = vmatprep.subr.mxu0 0.0
      %1158 = vmatpush1.msra.mxu0 0.0
      %1159 = vmatprep.mubr.f32.mxu0 0.0
      %1160 = vmatmul.mubr.f32.gmra.mrb[0].mxu0 %v226
      %v1161 = vpop.f32.mrb[0].mxu0
      %v1162 = vadd.f32 %v647, %v1161
      %v1163 = vpop.f32.mrb[0].mxu0
      %1164 = vmatprep.mubr.f32.mxu0 0.0
      %1165 = vmatmul.mubr.f32.gmra.mrb[0].mxu0 %v227
      %v1166 = vpop.f32.mrb[0].mxu0
      %v1167 = vadd.f32 %v652, %v1166
      %v1168 = vpop.f32.mrb[0].mxu0
      %1169 = vmatprep.mubr.f32.mxu0 0.0
      %1170 = vmatmul.mubr.f32.gmra.mrb[0].mxu0 %v228
      %v1171 = vpop.f32.mrb[0].mxu0
      %v1172 = vadd.f32 %v657, %v1171
      %v1173 = vpop.f32.mrb[0].mxu0
      %1174 = vmatprep.mubr.f32.mxu0 0.0
      %1175 = vmatmul.mubr.f32.gmra.mrb[0].mxu0 %v229
      %v1176 = vpop.f32.mrb[0].mxu0
      %v1177 = vadd.f32 %v662, %v1176
      %v1178 = vpop.f32.mrb[0].mxu0
      %1179 = vmatprep.mubr.f32.mxu0 0.0
      %1180 = vmatmul.mubr.f32.gmra.mrb[0].mxu0 %v230
      %v1181 = vpop.f32.mrb[0].mxu0
      %v1182 = vadd.f32 %v667, %v1181
      %v1183 = vpop.f32.mrb[0].mxu0
      %1184 = vmatprep.mubr.f32.mxu0 0.0
      %1185 = vmatmul.mubr.f32.gmra.mrb[0].mxu0 %v231
      %v1186 = vpop.f32.mrb[0].mxu0
      %v1187 = vadd.f32 %v672, %v1186
      %v1188 = vpop.f32.mrb[0].mxu0
      %1189 = vmatprep.mubr.f32.mxu0 0.0
      %1190 = vmatmul.mubr.f32.gmra.mrb[0].mxu0 %v232
      %v1191 = vpop.f32.mrb[0].mxu0
      %v1192 = vadd.f32 %v677, %v1191
      %v1193 = vpop.f32.mrb[0].mxu0
      %1194 = vmatprep.mubr.f32.mxu0 0.0
      %1195 = vmatmul.mubr.f32.gmra.mrb[0].mxu0 %v233
      %v1196 = vpop.f32.mrb[0].mxu0
      %v1197 = vadd.f32 %v682, %v1196
      %v1198 = vpop.f32.mrb[0].mxu0
      %1199 = vmatprep.mubr.f32.mxu0 0.0
      %1200 = vmatmul.mubr.f32.gmra.mrb[0].mxu0 %v234
      %v1201 = vpop.f32.mrb[0].mxu0
      %v1202 = vadd.f32 %v687, %v1201
      %v1203 = vpop.f32.mrb[0].mxu0
      %1204 = vmatprep.mubr.f32.mxu0 0.0
      %1205 = vmatmul.mubr.f32.gmra.mrb[0].mxu0 %v235
      %v1206 = vpop.f32.mrb[0].mxu0
      %v1207 = vadd.f32 %v692, %v1206
      %v1208 = vpop.f32.mrb[0].mxu0
      %1209 = vmatprep.mubr.f32.mxu0 0.0
      %1210 = vmatmul.mubr.f32.gmra.mrb[0].mxu0 %v236
      %v1211 = vpop.f32.mrb[0].mxu0
      %v1212 = vadd.f32 %v697, %v1211
      %v1213 = vpop.f32.mrb[0].mxu0
      %1214 = vmatprep.mubr.f32.mxu0 0.0
      %1215 = vmatmul.mubr.f32.gmra.mrb[0].mxu0 %v237
      %v1216 = vpop.f32.mrb[0].mxu0
      %v1217 = vadd.f32 %v702, %v1216
      %v1218 = vpop.f32.mrb[0].mxu0
      %1219 = vmatprep.mubr.f32.mxu0 0.0
      %1220 = vmatmul.mubr.f32.gmra.mrb[0].mxu0 %v238
      %v1221 = vpop.f32.mrb[0].mxu0
      %v1222 = vadd.f32 %v707, %v1221
      %v1223 = vpop.f32.mrb[0].mxu0
      %1224 = vmatprep.mubr.f32.mxu0 0.0
      %1225 = vmatmul.mubr.f32.gmra.mrb[0].mxu0 %v239
      %v1226 = vpop.f32.mrb[0].mxu0
      %v1227 = vadd.f32 %v712, %v1226
      %v1228 = vpop.f32.mrb[0].mxu0
      %1229 = vmatprep.mubr.f32.mxu0 0.0
      %1230 = vmatmul.mubr.f32.gmra.mrb[0].mxu0 %v240
      %v1231 = vpop.f32.mrb[0].mxu0
      %v1232 = vadd.f32 %v717, %v1231
      %v1233 = vpop.f32.mrb[0].mxu0
      %1234 = vmatprep.mubr.f32.mxu0 0.0
      %1235 = vmatmul.mubr.f32.gmra.mrb[0].mxu0 %v241
      %v1236 = vpop.f32.mrb[0].mxu0
      %v1237 = vadd.f32 %v722, %v1236
      %v1238 = vpop.f32.mrb[0].mxu0
      %1239 = vmatprep.mubr.f32.mxu0 0.0
      %1240 = vmatmul.mubr.f32.gmra.mrb[0].mxu0 %v242
      %v1241 = vpop.f32.mrb[0].mxu0
      %v1242 = vadd.f32 %v727, %v1241
      %v1243 = vpop.f32.mrb[0].mxu0
      %1244 = vmatprep.mubr.f32.mxu0 0.0
      %1245 = vmatmul.mubr.f32.gmra.mrb[0].mxu0 %v243
      %v1246 = vpop.f32.mrb[0].mxu0
      %v1247 = vadd.f32 %v732, %v1246
      %v1248 = vpop.f32.mrb[0].mxu0
      %1249 = vmatprep.mubr.f32.mxu0 0.0
      %1250 = vmatmul.mubr.f32.gmra.mrb[0].mxu0 %v244
      %v1251 = vpop.f32.mrb[0].mxu0
      %v1252 = vadd.f32 %v737, %v1251
      %v1253 = vpop.f32.mrb[0].mxu0
      %1254 = vmatprep.mubr.f32.mxu0 0.0
      %1255 = vmatmul.mubr.f32.gmra.mrb[0].mxu0 %v245
      %v1256 = vpop.f32.mrb[0].mxu0
      %v1257 = vadd.f32 %v742, %v1256
      %v1258 = vpop.f32.mrb[0].mxu0
      %1259 = vmatprep.mubr.f32.mxu0 0.0
      %1260 = vmatmul.mubr.f32.gmra.mrb[0].mxu0 %v246
      %v1261 = vpop.f32.mrb[0].mxu0
      %v1262 = vadd.f32 %v747, %v1261
      %v1263 = vpop.f32.mrb[0].mxu0
      %1264 = vmatprep.mubr.f32.mxu0 0.0
      %1265 = vmatmul.mubr.f32.gmra.mrb[0].mxu0 %v247
      %v1266 = vpop.f32.mrb[0].mxu0
      %v1267 = vadd.f32 %v752, %v1266
      %v1268 = vpop.f32.mrb[0].mxu0
      %1269 = vmatprep.mubr.f32.mxu0 0.0
      %1270 = vmatmul.mubr.f32.gmra.mrb[0].mxu0 %v248
      %v1271 = vpop.f32.mrb[0].mxu0
      %v1272 = vadd.f32 %v757, %v1271
      %v1273 = vpop.f32.mrb[0].mxu0
      %1274 = vmatprep.mubr.f32.mxu0 0.0
      %1275 = vmatmul.mubr.f32.gmra.mrb[0].mxu0 %v249
      %v1276 = vpop.f32.mrb[0].mxu0
      %v1277 = vadd.f32 %v762, %v1276
      %v1278 = vpop.f32.mrb[0].mxu0
      %1279 = vmatprep.mubr.f32.mxu0 0.0
      %1280 = vmatmul.mubr.f32.gmra.mrb[0].mxu0 %v250
      %v1281 = vpop.f32.mrb[0].mxu0
      %v1282 = vadd.f32 %v767, %v1281
      %v1283 = vpop.f32.mrb[0].mxu0
      %1284 = vmatprep.mubr.f32.mxu0 0.0
      %1285 = vmatmul.mubr.f32.gmra.mrb[0].mxu0 %v251
      %v1286 = vpop.f32.mrb[0].mxu0
      %v1287 = vadd.f32 %v772, %v1286
      %v1288 = vpop.f32.mrb[0].mxu0
      %1289 = vmatprep.mubr.f32.mxu0 0.0
      %1290 = vmatmul.mubr.f32.gmra.mrb[0].mxu0 %v252
      %v1291 = vpop.f32.mrb[0].mxu0
      %v1292 = vadd.f32 %v777, %v1291
      %v1293 = vpop.f32.mrb[0].mxu0
      %1294 = vmatprep.mubr.f32.mxu0 0.0
      %1295 = vmatmul.mubr.f32.gmra.mrb[0].mxu0 %v253
      %v1296 = vpop.f32.mrb[0].mxu0
      %v1297 = vadd.f32 %v782, %v1296
      %v1298 = vpop.f32.mrb[0].mxu0
      %1299 = vmatprep.mubr.f32.mxu0 0.0
      %1300 = vmatmul.mubr.f32.gmra.mrb[0].mxu0 %v254
      %v1301 = vpop.f32.mrb[0].mxu0
      %v1302 = vadd.f32 %v787, %v1301
      %v1303 = vpop.f32.mrb[0].mxu0
      %1304 = vmatprep.mubr.f32.mxu0 0.0
      %1305 = vmatmul.mubr.f32.gmra.mrb[0].mxu0 %v255
      %v1306 = vpop.f32.mrb[0].mxu0
      %v1307 = vadd.f32 %v792, %v1306
      %v1308 = vpop.f32.mrb[0].mxu0
      %1309 = vmatprep.mubr.f32.mxu0 0.0
      %1310 = vmatmul.mubr.f32.gmra.mrb[0].mxu0 %v256
      %v1311 = vpop.f32.mrb[0].mxu0
      %v1312 = vadd.f32 %v797, %v1311
      %v1313 = vpop.f32.mrb[0].mxu0
      %1314 = vmatprep.mubr.f32.mxu0 0.0
      %1315 = vmatmul.mubr.f32.gmra.mrb[0].mxu0 %v257
      %v1316 = vpop.f32.mrb[0].mxu0
      %v1317 = vadd.f32 %v802, %v1316
      %v1318 = vpop.f32.mrb[0].mxu0
      %1319 = vmatprep.mubr.f32.mxu0 0.0
      %1320 = vmatmul.mubr.f32.gmra.mrb[0].mxu0 %v258
      %v1321 = vpop.f32.mrb[0].mxu0
      %v1322 = vadd.f32 %v807, %v1321
      %v1323 = vpop.f32.mrb[0].mxu0
      %1324 = vmatprep.mubr.f32.mxu0 0.0
      %1325 = vmatmul.mubr.f32.gmra.mrb[0].mxu0 %v259
      %v1326 = vpop.f32.mrb[0].mxu0
      %v1327 = vpop.f32.mrb[0].mxu0
      %1328 = vmatprep.mubr.f32.mxu0 0.0
      %1329 = vmatmul.mubr.f32.gmra.mrb[0].mxu0 %v260
      %v1330 = vpop.f32.mrb[0].mxu0
      %v1331 = vpop.f32.mrb[0].mxu0
      %1332 = vmatprep.mubr.f32.mxu0 0.0
      %1333 = vmatmul.mubr.f32.gmra.mrb[0].mxu0 %v261
      %v1334 = vpop.f32.mrb[0].mxu0
      %v1335 = vpop.f32.mrb[0].mxu0
      %1336 = vmatprep.mubr.f32.mxu0 0.0
      %1337 = vmatmul.mubr.f32.gmra.mrb[0].mxu0 %v262
      %v1338 = vpop.f32.mrb[0].mxu0
      %v1339 = vpop.f32.mrb[0].mxu0
      %1340 = vmatprep.mubr.f32.mxu0 0.0
      %1341 = vmatmul.mubr.f32.gmra.mrb[0].mxu0 %v263
      %v1342 = vpop.f32.mrb[0].mxu0
      %v1343 = vpop.f32.mrb[0].mxu0
      %1344 = vmatprep.mubr.f32.mxu0 0.0
      %1345 = vmatmul.mubr.f32.gmra.mrb[0].mxu0 %v264
      %v1346 = vpop.f32.mrb[0].mxu0
      %v1347 = vpop.f32.mrb[0].mxu0
      %1348 = vmatprep.mubr.f32.mxu0 0.0
      %1349 = vmatmul.mubr.f32.gmra.mrb[0].mxu0 %v265
      %v1350 = vpop.f32.mrb[0].mxu0
      %v1351 = vpop.f32.mrb[0].mxu0
      %1352 = vmatprep.mubr.f32.mxu0 0.0
      %1353 = vmatmul.mubr.f32.gmra.mrb[0].mxu0 %v266
      %v1354 = vpop.f32.mrb[0].mxu0
      %v1355 = vpop.f32.mrb[0].mxu0
      %1356 = vmatprep.mubr.f32.mxu0 0.0
      %1357 = vmatmul.mubr.f32.gmra.mrb[0].mxu0 %v267
      %v1358 = vpop.f32.mrb[0].mxu0
      %v1359 = vpop.f32.mrb[0].mxu0
      %1360 = vmatprep.mubr.f32.mxu0 0.0
      %1361 = vmatmul.mubr.f32.gmra.mrb[0].mxu0 %v268
      %v1362 = vpop.f32.mrb[0].mxu0
      %v1363 = vpop.f32.mrb[0].mxu0
      %1364 = vmatprep.mubr.f32.mxu0 0.0
      %1365 = vmatmul.mubr.f32.gmra.mrb[0].mxu0 %v269
      %v1366 = vpop.f32.mrb[0].mxu0
      %v1367 = vpop.f32.mrb[0].mxu0
      %1368 = vmatprep.mubr.f32.mxu0 0.0
      %1369 = vmatmul.mubr.f32.gmra.mrb[0].mxu0 %v270
      %v1370 = vpop.f32.mrb[0].mxu0
      %v1371 = vpop.f32.mrb[0].mxu0
      %1372 = vmatprep.mubr.f32.mxu0 0.0
      %1373 = vmatmul.mubr.f32.gmra.mrb[0].mxu0 %v271
      %v1374 = vpop.f32.mrb[0].mxu0
      %v1375 = vpop.f32.mrb[0].mxu0
      %1376 = vmatprep.mubr.f32.mxu0 0.0
      %1377 = vmatmul.mubr.f32.gmra.mrb[0].mxu0 %v272
      %v1378 = vpop.f32.mrb[0].mxu0
      %v1379 = vpop.f32.mrb[0].mxu0
      %1380 = vmatprep.mubr.f32.mxu0 0.0
      %1381 = vmatmul.mubr.f32.gmra.mrb[0].mxu0 %v273
      %v1382 = vpop.f32.mrb[0].mxu0
      %v1383 = vpop.f32.mrb[0].mxu0
      %1384 = vmatprep.mubr.f32.mxu0 0.0
      %1385 = vmatmul.mubr.f32.gmra.mrb[0].mxu0 %v274
      %v1386 = vpop.f32.mrb[0].mxu0
      %v1387 = vadd.f32 %v872, %v1386
      %v1388 = vpop.f32.mrb[0].mxu0
      %1389 = vmatprep.mubr.f32.mxu0 0.0
      %1390 = vmatmul.mubr.f32.gmra.mrb[0].mxu0 %v275
      %v1391 = vpop.f32.mrb[0].mxu0
      %v1392 = vadd.f32 %v877, %v1391
      %v1393 = vpop.f32.mrb[0].mxu0
      %1394 = vmatprep.mubr.f32.mxu0 0.0
      %1395 = vmatmul.mubr.f32.gmra.mrb[0].mxu0 %v276
      %v1396 = vpop.f32.mrb[0].mxu0
      %v1397 = vadd.f32 %v882, %v1396
      %v1398 = vpop.f32.mrb[0].mxu0
      %1399 = vmatprep.mubr.f32.mxu0 0.0
      %1400 = vmatmul.mubr.f32.gmra.mrb[0].mxu0 %v277
      %v1401 = vpop.f32.mrb[0].mxu0
      %v1402 = vadd.f32 %v887, %v1401
      %v1403 = vpop.f32.mrb[0].mxu0
      %1404 = vmatprep.mubr.f32.mxu0 0.0
      %1405 = vmatmul.mubr.f32.gmra.mrb[0].mxu0 %v278
      %v1406 = vpop.f32.mrb[0].mxu0
      %v1407 = vadd.f32 %v892, %v1406
      %v1408 = vpop.f32.mrb[0].mxu0
      %1409 = vmatprep.mubr.f32.mxu0 0.0
      %1410 = vmatmul.mubr.f32.gmra.mrb[0].mxu0 %v279
      %v1411 = vpop.f32.mrb[0].mxu0
      %v1412 = vadd.f32 %v897, %v1411
      %v1413 = vpop.f32.mrb[0].mxu0
      %1414 = vmatprep.mubr.f32.mxu0 0.0
      %1415 = vmatmul.mubr.f32.gmra.mrb[0].mxu0 %v280
      %v1416 = vpop.f32.mrb[0].mxu0
      %v1417 = vadd.f32 %v902, %v1416
      %v1418 = vpop.f32.mrb[0].mxu0
      %1419 = vmatprep.mubr.f32.mxu0 0.0
      %1420 = vmatmul.mubr.f32.gmra.mrb[0].mxu0 %v281
      %v1421 = vpop.f32.mrb[0].mxu0
      %v1422 = vadd.f32 %v907, %v1421
      %v1423 = vpop.f32.mrb[0].mxu0
      %1424 = vmatprep.mubr.f32.mxu0 0.0
      %1425 = vmatmul.mubr.f32.gmra.mrb[0].mxu0 %v282
      %v1426 = vpop.f32.mrb[0].mxu0
      %v1427 = vadd.f32 %v912, %v1426
      %v1428 = vpop.f32.mrb[0].mxu0
      %1429 = vmatprep.mubr.f32.mxu0 0.0
      %1430 = vmatmul.mubr.f32.gmra.mrb[0].mxu0 %v283
      %v1431 = vpop.f32.mrb[0].mxu0
      %v1432 = vadd.f32 %v917, %v1431
      %v1433 = vpop.f32.mrb[0].mxu0
      %1434 = vmatprep.mubr.f32.mxu0 0.0
      %1435 = vmatmul.mubr.f32.gmra.mrb[0].mxu0 %v284
      %v1436 = vpop.f32.mrb[0].mxu0
      %v1437 = vadd.f32 %v922, %v1436
      %v1438 = vpop.f32.mrb[0].mxu0
      %1439 = vmatprep.mubr.f32.mxu0 0.0
      %1440 = vmatmul.mubr.f32.gmra.mrb[0].mxu0 %v285
      %v1441 = vpop.f32.mrb[0].mxu0
      %v1442 = vadd.f32 %v927, %v1441
      %v1443 = vpop.f32.mrb[0].mxu0
      %1444 = vmatprep.mubr.f32.mxu0 0.0
      %1445 = vmatmul.mubr.f32.gmra.mrb[0].mxu0 %v286
      %v1446 = vpop.f32.mrb[0].mxu0
      %v1447 = vadd.f32 %v932, %v1446
      %v1448 = vpop.f32.mrb[0].mxu0
      %1449 = vmatprep.mubr.f32.mxu0 0.0
      %1450 = vmatmul.mubr.f32.gmra.mrb[0].mxu0 %v287
      %v1451 = vpop.f32.mrb[0].mxu0
      %v1452 = vadd.f32 %v937, %v1451
      %v1453 = vpop.f32.mrb[0].mxu0
      %1454 = vmatprep.mubr.f32.mxu0 0.0
      %1455 = vmatmul.mubr.f32.gmra.mrb[0].mxu0 %v288
      %v1456 = vpop.f32.mrb[0].mxu0
      %v1457 = vadd.f32 %v942, %v1456
      %v1458 = vpop.f32.mrb[0].mxu0
      %1459 = vmatprep.mubr.f32.mxu0 0.0
      %1460 = vmatmul.mubr.f32.gmra.mrb[0].mxu0 %v289
      %v1461 = vpop.f32.mrb[0].mxu0
      %v1462 = vadd.f32 %v947, %v1461
      %v1463 = vpop.f32.mrb[0].mxu0
      %1464 = vmatprep.mubr.f32.mxu0 0.0
      %1465 = vmatmul.mubr.f32.gmra.mrb[0].mxu0 %v290
      %v1466 = vpop.f32.mrb[0].mxu0
      %v1467 = vadd.f32 %v952, %v1466
      %v1468 = vpop.f32.mrb[0].mxu0
      %1469 = vmatprep.mubr.f32.mxu0 0.0
      %1470 = vmatmul.mubr.f32.gmra.mrb[0].mxu0 %v291
      %v1471 = vpop.f32.mrb[0].mxu0
      %v1472 = vadd.f32 %v957, %v1471
      %v1473 = vpop.f32.mrb[0].mxu0
      %1474 = vmatprep.mubr.f32.mxu0 0.0
      %1475 = vmatmul.mubr.f32.gmra.mrb[0].mxu0 %v292
      %v1476 = vpop.f32.mrb[0].mxu0
      %v1477 = vadd.f32 %v962, %v1476
      %v1478 = vpop.f32.mrb[0].mxu0
      %1479 = vmatprep.mubr.f32.mxu0 0.0
      %1480 = vmatmul.mubr.f32.gmra.mrb[0].mxu0 %v293
      %v1481 = vpop.f32.mrb[0].mxu0
      %v1482 = vadd.f32 %v967, %v1481
      %v1483 = vpop.f32.mrb[0].mxu0
      %1484 = vmatprep.mubr.f32.mxu0 0.0
      %1485 = vmatmul.mubr.f32.gmra.mrb[0].mxu0 %v294
      %v1486 = vpop.f32.mrb[0].mxu0
      %v1487 = vadd.f32 %v972, %v1486
      %v1488 = vpop.f32.mrb[0].mxu0
      %1489 = vmatprep.mubr.f32.mxu0 0.0
      %1490 = vmatmul.mubr.f32.gmra.mrb[0].mxu0 %v295
      %v1491 = vpop.f32.mrb[0].mxu0
      %v1492 = vadd.f32 %v977, %v1491
      %v1493 = vpop.f32.mrb[0].mxu0
      %1494 = vmatprep.mubr.f32.mxu0 0.0
      %1495 = vmatmul.mubr.f32.gmra.mrb[0].mxu0 %v296
      %v1496 = vpop.f32.mrb[0].mxu0
      %v1497 = vadd.f32 %v982, %v1496
      %v1498 = vpop.f32.mrb[0].mxu0
      %1499 = vmatprep.mubr.f32.mxu0 0.0
      %1500 = vmatmul.mubr.f32.gmra.mrb[0].mxu0 %v297
      %v1501 = vpop.f32.mrb[0].mxu0
      %v1502 = vadd.f32 %v987, %v1501
      %v1503 = vpop.f32.mrb[0].mxu0
      %1504 = vmatprep.mubr.f32.mxu0 0.0
      %1505 = vmatmul.mubr.f32.gmra.mrb[0].mxu0 %v298
      %v1506 = vpop.f32.mrb[0].mxu0
      %v1507 = vadd.f32 %v992, %v1506
      %v1508 = vpop.f32.mrb[0].mxu0
      %1509 = vmatprep.mubr.f32.mxu0 0.0
      %1510 = vmatmul.mubr.f32.gmra.mrb[0].mxu0 %v299
      %v1511 = vpop.f32.mrb[0].mxu0
      %v1512 = vadd.f32 %v997, %v1511
      %v1513 = vpop.f32.mrb[0].mxu0
      %1514 = vmatprep.mubr.f32.mxu0 0.0
      %1515 = vmatmul.mubr.f32.gmra.mrb[0].mxu0 %v300
      %v1516 = vpop.f32.mrb[0].mxu0
      %v1517 = vadd.f32 %v1002, %v1516
      %v1518 = vpop.f32.mrb[0].mxu0
      %1519 = vmatprep.mubr.f32.mxu0 0.0
      %1520 = vmatmul.mubr.f32.gmra.mrb[0].mxu0 %v301
      %v1521 = vpop.f32.mrb[0].mxu0
      %v1522 = vadd.f32 %v1007, %v1521
      %v1523 = vpop.f32.mrb[0].mxu0
      %1524 = vmatprep.mubr.f32.mxu0 0.0
      %1525 = vmatmul.mubr.f32.gmra.mrb[0].mxu0 %v302
      %v1526 = vpop.f32.mrb[0].mxu0
      %v1527 = vadd.f32 %v1012, %v1526
      %v1528 = vpop.f32.mrb[0].mxu0
      %1529 = vmatprep.mubr.f32.mxu0 0.0
      %1530 = vmatmul.mubr.f32.gmra.mrb[0].mxu0 %v303
      %v1531 = vpop.f32.mrb[0].mxu0
      %v1532 = vadd.f32 %v1017, %v1531
      %v1533 = vpop.f32.mrb[0].mxu0
      %1534 = vmatprep.mubr.f32.mxu0 0.0
      %1535 = vmatmul.mubr.f32.gmra.mrb[0].mxu0 %v304
      %v1536 = vpop.f32.mrb[0].mxu0
      %v1537 = vadd.f32 %v1022, %v1536
      %v1538 = vpop.f32.mrb[0].mxu0
      %1539 = vmatprep.mubr.f32.mxu0 0.0
      %1540 = vmatmul.mubr.f32.gmra.mrb[0].mxu0 %v305
      %v1541 = vpop.f32.mrb[0].mxu0
      %v1542 = vadd.f32 %v1027, %v1541
      %v1543 = vpop.f32.mrb[0].mxu0
      %1544 = vmatprep.mubr.f32.mxu0 0.0
      %1545 = vmatmul.mubr.f32.gmra.mrb[0].mxu0 %v306
      %v1546 = vpop.f32.mrb[0].mxu0
      %v1547 = vadd.f32 %v1032, %v1546
      %v1548 = vpop.f32.mrb[0].mxu0
      %1549 = vmatprep.mubr.f32.mxu0 0.0
      %1550 = vmatmul.mubr.f32.gmra.mrb[0].mxu0 %v307
      %v1551 = vpop.f32.mrb[0].mxu0
      %v1552 = vpop.f32.mrb[0].mxu0
      %1553 = vmatprep.mubr.f32.mxu0 0.0
      %1554 = vmatmul.mubr.f32.gmra.mrb[0].mxu0 %v308
      %v1555 = vpop.f32.mrb[0].mxu0
      %v1556 = vpop.f32.mrb[0].mxu0
      %1557 = vmatprep.mubr.f32.mxu0 0.0
      %1558 = vmatmul.mubr.f32.gmra.mrb[0].mxu0 %v309
      %v1559 = vpop.f32.mrb[0].mxu0
      %v1560 = vpop.f32.mrb[0].mxu0
      %1561 = vmatprep.mubr.f32.mxu0 0.0
      %1562 = vmatmul.mubr.f32.gmra.mrb[0].mxu0 %v310
      %v1563 = vpop.f32.mrb[0].mxu0
      %v1564 = vpop.f32.mrb[0].mxu0
      %1565 = vmatprep.mubr.f32.mxu0 0.0
      %1566 = vmatmul.mubr.f32.gmra.mrb[0].mxu0 %v311
      %v1567 = vpop.f32.mrb[0].mxu0
      %v1568 = vpop.f32.mrb[0].mxu0
      %1569 = vmatprep.mubr.f32.mxu0 0.0
      %1570 = vmatmul.mubr.f32.gmra.mrb[0].mxu0 %v312
      %v1571 = vpop.f32.mrb[0].mxu0
      %v1572 = vpop.f32.mrb[0].mxu0
      %1573 = vmatprep.mubr.f32.mxu0 0.0
      %1574 = vmatmul.mubr.f32.gmra.mrb[0].mxu0 %v313
      %v1575 = vpop.f32.mrb[0].mxu0
      %v1576 = vpop.f32.mrb[0].mxu0
      %1577 = vmatprep.mubr.f32.mxu0 0.0
      %1578 = vmatmul.mubr.f32.gmra.mrb[0].mxu0 %v314
      %v1579 = vpop.f32.mrb[0].mxu0
      %v1580 = vpop.f32.mrb[0].mxu0
      %1581 = vmatprep.mubr.f32.mxu0 0.0
      %1582 = vmatmul.mubr.f32.gmra.mrb[0].mxu0 %v315
      %v1583 = vpop.f32.mrb[0].mxu0
      %v1584 = vpop.f32.mrb[0].mxu0
      %1585 = vmatprep.mubr.f32.mxu0 0.0
      %1586 = vmatmul.mubr.f32.gmra.mrb[0].mxu0 %v316
      %v1587 = vpop.f32.mrb[0].mxu0
      %v1588 = vpop.f32.mrb[0].mxu0
      %1589 = vmatprep.mubr.f32.mxu0 0.0
      %1590 = vmatmul.mubr.f32.gmra.mrb[0].mxu0 %v317
      %v1591 = vpop.f32.mrb[0].mxu0
      %v1592 = vpop.f32.mrb[0].mxu0
      %1593 = vmatprep.mubr.f32.mxu0 0.0
      %1594 = vmatmul.mubr.f32.gmra.mrb[0].mxu0 %v318
      %v1595 = vpop.f32.mrb[0].mxu0
      %v1596 = vpop.f32.mrb[0].mxu0
      %1597 = vmatprep.mubr.f32.mxu0 0.0
      %1598 = vmatmul.mubr.f32.gmra.mrb[0].mxu0 %v319
      %v1599 = vpop.f32.mrb[0].mxu0
      %v1600 = vpop.f32.mrb[0].mxu0
      %1601 = vmatprep.mubr.f32.mxu0 0.0
      %1602 = vmatmul.mubr.f32.gmra.mrb[0].mxu0 %v320
      %v1603 = vpop.f32.mrb[0].mxu0
      %v1604 = vpop.f32.mrb[0].mxu0
      %1605 = vmatprep.mubr.f32.mxu0 0.0
      %1606 = vmatmul.mubr.f32.gmra.mrb[0].mxu0 %v321
      %v1607 = vpop.f32.mrb[0].mxu0
      %v1608 = vpop.f32.mrb[0].mxu0
      %1609 = vdwg.mxu0
      %s1610 = scalar_lea.vmem %s1, 1536
      %v1611 = vld [vmem:[%s1610] sm:$0xff]
      %v1612 = vld [vmem:[%s1610 + $0x8] sm:$0xff]
      %v1613 = vld [vmem:[%s1610 + $0x10] sm:$0xff]
      %v1614 = vld [vmem:[%s1610 + $0x18] sm:$0xff]
      %v1615 = vld [vmem:[%s1610 + $0x20] sm:$0xff]
      %v1616 = vld [vmem:[%s1610 + $0x28] sm:$0xff]
      %v1617 = vld [vmem:[%s1610 + $0x30] sm:$0xff]
      %v1618 = vld [vmem:[%s1610 + $0x38] sm:$0xff]
      %v1619 = vld [vmem:[%s1610 + $0x40] sm:$0xff]
      %v1620 = vld [vmem:[%s1610 + $0x48] sm:$0xff]
      %v1621 = vld [vmem:[%s1610 + $0x50] sm:$0xff]
      %v1622 = vld [vmem:[%s1610 + $0x58] sm:$0xff]
      %v1623 = vld [vmem:[%s1610 + $0x60] sm:$0xff]
      %v1624 = vld [vmem:[%s1610 + $0x68] sm:$0xff]
      %v1625 = vld [vmem:[%s1610 + $0x70] sm:$0xff]
      %v1626 = vld [vmem:[%s1610 + $0x78] sm:$0xff]
      %v1627 = vld [vmem:[%s1610 + $0x80] sm:$0xff]
      %v1628 = vld [vmem:[%s1610 + $0x88] sm:$0xff]
      %v1629 = vld [vmem:[%s1610 + $0x90] sm:$0xff]
      %v1630 = vld [vmem:[%s1610 + $0x98] sm:$0xff]
      %v1631 = vld [vmem:[%s1610 + $0xa0] sm:$0xff]
      %v1632 = vld [vmem:[%s1610 + $0xa8] sm:$0xff]
      %v1633 = vld [vmem:[%s1610 + $0xb0] sm:$0xff]
      %v1634 = vld [vmem:[%s1610 + $0xb8] sm:$0xff]
      %v1635 = vld [vmem:[%s1610 + $0xc0] sm:$0xff]
      %v1636 = vld [vmem:[%s1610 + $0xc8] sm:$0xff]
      %v1637 = vld [vmem:[%s1610 + $0xd0] sm:$0xff]
      %v1638 = vld [vmem:[%s1610 + $0xd8] sm:$0xff]
      %v1639 = vld [vmem:[%s1610 + $0xe0] sm:$0xff]
      %v1640 = vld [vmem:[%s1610 + $0xe8] sm:$0xff]
      %v1641 = vld [vmem:[%s1610 + $0xf0] sm:$0xff]
      %v1642 = vld [vmem:[%s1610 + $0xf8] sm:$0xff]
      %v1643 = vld [vmem:[%s1610 + $0x100] sm:$0xff]
      %v1644 = vld [vmem:[%s1610 + $0x108] sm:$0xff]
      %v1645 = vld [vmem:[%s1610 + $0x110] sm:$0xff]
      %v1646 = vld [vmem:[%s1610 + $0x118] sm:$0xff]
      %v1647 = vld [vmem:[%s1610 + $0x120] sm:$0xff]
      %v1648 = vld [vmem:[%s1610 + $0x128] sm:$0xff]
      %v1649 = vld [vmem:[%s1610 + $0x130] sm:$0xff]
      %v1650 = vld [vmem:[%s1610 + $0x138] sm:$0xff]
      %v1651 = vld [vmem:[%s1610 + $0x140] sm:$0xff]
      %v1652 = vld [vmem:[%s1610 + $0x148] sm:$0xff]
      %v1653 = vld [vmem:[%s1610 + $0x150] sm:$0xff]
      %v1654 = vld [vmem:[%s1610 + $0x158] sm:$0xff]
      %v1655 = vld [vmem:[%s1610 + $0x160] sm:$0xff]
      %v1656 = vld [vmem:[%s1610 + $0x168] sm:$0xff]
      %v1657 = vld [vmem:[%s1610 + $0x170] sm:$0xff]
      %v1658 = vld [vmem:[%s1610 + $0x178] sm:$0xff]
      %v1659 = vld [vmem:[%s1610 + $0x180] sm:$0xff]
      %v1660 = vld [vmem:[%s1610 + $0x188] sm:$0xff]
      %v1661 = vld [vmem:[%s1610 + $0x190] sm:$0xff]
      %v1662 = vld [vmem:[%s1610 + $0x198] sm:$0xff]
      %v1663 = vld [vmem:[%s1610 + $0x1a0] sm:$0xff]
      %v1664 = vld [vmem:[%s1610 + $0x1a8] sm:$0xff]
      %v1665 = vld [vmem:[%s1610 + $0x1b0] sm:$0xff]
      %v1666 = vld [vmem:[%s1610 + $0x1b8] sm:$0xff]
      %v1667 = vld [vmem:[%s1610 + $0x1c0] sm:$0xff]
      %v1668 = vld [vmem:[%s1610 + $0x1c8] sm:$0xff]
      %v1669 = vld [vmem:[%s1610 + $0x1d0] sm:$0xff]
      %v1670 = vld [vmem:[%s1610 + $0x1d8] sm:$0xff]
      %v1671 = vld [vmem:[%s1610 + $0x1e0] sm:$0xff]
      %v1672 = vld [vmem:[%s1610 + $0x1e8] sm:$0xff]
      %v1673 = vld [vmem:[%s1610 + $0x1f0] sm:$0xff]
      %v1674 = vld [vmem:[%s1610 + $0x1f8] sm:$0xff]
      %v1675 = vld [vmem:[%s1610 + $0x200] sm:$0xff]
      %v1676 = vld [vmem:[%s1610 + $0x208] sm:$0xff]
      %v1677 = vld [vmem:[%s1610 + $0x210] sm:$0xff]
      %v1678 = vld [vmem:[%s1610 + $0x218] sm:$0xff]
      %v1679 = vld [vmem:[%s1610 + $0x220] sm:$0xff]
      %v1680 = vld [vmem:[%s1610 + $0x228] sm:$0xff]
      %v1681 = vld [vmem:[%s1610 + $0x230] sm:$0xff]
      %v1682 = vld [vmem:[%s1610 + $0x238] sm:$0xff]
      %v1683 = vld [vmem:[%s1610 + $0x240] sm:$0xff]
      %v1684 = vld [vmem:[%s1610 + $0x248] sm:$0xff]
      %v1685 = vld [vmem:[%s1610 + $0x250] sm:$0xff]
      %v1686 = vld [vmem:[%s1610 + $0x258] sm:$0xff]
      %v1687 = vld [vmem:[%s1610 + $0x260] sm:$0xff]
      %v1688 = vld [vmem:[%s1610 + $0x268] sm:$0xff]
      %v1689 = vld [vmem:[%s1610 + $0x270] sm:$0xff]
      %v1690 = vld [vmem:[%s1610 + $0x278] sm:$0xff]
      %v1691 = vld [vmem:[%s1610 + $0x280] sm:$0xff]
      %v1692 = vld [vmem:[%s1610 + $0x288] sm:$0xff]
      %v1693 = vld [vmem:[%s1610 + $0x290] sm:$0xff]
      %v1694 = vld [vmem:[%s1610 + $0x298] sm:$0xff]
      %v1695 = vld [vmem:[%s1610 + $0x2a0] sm:$0xff]
      %v1696 = vld [vmem:[%s1610 + $0x2a8] sm:$0xff]
      %v1697 = vld [vmem:[%s1610 + $0x2b0] sm:$0xff]
      %v1698 = vld [vmem:[%s1610 + $0x2b8] sm:$0xff]
      %v1699 = vld [vmem:[%s1610 + $0x2c0] sm:$0xff]
      %v1700 = vld [vmem:[%s1610 + $0x2c8] sm:$0xff]
      %v1701 = vld [vmem:[%s1610 + $0x2d0] sm:$0xff]
      %v1702 = vld [vmem:[%s1610 + $0x2d8] sm:$0xff]
      %v1703 = vld [vmem:[%s1610 + $0x2e0] sm:$0xff]
      %v1704 = vld [vmem:[%s1610 + $0x2e8] sm:$0xff]
      %v1705 = vld [vmem:[%s1610 + $0x2f0] sm:$0xff]
      %v1706 = vld [vmem:[%s1610 + $0x2f8] sm:$0xff]
      %1707 = vrot.lane.b32.xlu0 %v322, 126
      %v1708 = vpop.permute.xlu0 %1707
      %1709 = vrot.lane.b32.xlu0 %v338, 126
      %v1710 = vpop.permute.xlu0 %1709
      %1711 = vrot.lane.b32.xlu0 %v323, 126
      %v1712 = vpop.permute.xlu0 %1711
      %1713 = vrot.lane.b32.xlu0 %v339, 126
      %v1714 = vpop.permute.xlu0 %1713
      %1715 = vrot.lane.b32.xlu0 %v324, 126
      %v1716 = vpop.permute.xlu0 %1715
      %1717 = vrot.lane.b32.xlu0 %v340, 126
      %v1718 = vpop.permute.xlu0 %1717
      %1719 = vrot.lane.b32.xlu0 %v325, 126
      %v1720 = vpop.permute.xlu0 %1719
      %1721 = vrot.lane.b32.xlu0 %v341, 126
      %v1722 = vpop.permute.xlu0 %1721
      %1723 = vrot.lane.b32.xlu0 %v326, 126
      %v1724 = vpop.permute.xlu0 %1723
      %1725 = vrot.lane.b32.xlu0 %v342, 126
      %v1726 = vpop.permute.xlu0 %1725
      %1727 = vrot.lane.b32.xlu0 %v327, 126
      %v1728 = vpop.permute.xlu0 %1727
      %1729 = vrot.lane.b32.xlu0 %v343, 126
      %v1730 = vpop.permute.xlu0 %1729
      %1731 = vrot.lane.b32.xlu0 %v328, 126
      %v1732 = vpop.permute.xlu0 %1731
      %1733 = vrot.lane.b32.xlu0 %v344, 126
      %v1734 = vpop.permute.xlu0 %1733
      %1735 = vrot.lane.b32.xlu0 %v329, 126
      %v1736 = vpop.permute.xlu0 %1735
      %1737 = vrot.lane.b32.xlu0 %v345, 126
      %v1738 = vpop.permute.xlu0 %1737
      %1739 = vrot.lane.b32.xlu0 %v330, 126
      %v1740 = vpop.permute.xlu0 %1739
      %1741 = vrot.lane.b32.xlu0 %v346, 126
      %v1742 = vpop.permute.xlu0 %1741
      %1743 = vrot.lane.b32.xlu0 %v331, 126
      %v1744 = vpop.permute.xlu0 %1743
      %1745 = vrot.lane.b32.xlu0 %v347, 126
      %v1746 = vpop.permute.xlu0 %1745
      %1747 = vrot.lane.b32.xlu0 %v332, 126
      %v1748 = vpop.permute.xlu0 %1747
      %1749 = vrot.lane.b32.xlu0 %v348, 126
      %v1750 = vpop.permute.xlu0 %1749
      %1751 = vrot.lane.b32.xlu0 %v333, 126
      %v1752 = vpop.permute.xlu0 %1751
      %1753 = vrot.lane.b32.xlu0 %v349, 126
      %v1754 = vpop.permute.xlu0 %1753
      %1755 = vrot.lane.b32.xlu0 %v334, 126
      %v1756 = vpop.permute.xlu0 %1755
      %1757 = vrot.lane.b32.xlu0 %v350, 126
      %v1758 = vpop.permute.xlu0 %1757
      %1759 = vrot.lane.b32.xlu0 %v335, 126
      %v1760 = vpop.permute.xlu0 %1759
      %1761 = vrot.lane.b32.xlu0 %v351, 126
      %v1762 = vpop.permute.xlu0 %1761
      %1763 = vrot.lane.b32.xlu0 %v336, 126
      %v1764 = vpop.permute.xlu0 %1763
      %1765 = vrot.lane.b32.xlu0 %v352, 126
      %v1766 = vpop.permute.xlu0 %1765
      %1767 = vrot.lane.b32.xlu0 %v337, 126
      %v1768 = vpop.permute.xlu0 %1767
      %1769 = vrot.lane.b32.xlu0 %v353, 126
      %v1770 = vpop.permute.xlu0 %1769
      %vm1771 = vcmask 1031168
      %v1772 = vsel %vm1771, %v1708, %v1710
      %v1773 = vsel %vm1771, %v1712, %v1714
      %v1774 = vsel %vm1771, %v1716, %v1718
      %v1775 = vsel %vm1771, %v1720, %v1722
      %v1776 = vsel %vm1771, %v1724, %v1726
      %v1777 = vsel %vm1771, %v1728, %v1730
      %v1778 = vsel %vm1771, %v1732, %v1734
      %v1779 = vsel %vm1771, %v1736, %v1738
      %v1780 = vsel %vm1771, %v1740, %v1742
      %v1781 = vsel %vm1771, %v1744, %v1746
      %v1782 = vsel %vm1771, %v1748, %v1750
      %v1783 = vsel %vm1771, %v1752, %v1754
      %v1784 = vsel %vm1771, %v1756, %v1758
      %v1785 = vsel %vm1771, %v1760, %v1762
      %v1786 = vsel %vm1771, %v1764, %v1766
      %v1787 = vsel %vm1771, %v1768, %v1770
      %1804 = vmatprep.subr.mxu0 0.0
      %1805 = vmatpush1.msra.mxu0 %v1772
      %1806 = vmatprep.subr.mxu0 0.0
      %1807 = vmatpush1.msra.mxu0 %v1773
      %1808 = vmatprep.subr.mxu0 0.0
      %1809 = vmatpush1.msra.mxu0 %v1774
      %1810 = vmatprep.subr.mxu0 0.0
      %1811 = vmatpush1.msra.mxu0 %v1775
      %1812 = vmatprep.subr.mxu0 0.0
      %1813 = vmatpush1.msra.mxu0 %v1776
      %1814 = vmatprep.subr.mxu0 0.0
      %1815 = vmatpush1.msra.mxu0 %v1777
      %1816 = vmatprep.subr.mxu0 0.0
      %1817 = vmatpush1.msra.mxu0 %v1778
      %1818 = vmatprep.subr.mxu0 0.0
      %1819 = vmatpush1.msra.mxu0 %v1779
      %1820 = vmatprep.subr.mxu0 0.0
      %1821 = vmatpush1.msra.mxu0 %v1780
      %1822 = vmatprep.subr.mxu0 0.0
      %1823 = vmatpush1.msra.mxu0 %v1781
      %1824 = vmatprep.subr.mxu0 0.0
      %1825 = vmatpush1.msra.mxu0 %v1782
      %1826 = vmatprep.subr.mxu0 0.0
      %1827 = vmatpush1.msra.mxu0 %v1783
      %1828 = vmatprep.subr.mxu0 0.0
      %1829 = vmatpush1.msra.mxu0 %v1784
      %1830 = vmatprep.subr.mxu0 0.0
      %1831 = vmatpush1.msra.mxu0 %v1785
      %1832 = vmatprep.subr.mxu0 0.0
      %1833 = vmatpush1.msra.mxu0 %v1786
      %1834 = vmatprep.subr.mxu0 0.0
      %1835 = vmatpush1.msra.mxu0 %v1787
      %1836 = vmatprep.subr.mxu0 0.0
      %1837 = vmatpush1.msra.mxu0 0.0
      %1838 = vmatprep.subr.mxu0 0.0
      %1839 = vmatpush1.msra.mxu0 0.0
      %1840 = vmatprep.subr.mxu0 0.0
      %1841 = vmatpush1.msra.mxu0 0.0
      %1842 = vmatprep.subr.mxu0 0.0
      %1843 = vmatpush1.msra.mxu0 0.0
      %1844 = vmatprep.subr.mxu0 0.0
      %1845 = vmatpush1.msra.mxu0 0.0
      %1846 = vmatprep.subr.mxu0 0.0
      %1847 = vmatpush1.msra.mxu0 0.0
      %1848 = vmatprep.subr.mxu0 0.0
      %1849 = vmatpush1.msra.mxu0 0.0
      %1850 = vmatprep.subr.mxu0 0.0
      %1851 = vmatpush1.msra.mxu0 0.0
      %1852 = vmatprep.subr.mxu0 0.0
      %1853 = vmatpush1.msra.mxu0 0.0
      %1854 = vmatprep.subr.mxu0 0.0
      %1855 = vmatpush1.msra.mxu0 0.0
      %1856 = vmatprep.subr.mxu0 0.0
      %1857 = vmatpush1.msra.mxu0 0.0
      %1858 = vmatprep.subr.mxu0 0.0
      %1859 = vmatpush1.msra.mxu0 0.0
      %1860 = vmatprep.subr.mxu0 0.0
      %1861 = vmatpush1.msra.mxu0 0.0
      %1862 = vmatprep.subr.mxu0 0.0
      %1863 = vmatpush1.msra.mxu0 0.0
      %1864 = vmatprep.subr.mxu0 0.0
      %1865 = vmatpush1.msra.mxu0 0.0
      %1866 = vmatprep.subr.mxu0 0.0
      %1867 = vmatpush1.msra.mxu0 0.0
      %1868 = vmatprep.mubr.f32.mxu0 0.0
      %1869 = vmatmul.mubr.f32.gmra.mrb[0].mxu0 %v1611
      %v1870 = vpop.f32.mrb[0].mxu0
      %v1871 = vadd.f32 0.0, %v1870
      %v1872 = vpop.f32.mrb[0].mxu0
      %1873 = vmatprep.mubr.f32.mxu0 0.0
      %1874 = vmatmul.mubr.f32.gmra.mrb[0].mxu0 %v1612
      %v1875 = vpop.f32.mrb[0].mxu0
      %v1876 = vadd.f32 0.0, %v1875
      %v1877 = vpop.f32.mrb[0].mxu0
      %1878 = vmatprep.mubr.f32.mxu0 0.0
      %1879 = vmatmul.mubr.f32.gmra.mrb[0].mxu0 %v1613
      %v1880 = vpop.f32.mrb[0].mxu0
      %v1881 = vadd.f32 0.0, %v1880
      %v1882 = vpop.f32.mrb[0].mxu0
      %1883 = vmatprep.mubr.f32.mxu0 0.0
      %1884 = vmatmul.mubr.f32.gmra.mrb[0].mxu0 %v1614
      %v1885 = vpop.f32.mrb[0].mxu0
      %v1886 = vadd.f32 0.0, %v1885
      %v1887 = vpop.f32.mrb[0].mxu0
      %1888 = vmatprep.mubr.f32.mxu0 0.0
      %1889 = vmatmul.mubr.f32.gmra.mrb[0].mxu0 %v1615
      %v1890 = vpop.f32.mrb[0].mxu0
      %v1891 = vadd.f32 0.0, %v1890
      %v1892 = vpop.f32.mrb[0].mxu0
      %1893 = vmatprep.mubr.f32.mxu0 0.0
      %1894 = vmatmul.mubr.f32.gmra.mrb[0].mxu0 %v1616
      %v1895 = vpop.f32.mrb[0].mxu0
      %v1896 = vadd.f32 0.0, %v1895
      %v1897 = vpop.f32.mrb[0].mxu0
      %1898 = vmatprep.mubr.f32.mxu0 0.0
      %1899 = vmatmul.mubr.f32.gmra.mrb[0].mxu0 %v1617
      %v1900 = vpop.f32.mrb[0].mxu0
      %v1901 = vadd.f32 0.0, %v1900
      %v1902 = vpop.f32.mrb[0].mxu0
      %1903 = vmatprep.mubr.f32.mxu0 0.0
      %1904 = vmatmul.mubr.f32.gmra.mrb[0].mxu0 %v1618
      %v1905 = vpop.f32.mrb[0].mxu0
      %v1906 = vadd.f32 0.0, %v1905
      %v1907 = vpop.f32.mrb[0].mxu0
      %1908 = vmatprep.mubr.f32.mxu0 0.0
      %1909 = vmatmul.mubr.f32.gmra.mrb[0].mxu0 %v1619
      %v1910 = vpop.f32.mrb[0].mxu0
      %v1911 = vadd.f32 0.0, %v1910
      %v1912 = vpop.f32.mrb[0].mxu0
      %1913 = vmatprep.mubr.f32.mxu0 0.0
      %1914 = vmatmul.mubr.f32.gmra.mrb[0].mxu0 %v1620
      %v1915 = vpop.f32.mrb[0].mxu0
      %v1916 = vadd.f32 0.0, %v1915
      %v1917 = vpop.f32.mrb[0].mxu0
      %1918 = vmatprep.mubr.f32.mxu0 0.0
      %1919 = vmatmul.mubr.f32.gmra.mrb[0].mxu0 %v1621
      %v1920 = vpop.f32.mrb[0].mxu0
      %v1921 = vadd.f32 0.0, %v1920
      %v1922 = vpop.f32.mrb[0].mxu0
      %1923 = vmatprep.mubr.f32.mxu0 0.0
      %1924 = vmatmul.mubr.f32.gmra.mrb[0].mxu0 %v1622
      %v1925 = vpop.f32.mrb[0].mxu0
      %v1926 = vadd.f32 0.0, %v1925
      %v1927 = vpop.f32.mrb[0].mxu0
      %1928 = vmatprep.mubr.f32.mxu0 0.0
      %1929 = vmatmul.mubr.f32.gmra.mrb[0].mxu0 %v1623
      %v1930 = vpop.f32.mrb[0].mxu0
      %v1931 = vadd.f32 0.0, %v1930
      %v1932 = vpop.f32.mrb[0].mxu0
      %1933 = vmatprep.mubr.f32.mxu0 0.0
      %1934 = vmatmul.mubr.f32.gmra.mrb[0].mxu0 %v1624
      %v1935 = vpop.f32.mrb[0].mxu0
      %v1936 = vadd.f32 0.0, %v1935
      %v1937 = vpop.f32.mrb[0].mxu0
      %1938 = vmatprep.mubr.f32.mxu0 0.0
      %1939 = vmatmul.mubr.f32.gmra.mrb[0].mxu0 %v1625
      %v1940 = vpop.f32.mrb[0].mxu0
      %v1941 = vadd.f32 0.0, %v1940
      %v1942 = vpop.f32.mrb[0].mxu0
      %1943 = vmatprep.mubr.f32.mxu0 0.0
      %1944 = vmatmul.mubr.f32.gmra.mrb[0].mxu0 %v1626
      %v1945 = vpop.f32.mrb[0].mxu0
      %v1946 = vadd.f32 0.0, %v1945
      %v1947 = vpop.f32.mrb[0].mxu0
      %1948 = vmatprep.mubr.f32.mxu0 0.0
      %1949 = vmatmul.mubr.f32.gmra.mrb[0].mxu0 %v1627
      %v1950 = vpop.f32.mrb[0].mxu0
      %v1951 = vadd.f32 0.0, %v1950
      %v1952 = vpop.f32.mrb[0].mxu0
      %1953 = vmatprep.mubr.f32.mxu0 0.0
      %1954 = vmatmul.mubr.f32.gmra.mrb[0].mxu0 %v1628
      %v1955 = vpop.f32.mrb[0].mxu0
      %v1956 = vadd.f32 0.0, %v1955
      %v1957 = vpop.f32.mrb[0].mxu0
      %1958 = vmatprep.mubr.f32.mxu0 0.0
      %1959 = vmatmul.mubr.f32.gmra.mrb[0].mxu0 %v1629
      %v1960 = vpop.f32.mrb[0].mxu0
      %v1961 = vadd.f32 0.0, %v1960
      %v1962 = vpop.f32.mrb[0].mxu0
      %1963 = vmatprep.mubr.f32.mxu0 0.0
      %1964 = vmatmul.mubr.f32.gmra.mrb[0].mxu0 %v1630
      %v1965 = vpop.f32.mrb[0].mxu0
      %v1966 = vadd.f32 0.0, %v1965
      %v1967 = vpop.f32.mrb[0].mxu0
      %1968 = vmatprep.mubr.f32.mxu0 0.0
      %1969 = vmatmul.mubr.f32.gmra.mrb[0].mxu0 %v1631
      %v1970 = vpop.f32.mrb[0].mxu0
      %v1971 = vadd.f32 0.0, %v1970
      %v1972 = vpop.f32.mrb[0].mxu0
      %1973 = vmatprep.mubr.f32.mxu0 0.0
      %1974 = vmatmul.mubr.f32.gmra.mrb[0].mxu0 %v1632
      %v1975 = vpop.f32.mrb[0].mxu0
      %v1976 = vadd.f32 0.0, %v1975
      %v1977 = vpop.f32.mrb[0].mxu0
      %1978 = vmatprep.mubr.f32.mxu0 0.0
      %1979 = vmatmul.mubr.f32.gmra.mrb[0].mxu0 %v1633
      %v1980 = vpop.f32.mrb[0].mxu0
      %v1981 = vadd.f32 0.0, %v1980
      %v1982 = vpop.f32.mrb[0].mxu0
      %1983 = vmatprep.mubr.f32.mxu0 0.0
      %1984 = vmatmul.mubr.f32.gmra.mrb[0].mxu0 %v1634
      %v1985 = vpop.f32.mrb[0].mxu0
      %v1986 = vadd.f32 0.0, %v1985
      %v1987 = vpop.f32.mrb[0].mxu0
      %1988 = vmatprep.mubr.f32.mxu0 0.0
      %1989 = vmatmul.mubr.f32.gmra.mrb[0].mxu0 %v1635
      %v1990 = vpop.f32.mrb[0].mxu0
      %v1991 = vadd.f32 0.0, %v1990
      %v1992 = vpop.f32.mrb[0].mxu0
      %1993 = vmatprep.mubr.f32.mxu0 0.0
      %1994 = vmatmul.mubr.f32.gmra.mrb[0].mxu0 %v1636
      %v1995 = vpop.f32.mrb[0].mxu0
      %v1996 = vadd.f32 0.0, %v1995
      %v1997 = vpop.f32.mrb[0].mxu0
      %1998 = vmatprep.mubr.f32.mxu0 0.0
      %1999 = vmatmul.mubr.f32.gmra.mrb[0].mxu0 %v1637
      %v2000 = vpop.f32.mrb[0].mxu0
      %v2001 = vadd.f32 0.0, %v2000
      %v2002 = vpop.f32.mrb[0].mxu0
      %2003 = vmatprep.mubr.f32.mxu0 0.0
      %2004 = vmatmul.mubr.f32.gmra.mrb[0].mxu0 %v1638
      %v2005 = vpop.f32.mrb[0].mxu0
      %v2006 = vadd.f32 0.0, %v2005
      %v2007 = vpop.f32.mrb[0].mxu0
      %2008 = vmatprep.mubr.f32.mxu0 0.0
      %2009 = vmatmul.mubr.f32.gmra.mrb[0].mxu0 %v1639
      %v2010 = vpop.f32.mrb[0].mxu0
      %v2011 = vadd.f32 0.0, %v2010
      %v2012 = vpop.f32.mrb[0].mxu0
      %2013 = vmatprep.mubr.f32.mxu0 0.0
      %2014 = vmatmul.mubr.f32.gmra.mrb[0].mxu0 %v1640
      %v2015 = vpop.f32.mrb[0].mxu0
      %v2016 = vadd.f32 0.0, %v2015
      %v2017 = vpop.f32.mrb[0].mxu0
      %2018 = vmatprep.mubr.f32.mxu0 0.0
      %2019 = vmatmul.mubr.f32.gmra.mrb[0].mxu0 %v1641
      %v2020 = vpop.f32.mrb[0].mxu0
      %v2021 = vadd.f32 0.0, %v2020
      %v2022 = vpop.f32.mrb[0].mxu0
      %2023 = vmatprep.mubr.f32.mxu0 0.0
      %2024 = vmatmul.mubr.f32.gmra.mrb[0].mxu0 %v1642
      %v2025 = vpop.f32.mrb[0].mxu0
      %v2026 = vadd.f32 0.0, %v2025
      %v2027 = vpop.f32.mrb[0].mxu0
      %2028 = vmatprep.mubr.f32.mxu0 0.0
      %2029 = vmatmul.mubr.f32.gmra.mrb[0].mxu0 %v1643
      %v2030 = vpop.f32.mrb[0].mxu0
      %v2031 = vadd.f32 0.0, %v2030
      %v2032 = vpop.f32.mrb[0].mxu0
      %2033 = vmatprep.mubr.f32.mxu0 0.0
      %2034 = vmatmul.mubr.f32.gmra.mrb[0].mxu0 %v1644
      %v2035 = vpop.f32.mrb[0].mxu0
      %v2036 = vpop.f32.mrb[0].mxu0
      %2037 = vmatprep.mubr.f32.mxu0 0.0
      %2038 = vmatmul.mubr.f32.gmra.mrb[0].mxu0 %v1645
      %v2039 = vpop.f32.mrb[0].mxu0
      %v2040 = vpop.f32.mrb[0].mxu0
      %2041 = vmatprep.mubr.f32.mxu0 0.0
      %2042 = vmatmul.mubr.f32.gmra.mrb[0].mxu0 %v1646
      %v2043 = vpop.f32.mrb[0].mxu0
      %v2044 = vpop.f32.mrb[0].mxu0
      %2045 = vmatprep.mubr.f32.mxu0 0.0
      %2046 = vmatmul.mubr.f32.gmra.mrb[0].mxu0 %v1647
      %v2047 = vpop.f32.mrb[0].mxu0
      %v2048 = vpop.f32.mrb[0].mxu0
      %2049 = vmatprep.mubr.f32.mxu0 0.0
      %2050 = vmatmul.mubr.f32.gmra.mrb[0].mxu0 %v1648
      %v2051 = vpop.f32.mrb[0].mxu0
      %v2052 = vpop.f32.mrb[0].mxu0
      %2053 = vmatprep.mubr.f32.mxu0 0.0
      %2054 = vmatmul.mubr.f32.gmra.mrb[0].mxu0 %v1649
      %v2055 = vpop.f32.mrb[0].mxu0
      %v2056 = vpop.f32.mrb[0].mxu0
      %2057 = vmatprep.mubr.f32.mxu0 0.0
      %2058 = vmatmul.mubr.f32.gmra.mrb[0].mxu0 %v1650
      %v2059 = vpop.f32.mrb[0].mxu0
      %v2060 = vpop.f32.mrb[0].mxu0
      %2061 = vmatprep.mubr.f32.mxu0 0.0
      %2062 = vmatmul.mubr.f32.gmra.mrb[0].mxu0 %v1651
      %v2063 = vpop.f32.mrb[0].mxu0
      %v2064 = vpop.f32.mrb[0].mxu0
      %2065 = vmatprep.mubr.f32.mxu0 0.0
      %2066 = vmatmul.mubr.f32.gmra.mrb[0].mxu0 %v1652
      %v2067 = vpop.f32.mrb[0].mxu0
      %v2068 = vpop.f32.mrb[0].mxu0
      %2069 = vmatprep.mubr.f32.mxu0 0.0
      %2070 = vmatmul.mubr.f32.gmra.mrb[0].mxu0 %v1653
      %v2071 = vpop.f32.mrb[0].mxu0
      %v2072 = vpop.f32.mrb[0].mxu0
      %2073 = vmatprep.mubr.f32.mxu0 0.0
      %2074 = vmatmul.mubr.f32.gmra.mrb[0].mxu0 %v1654
      %v2075 = vpop.f32.mrb[0].mxu0
      %v2076 = vpop.f32.mrb[0].mxu0
      %2077 = vmatprep.mubr.f32.mxu0 0.0
      %2078 = vmatmul.mubr.f32.gmra.mrb[0].mxu0 %v1655
      %v2079 = vpop.f32.mrb[0].mxu0
      %v2080 = vpop.f32.mrb[0].mxu0
      %2081 = vmatprep.mubr.f32.mxu0 0.0
      %2082 = vmatmul.mubr.f32.gmra.mrb[0].mxu0 %v1656
      %v2083 = vpop.f32.mrb[0].mxu0
      %v2084 = vpop.f32.mrb[0].mxu0
      %2085 = vmatprep.mubr.f32.mxu0 0.0
      %2086 = vmatmul.mubr.f32.gmra.mrb[0].mxu0 %v1657
      %v2087 = vpop.f32.mrb[0].mxu0
      %v2088 = vpop.f32.mrb[0].mxu0
      %2089 = vmatprep.mubr.f32.mxu0 0.0
      %2090 = vmatmul.mubr.f32.gmra.mrb[0].mxu0 %v1658
      %v2091 = vpop.f32.mrb[0].mxu0
      %v2092 = vpop.f32.mrb[0].mxu0
      %2093 = vmatprep.mubr.f32.mxu0 0.0
      %2094 = vmatmul.mubr.f32.gmra.mrb[0].mxu0 %v1659
      %v2095 = vpop.f32.mrb[0].mxu0
      %v2096 = vadd.f32 0.0, %v2095
      %v2097 = vpop.f32.mrb[0].mxu0
      %2098 = vmatprep.mubr.f32.mxu0 0.0
      %2099 = vmatmul.mubr.f32.gmra.mrb[0].mxu0 %v1660
      %v2100 = vpop.f32.mrb[0].mxu0
      %v2101 = vadd.f32 0.0, %v2100
      %v2102 = vpop.f32.mrb[0].mxu0
      %2103 = vmatprep.mubr.f32.mxu0 0.0
      %2104 = vmatmul.mubr.f32.gmra.mrb[0].mxu0 %v1661
      %v2105 = vpop.f32.mrb[0].mxu0
      %v2106 = vadd.f32 0.0, %v2105
      %v2107 = vpop.f32.mrb[0].mxu0
      %2108 = vmatprep.mubr.f32.mxu0 0.0
      %2109 = vmatmul.mubr.f32.gmra.mrb[0].mxu0 %v1662
      %v2110 = vpop.f32.mrb[0].mxu0
      %v2111 = vadd.f32 0.0, %v2110
      %v2112 = vpop.f32.mrb[0].mxu0
      %2113 = vmatprep.mubr.f32.mxu0 0.0
      %2114 = vmatmul.mubr.f32.gmra.mrb[0].mxu0 %v1663
      %v2115 = vpop.f32.mrb[0].mxu0
      %v2116 = vadd.f32 0.0, %v2115
      %v2117 = vpop.f32.mrb[0].mxu0
      %2118 = vmatprep.mubr.f32.mxu0 0.0
      %2119 = vmatmul.mubr.f32.gmra.mrb[0].mxu0 %v1664
      %v2120 = vpop.f32.mrb[0].mxu0
      %v2121 = vadd.f32 0.0, %v2120
      %v2122 = vpop.f32.mrb[0].mxu0
      %2123 = vmatprep.mubr.f32.mxu0 0.0
      %2124 = vmatmul.mubr.f32.gmra.mrb[0].mxu0 %v1665
      %v2125 = vpop.f32.mrb[0].mxu0
      %v2126 = vadd.f32 0.0, %v2125
      %v2127 = vpop.f32.mrb[0].mxu0
      %2128 = vmatprep.mubr.f32.mxu0 0.0
      %2129 = vmatmul.mubr.f32.gmra.mrb[0].mxu0 %v1666
      %v2130 = vpop.f32.mrb[0].mxu0
      %v2131 = vadd.f32 0.0, %v2130
      %v2132 = vpop.f32.mrb[0].mxu0
      %2133 = vmatprep.mubr.f32.mxu0 0.0
      %2134 = vmatmul.mubr.f32.gmra.mrb[0].mxu0 %v1667
      %v2135 = vpop.f32.mrb[0].mxu0
      %v2136 = vadd.f32 0.0, %v2135
      %v2137 = vpop.f32.mrb[0].mxu0
      %2138 = vmatprep.mubr.f32.mxu0 0.0
      %2139 = vmatmul.mubr.f32.gmra.mrb[0].mxu0 %v1668
      %v2140 = vpop.f32.mrb[0].mxu0
      %v2141 = vadd.f32 0.0, %v2140
      %v2142 = vpop.f32.mrb[0].mxu0
      %2143 = vmatprep.mubr.f32.mxu0 0.0
      %2144 = vmatmul.mubr.f32.gmra.mrb[0].mxu0 %v1669
      %v2145 = vpop.f32.mrb[0].mxu0
      %v2146 = vadd.f32 0.0, %v2145
      %v2147 = vpop.f32.mrb[0].mxu0
      %2148 = vmatprep.mubr.f32.mxu0 0.0
      %2149 = vmatmul.mubr.f32.gmra.mrb[0].mxu0 %v1670
      %v2150 = vpop.f32.mrb[0].mxu0
      %v2151 = vadd.f32 0.0, %v2150
      %v2152 = vpop.f32.mrb[0].mxu0
      %2153 = vmatprep.mubr.f32.mxu0 0.0
      %2154 = vmatmul.mubr.f32.gmra.mrb[0].mxu0 %v1671
      %v2155 = vpop.f32.mrb[0].mxu0
      %v2156 = vadd.f32 0.0, %v2155
      %v2157 = vpop.f32.mrb[0].mxu0
      %2158 = vmatprep.mubr.f32.mxu0 0.0
      %2159 = vmatmul.mubr.f32.gmra.mrb[0].mxu0 %v1672
      %v2160 = vpop.f32.mrb[0].mxu0
      %v2161 = vadd.f32 0.0, %v2160
      %v2162 = vpop.f32.mrb[0].mxu0
      %2163 = vmatprep.mubr.f32.mxu0 0.0
      %2164 = vmatmul.mubr.f32.gmra.mrb[0].mxu0 %v1673
      %v2165 = vpop.f32.mrb[0].mxu0
      %v2166 = vadd.f32 0.0, %v2165
      %v2167 = vpop.f32.mrb[0].mxu0
      %2168 = vmatprep.mubr.f32.mxu0 0.0
      %2169 = vmatmul.mubr.f32.gmra.mrb[0].mxu0 %v1674
      %v2170 = vpop.f32.mrb[0].mxu0
      %v2171 = vadd.f32 0.0, %v2170
      %v2172 = vpop.f32.mrb[0].mxu0
      %2173 = vmatprep.mubr.f32.mxu0 0.0
      %2174 = vmatmul.mubr.f32.gmra.mrb[0].mxu0 %v1675
      %v2175 = vpop.f32.mrb[0].mxu0
      %v2176 = vadd.f32 0.0, %v2175
      %v2177 = vpop.f32.mrb[0].mxu0
      %2178 = vmatprep.mubr.f32.mxu0 0.0
      %2179 = vmatmul.mubr.f32.gmra.mrb[0].mxu0 %v1676
      %v2180 = vpop.f32.mrb[0].mxu0
      %v2181 = vadd.f32 0.0, %v2180
      %v2182 = vpop.f32.mrb[0].mxu0
      %2183 = vmatprep.mubr.f32.mxu0 0.0
      %2184 = vmatmul.mubr.f32.gmra.mrb[0].mxu0 %v1677
      %v2185 = vpop.f32.mrb[0].mxu0
      %v2186 = vadd.f32 0.0, %v2185
      %v2187 = vpop.f32.mrb[0].mxu0
      %2188 = vmatprep.mubr.f32.mxu0 0.0
      %2189 = vmatmul.mubr.f32.gmra.mrb[0].mxu0 %v1678
      %v2190 = vpop.f32.mrb[0].mxu0
      %v2191 = vadd.f32 0.0, %v2190
      %v2192 = vpop.f32.mrb[0].mxu0
      %2193 = vmatprep.mubr.f32.mxu0 0.0
      %2194 = vmatmul.mubr.f32.gmra.mrb[0].mxu0 %v1679
      %v2195 = vpop.f32.mrb[0].mxu0
      %v2196 = vadd.f32 0.0, %v2195
      %v2197 = vpop.f32.mrb[0].mxu0
      %2198 = vmatprep.mubr.f32.mxu0 0.0
      %2199 = vmatmul.mubr.f32.gmra.mrb[0].mxu0 %v1680
      %v2200 = vpop.f32.mrb[0].mxu0
      %v2201 = vadd.f32 0.0, %v2200
      %v2202 = vpop.f32.mrb[0].mxu0
      %2203 = vmatprep.mubr.f32.mxu0 0.0
      %2204 = vmatmul.mubr.f32.gmra.mrb[0].mxu0 %v1681
      %v2205 = vpop.f32.mrb[0].mxu0
      %v2206 = vadd.f32 0.0, %v2205
      %v2207 = vpop.f32.mrb[0].mxu0
      %2208 = vmatprep.mubr.f32.mxu0 0.0
      %2209 = vmatmul.mubr.f32.gmra.mrb[0].mxu0 %v1682
      %v2210 = vpop.f32.mrb[0].mxu0
      %v2211 = vadd.f32 0.0, %v2210
      %v2212 = vpop.f32.mrb[0].mxu0
      %2213 = vmatprep.mubr.f32.mxu0 0.0
      %2214 = vmatmul.mubr.f32.gmra.mrb[0].mxu0 %v1683
      %v2215 = vpop.f32.mrb[0].mxu0
      %v2216 = vadd.f32 0.0, %v2215
      %v2217 = vpop.f32.mrb[0].mxu0
      %2218 = vmatprep.mubr.f32.mxu0 0.0
      %2219 = vmatmul.mubr.f32.gmra.mrb[0].mxu0 %v1684
      %v2220 = vpop.f32.mrb[0].mxu0
      %v2221 = vadd.f32 0.0, %v2220
      %v2222 = vpop.f32.mrb[0].mxu0
      %2223 = vmatprep.mubr.f32.mxu0 0.0
      %2224 = vmatmul.mubr.f32.gmra.mrb[0].mxu0 %v1685
      %v2225 = vpop.f32.mrb[0].mxu0
      %v2226 = vadd.f32 0.0, %v2225
      %v2227 = vpop.f32.mrb[0].mxu0
      %2228 = vmatprep.mubr.f32.mxu0 0.0
      %2229 = vmatmul.mubr.f32.gmra.mrb[0].mxu0 %v1686
      %v2230 = vpop.f32.mrb[0].mxu0
      %v2231 = vadd.f32 0.0, %v2230
      %v2232 = vpop.f32.mrb[0].mxu0
      %2233 = vmatprep.mubr.f32.mxu0 0.0
      %2234 = vmatmul.mubr.f32.gmra.mrb[0].mxu0 %v1687
      %v2235 = vpop.f32.mrb[0].mxu0
      %v2236 = vadd.f32 0.0, %v2235
      %v2237 = vpop.f32.mrb[0].mxu0
      %2238 = vmatprep.mubr.f32.mxu0 0.0
      %2239 = vmatmul.mubr.f32.gmra.mrb[0].mxu0 %v1688
      %v2240 = vpop.f32.mrb[0].mxu0
      %v2241 = vadd.f32 0.0, %v2240
      %v2242 = vpop.f32.mrb[0].mxu0
      %2243 = vmatprep.mubr.f32.mxu0 0.0
      %2244 = vmatmul.mubr.f32.gmra.mrb[0].mxu0 %v1689
      %v2245 = vpop.f32.mrb[0].mxu0
      %v2246 = vadd.f32 0.0, %v2245
      %v2247 = vpop.f32.mrb[0].mxu0
      %2248 = vmatprep.mubr.f32.mxu0 0.0
      %2249 = vmatmul.mubr.f32.gmra.mrb[0].mxu0 %v1690
      %v2250 = vpop.f32.mrb[0].mxu0
      %v2251 = vadd.f32 0.0, %v2250
      %v2252 = vpop.f32.mrb[0].mxu0
      %2253 = vmatprep.mubr.f32.mxu0 0.0
      %2254 = vmatmul.mubr.f32.gmra.mrb[0].mxu0 %v1691
      %v2255 = vpop.f32.mrb[0].mxu0
      %v2256 = vadd.f32 0.0, %v2255
      %v2257 = vpop.f32.mrb[0].mxu0
      %2258 = vmatprep.mubr.f32.mxu0 0.0
      %2259 = vmatmul.mubr.f32.gmra.mrb[0].mxu0 %v1692
      %v2260 = vpop.f32.mrb[0].mxu0
      %v2261 = vpop.f32.mrb[0].mxu0
      %2262 = vmatprep.mubr.f32.mxu0 0.0
      %2263 = vmatmul.mubr.f32.gmra.mrb[0].mxu0 %v1693
      %v2264 = vpop.f32.mrb[0].mxu0
      %v2265 = vpop.f32.mrb[0].mxu0
      %2266 = vmatprep.mubr.f32.mxu0 0.0
      %2267 = vmatmul.mubr.f32.gmra.mrb[0].mxu0 %v1694
      %v2268 = vpop.f32.mrb[0].mxu0
      %v2269 = vpop.f32.mrb[0].mxu0
      %2270 = vmatprep.mubr.f32.mxu0 0.0
      %2271 = vmatmul.mubr.f32.gmra.mrb[0].mxu0 %v1695
      %v2272 = vpop.f32.mrb[0].mxu0
      %v2273 = vpop.f32.mrb[0].mxu0
      %2274 = vmatprep.mubr.f32.mxu0 0.0
      %2275 = vmatmul.mubr.f32.gmra.mrb[0].mxu0 %v1696
      %v2276 = vpop.f32.mrb[0].mxu0
      %v2277 = vpop.f32.mrb[0].mxu0
      %2278 = vmatprep.mubr.f32.mxu0 0.0
      %2279 = vmatmul.mubr.f32.gmra.mrb[0].mxu0 %v1697
      %v2280 = vpop.f32.mrb[0].mxu0
      %v2281 = vpop.f32.mrb[0].mxu0
      %2282 = vmatprep.mubr.f32.mxu0 0.0
      %2283 = vmatmul.mubr.f32.gmra.mrb[0].mxu0 %v1698
      %v2284 = vpop.f32.mrb[0].mxu0
      %v2285 = vpop.f32.mrb[0].mxu0
      %2286 = vmatprep.mubr.f32.mxu0 0.0
      %2287 = vmatmul.mubr.f32.gmra.mrb[0].mxu0 %v1699
      %v2288 = vpop.f32.mrb[0].mxu0
      %v2289 = vpop.f32.mrb[0].mxu0
      %2290 = vmatprep.mubr.f32.mxu0 0.0
      %2291 = vmatmul.mubr.f32.gmra.mrb[0].mxu0 %v1700
      %v2292 = vpop.f32.mrb[0].mxu0
      %v2293 = vpop.f32.mrb[0].mxu0
      %2294 = vmatprep.mubr.f32.mxu0 0.0
      %2295 = vmatmul.mubr.f32.gmra.mrb[0].mxu0 %v1701
      %v2296 = vpop.f32.mrb[0].mxu0
      %v2297 = vpop.f32.mrb[0].mxu0
      %2298 = vmatprep.mubr.f32.mxu0 0.0
      %2299 = vmatmul.mubr.f32.gmra.mrb[0].mxu0 %v1702
      %v2300 = vpop.f32.mrb[0].mxu0
      %v2301 = vpop.f32.mrb[0].mxu0
      %2302 = vmatprep.mubr.f32.mxu0 0.0
      %2303 = vmatmul.mubr.f32.gmra.mrb[0].mxu0 %v1703
      %v2304 = vpop.f32.mrb[0].mxu0
      %v2305 = vpop.f32.mrb[0].mxu0
      %2306 = vmatprep.mubr.f32.mxu0 0.0
      %2307 = vmatmul.mubr.f32.gmra.mrb[0].mxu0 %v1704
      %v2308 = vpop.f32.mrb[0].mxu0
      %v2309 = vpop.f32.mrb[0].mxu0
      %2310 = vmatprep.mubr.f32.mxu0 0.0
      %2311 = vmatmul.mubr.f32.gmra.mrb[0].mxu0 %v1705
      %v2312 = vpop.f32.mrb[0].mxu0
      %v2313 = vpop.f32.mrb[0].mxu0
      %2314 = vmatprep.mubr.f32.mxu0 0.0
      %2315 = vmatmul.mubr.f32.gmra.mrb[0].mxu0 %v1706
      %v2316 = vpop.f32.mrb[0].mxu0
      %v2317 = vpop.f32.mrb[0].mxu0
      %2318 = vdwg.mxu0
      %v2319 = vadd.f32 %v1162, %v1871
      %v2320 = vadd.f32 %v1167, %v1876
      %v2321 = vadd.f32 %v1172, %v1881
      %v2322 = vadd.f32 %v1177, %v1886
      %v2323 = vadd.f32 %v1182, %v1891
      %v2324 = vadd.f32 %v1187, %v1896
      %v2325 = vadd.f32 %v1192, %v1901
      %v2326 = vadd.f32 %v1197, %v1906
      %v2327 = vadd.f32 %v1202, %v1911
      %v2328 = vadd.f32 %v1207, %v1916
      %v2329 = vadd.f32 %v1212, %v1921
      %v2330 = vadd.f32 %v1217, %v1926
      %v2331 = vadd.f32 %v1222, %v1931
      %v2332 = vadd.f32 %v1227, %v1936
      %v2333 = vadd.f32 %v1232, %v1941
      %v2334 = vadd.f32 %v1237, %v1946
      %v2335 = vadd.f32 %v1242, %v1951
      %v2336 = vadd.f32 %v1247, %v1956
      %v2337 = vadd.f32 %v1252, %v1961
      %v2338 = vadd.f32 %v1257, %v1966
      %v2339 = vadd.f32 %v1262, %v1971
      %v2340 = vadd.f32 %v1267, %v1976
      %v2341 = vadd.f32 %v1272, %v1981
      %v2342 = vadd.f32 %v1277, %v1986
      %v2343 = vadd.f32 %v1282, %v1991
      %v2344 = vadd.f32 %v1287, %v1996
      %v2345 = vadd.f32 %v1292, %v2001
      %v2346 = vadd.f32 %v1297, %v2006
      %v2347 = vadd.f32 %v1302, %v2011
      %v2348 = vadd.f32 %v1307, %v2016
      %v2349 = vadd.f32 %v1312, %v2021
      %v2350 = vadd.f32 %v1317, %v2026
      %v2351 = vadd.f32 %v1322, %v2031
      %v2352 = vadd.f32 %v1387, %v2096
      %v2353 = vadd.f32 %v1392, %v2101
      %v2354 = vadd.f32 %v1397, %v2106
      %v2355 = vadd.f32 %v1402, %v2111
      %v2356 = vadd.f32 %v1407, %v2116
      %v2357 = vadd.f32 %v1412, %v2121
      %v2358 = vadd.f32 %v1417, %v2126
      %v2359 = vadd.f32 %v1422, %v2131
      %v2360 = vadd.f32 %v1427, %v2136
      %v2361 = vadd.f32 %v1432, %v2141
      %v2362 = vadd.f32 %v1437, %v2146
      %v2363 = vadd.f32 %v1442, %v2151
      %v2364 = vadd.f32 %v1447, %v2156
      %v2365 = vadd.f32 %v1452, %v2161
      %v2366 = vadd.f32 %v1457, %v2166
      %v2367 = vadd.f32 %v1462, %v2171
      %v2368 = vadd.f32 %v1467, %v2176
      %v2369 = vadd.f32 %v1472, %v2181
      %v2370 = vadd.f32 %v1477, %v2186
      %v2371 = vadd.f32 %v1482, %v2191
      %v2372 = vadd.f32 %v1487, %v2196
      %v2373 = vadd.f32 %v1492, %v2201
      %v2374 = vadd.f32 %v1497, %v2206
      %v2375 = vadd.f32 %v1502, %v2211
      %v2376 = vadd.f32 %v1507, %v2216
      %v2377 = vadd.f32 %v1512, %v2221
      %v2378 = vadd.f32 %v1517, %v2226
      %v2379 = vadd.f32 %v1522, %v2231
      %v2380 = vadd.f32 %v1527, %v2236
      %v2381 = vadd.f32 %v1532, %v2241
      %v2382 = vadd.f32 %v1537, %v2246
      %v2383 = vadd.f32 %v1542, %v2251
      %v2384 = vadd.f32 %v1547, %v2256
      %s2385 = scalar_lea.vmem %s1, 2304
      %v2386 = vld [vmem:[%s2385] sm:$0xff]
      %v2387 = vld [vmem:[%s2385 + $0x8] sm:$0xff]
      %v2388 = vld [vmem:[%s2385 + $0x10] sm:$0xff]
      %v2389 = vld [vmem:[%s2385 + $0x18] sm:$0xff]
      %v2390 = vld [vmem:[%s2385 + $0x20] sm:$0xff]
      %v2391 = vld [vmem:[%s2385 + $0x28] sm:$0xff]
      %v2392 = vld [vmem:[%s2385 + $0x30] sm:$0xff]
      %v2393 = vld [vmem:[%s2385 + $0x38] sm:$0xff]
      %v2394 = vld [vmem:[%s2385 + $0x40] sm:$0xff]
      %v2395 = vld [vmem:[%s2385 + $0x48] sm:$0xff]
      %v2396 = vld [vmem:[%s2385 + $0x50] sm:$0xff]
      %v2397 = vld [vmem:[%s2385 + $0x58] sm:$0xff]
      %v2398 = vld [vmem:[%s2385 + $0x60] sm:$0xff]
      %v2399 = vld [vmem:[%s2385 + $0x68] sm:$0xff]
      %v2400 = vld [vmem:[%s2385 + $0x70] sm:$0xff]
      %v2401 = vld [vmem:[%s2385 + $0x78] sm:$0xff]
      %v2402 = vld [vmem:[%s2385 + $0x80] sm:$0xff]
      %v2403 = vld [vmem:[%s2385 + $0x88] sm:$0xff]
      %v2404 = vld [vmem:[%s2385 + $0x90] sm:$0xff]
      %v2405 = vld [vmem:[%s2385 + $0x98] sm:$0xff]
      %v2406 = vld [vmem:[%s2385 + $0xa0] sm:$0xff]
      %v2407 = vld [vmem:[%s2385 + $0xa8] sm:$0xff]
      %v2408 = vld [vmem:[%s2385 + $0xb0] sm:$0xff]
      %v2409 = vld [vmem:[%s2385 + $0xb8] sm:$0xff]
      %v2410 = vld [vmem:[%s2385 + $0xc0] sm:$0xff]
      %v2411 = vld [vmem:[%s2385 + $0xc8] sm:$0xff]
      %v2412 = vld [vmem:[%s2385 + $0xd0] sm:$0xff]
      %v2413 = vld [vmem:[%s2385 + $0xd8] sm:$0xff]
      %v2414 = vld [vmem:[%s2385 + $0xe0] sm:$0xff]
      %v2415 = vld [vmem:[%s2385 + $0xe8] sm:$0xff]
      %v2416 = vld [vmem:[%s2385 + $0xf0] sm:$0xff]
      %v2417 = vld [vmem:[%s2385 + $0xf8] sm:$0xff]
      %v2418 = vld [vmem:[%s2385 + $0x100] sm:$0xff]
      %v2419 = vld [vmem:[%s2385 + $0x108] sm:$0xff]
      %v2420 = vld [vmem:[%s2385 + $0x110] sm:$0xff]
      %v2421 = vld [vmem:[%s2385 + $0x118] sm:$0xff]
      %v2422 = vld [vmem:[%s2385 + $0x120] sm:$0xff]
      %v2423 = vld [vmem:[%s2385 + $0x128] sm:$0xff]
      %v2424 = vld [vmem:[%s2385 + $0x130] sm:$0xff]
      %v2425 = vld [vmem:[%s2385 + $0x138] sm:$0xff]
      %v2426 = vld [vmem:[%s2385 + $0x140] sm:$0xff]
      %v2427 = vld [vmem:[%s2385 + $0x148] sm:$0xff]
      %v2428 = vld [vmem:[%s2385 + $0x150] sm:$0xff]
      %v2429 = vld [vmem:[%s2385 + $0x158] sm:$0xff]
      %v2430 = vld [vmem:[%s2385 + $0x160] sm:$0xff]
      %v2431 = vld [vmem:[%s2385 + $0x168] sm:$0xff]
      %v2432 = vld [vmem:[%s2385 + $0x170] sm:$0xff]
      %v2433 = vld [vmem:[%s2385 + $0x178] sm:$0xff]
      %v2434 = vld [vmem:[%s2385 + $0x180] sm:$0xff]
      %v2435 = vld [vmem:[%s2385 + $0x188] sm:$0xff]
      %v2436 = vld [vmem:[%s2385 + $0x190] sm:$0xff]
      %v2437 = vld [vmem:[%s2385 + $0x198] sm:$0xff]
      %v2438 = vld [vmem:[%s2385 + $0x1a0] sm:$0xff]
      %v2439 = vld [vmem:[%s2385 + $0x1a8] sm:$0xff]
      %v2440 = vld [vmem:[%s2385 + $0x1b0] sm:$0xff]
      %v2441 = vld [vmem:[%s2385 + $0x1b8] sm:$0xff]
      %v2442 = vld [vmem:[%s2385 + $0x1c0] sm:$0xff]
      %v2443 = vld [vmem:[%s2385 + $0x1c8] sm:$0xff]
      %v2444 = vld [vmem:[%s2385 + $0x1d0] sm:$0xff]
      %v2445 = vld [vmem:[%s2385 + $0x1d8] sm:$0xff]
      %v2446 = vld [vmem:[%s2385 + $0x1e0] sm:$0xff]
      %v2447 = vld [vmem:[%s2385 + $0x1e8] sm:$0xff]
      %v2448 = vld [vmem:[%s2385 + $0x1f0] sm:$0xff]
      %v2449 = vld [vmem:[%s2385 + $0x1f8] sm:$0xff]
      %v2450 = vld [vmem:[%s2385 + $0x200] sm:$0xff]
      %v2451 = vld [vmem:[%s2385 + $0x208] sm:$0xff]
      %v2452 = vld [vmem:[%s2385 + $0x210] sm:$0xff]
      %v2453 = vld [vmem:[%s2385 + $0x218] sm:$0xff]
      %v2454 = vld [vmem:[%s2385 + $0x220] sm:$0xff]
      %v2455 = vld [vmem:[%s2385 + $0x228] sm:$0xff]
      %v2456 = vld [vmem:[%s2385 + $0x230] sm:$0xff]
      %v2457 = vld [vmem:[%s2385 + $0x238] sm:$0xff]
      %v2458 = vld [vmem:[%s2385 + $0x240] sm:$0xff]
      %v2459 = vld [vmem:[%s2385 + $0x248] sm:$0xff]
      %v2460 = vld [vmem:[%s2385 + $0x250] sm:$0xff]
      %v2461 = vld [vmem:[%s2385 + $0x258] sm:$0xff]
      %v2462 = vld [vmem:[%s2385 + $0x260] sm:$0xff]
      %v2463 = vld [vmem:[%s2385 + $0x268] sm:$0xff]
      %v2464 = vld [vmem:[%s2385 + $0x270] sm:$0xff]
      %v2465 = vld [vmem:[%s2385 + $0x278] sm:$0xff]
      %v2466 = vld [vmem:[%s2385 + $0x280] sm:$0xff]
      %v2467 = vld [vmem:[%s2385 + $0x288] sm:$0xff]
      %v2468 = vld [vmem:[%s2385 + $0x290] sm:$0xff]
      %v2469 = vld [vmem:[%s2385 + $0x298] sm:$0xff]
      %v2470 = vld [vmem:[%s2385 + $0x2a0] sm:$0xff]
      %v2471 = vld [vmem:[%s2385 + $0x2a8] sm:$0xff]
      %v2472 = vld [vmem:[%s2385 + $0x2b0] sm:$0xff]
      %v2473 = vld [vmem:[%s2385 + $0x2b8] sm:$0xff]
      %v2474 = vld [vmem:[%s2385 + $0x2c0] sm:$0xff]
      %v2475 = vld [vmem:[%s2385 + $0x2c8] sm:$0xff]
      %v2476 = vld [vmem:[%s2385 + $0x2d0] sm:$0xff]
      %v2477 = vld [vmem:[%s2385 + $0x2d8] sm:$0xff]
      %v2478 = vld [vmem:[%s2385 + $0x2e0] sm:$0xff]
      %v2479 = vld [vmem:[%s2385 + $0x2e8] sm:$0xff]
      %v2480 = vld [vmem:[%s2385 + $0x2f0] sm:$0xff]
      %v2481 = vld [vmem:[%s2385 + $0x2f8] sm:$0xff]
      %2482 = vrot.lane.b32.xlu0 %v322, 125
      %v2483 = vpop.permute.xlu0 %2482
      %2484 = vrot.lane.b32.xlu0 %v338, 125
      %v2485 = vpop.permute.xlu0 %2484
      %2486 = vrot.lane.b32.xlu0 %v323, 125
      %v2487 = vpop.permute.xlu0 %2486
      %2488 = vrot.lane.b32.xlu0 %v339, 125
      %v2489 = vpop.permute.xlu0 %2488
      %2490 = vrot.lane.b32.xlu0 %v324, 125
      %v2491 = vpop.permute.xlu0 %2490
      %2492 = vrot.lane.b32.xlu0 %v340, 125
      %v2493 = vpop.permute.xlu0 %2492
      %2494 = vrot.lane.b32.xlu0 %v325, 125
      %v2495 = vpop.permute.xlu0 %2494
      %2496 = vrot.lane.b32.xlu0 %v341, 125
      %v2497 = vpop.permute.xlu0 %2496
      %2498 = vrot.lane.b32.xlu0 %v326, 125
      %v2499 = vpop.permute.xlu0 %2498
      %2500 = vrot.lane.b32.xlu0 %v342, 125
      %v2501 = vpop.permute.xlu0 %2500
      %2502 = vrot.lane.b32.xlu0 %v327, 125
      %v2503 = vpop.permute.xlu0 %2502
      %2504 = vrot.lane.b32.xlu0 %v343, 125
      %v2505 = vpop.permute.xlu0 %2504
      %2506 = vrot.lane.b32.xlu0 %v328, 125
      %v2507 = vpop.permute.xlu0 %2506
      %2508 = vrot.lane.b32.xlu0 %v344, 125
      %v2509 = vpop.permute.xlu0 %2508
      %2510 = vrot.lane.b32.xlu0 %v329, 125
      %v2511 = vpop.permute.xlu0 %2510
      %2512 = vrot.lane.b32.xlu0 %v345, 125
      %v2513 = vpop.permute.xlu0 %2512
      %2514 = vrot.lane.b32.xlu0 %v330, 125
      %v2515 = vpop.permute.xlu0 %2514
      %2516 = vrot.lane.b32.xlu0 %v346, 125
      %v2517 = vpop.permute.xlu0 %2516
      %2518 = vrot.lane.b32.xlu0 %v331, 125
      %v2519 = vpop.permute.xlu0 %2518
      %2520 = vrot.lane.b32.xlu0 %v347, 125
      %v2521 = vpop.permute.xlu0 %2520
      %2522 = vrot.lane.b32.xlu0 %v332, 125
      %v2523 = vpop.permute.xlu0 %2522
      %2524 = vrot.lane.b32.xlu0 %v348, 125
      %v2525 = vpop.permute.xlu0 %2524
      %2526 = vrot.lane.b32.xlu0 %v333, 125
      %v2527 = vpop.permute.xlu0 %2526
      %2528 = vrot.lane.b32.xlu0 %v349, 125
      %v2529 = vpop.permute.xlu0 %2528
      %2530 = vrot.lane.b32.xlu0 %v334, 125
      %v2531 = vpop.permute.xlu0 %2530
      %2532 = vrot.lane.b32.xlu0 %v350, 125
      %v2533 = vpop.permute.xlu0 %2532
      %2534 = vrot.lane.b32.xlu0 %v335, 125
      %v2535 = vpop.permute.xlu0 %2534
      %2536 = vrot.lane.b32.xlu0 %v351, 125
      %v2537 = vpop.permute.xlu0 %2536
      %2538 = vrot.lane.b32.xlu0 %v336, 125
      %v2539 = vpop.permute.xlu0 %2538
      %2540 = vrot.lane.b32.xlu0 %v352, 125
      %v2541 = vpop.permute.xlu0 %2540
      %2542 = vrot.lane.b32.xlu0 %v337, 125
      %v2543 = vpop.permute.xlu0 %2542
      %2544 = vrot.lane.b32.xlu0 %v353, 125
      %v2545 = vpop.permute.xlu0 %2544
      %vm2546 = vcmask 1022976
      %v2547 = vsel %vm2546, %v2483, %v2485
      %v2548 = vsel %vm2546, %v2487, %v2489
      %v2549 = vsel %vm2546, %v2491, %v2493
      %v2550 = vsel %vm2546, %v2495, %v2497
      %v2551 = vsel %vm2546, %v2499, %v2501
      %v2552 = vsel %vm2546, %v2503, %v2505
      %v2553 = vsel %vm2546, %v2507, %v2509
      %v2554 = vsel %vm2546, %v2511, %v2513
      %v2555 = vsel %vm2546, %v2515, %v2517
      %v2556 = vsel %vm2546, %v2519, %v2521
      %v2557 = vsel %vm2546, %v2523, %v2525
      %v2558 = vsel %vm2546, %v2527, %v2529
      %v2559 = vsel %vm2546, %v2531, %v2533
      %v2560 = vsel %vm2546, %v2535, %v2537
      %v2561 = vsel %vm2546, %v2539, %v2541
      %v2562 = vsel %vm2546, %v2543, %v2545
      %2579 = vmatprep.subr.mxu0 0.0
      %2580 = vmatpush1.msra.mxu0 %v2547
      %2581 = vmatprep.subr.mxu0 0.0
      %2582 = vmatpush1.msra.mxu0 %v2548
      %2583 = vmatprep.subr.mxu0 0.0
      %2584 = vmatpush1.msra.mxu0 %v2549
      %2585 = vmatprep.subr.mxu0 0.0
      %2586 = vmatpush1.msra.mxu0 %v2550
      %2587 = vmatprep.subr.mxu0 0.0
      %2588 = vmatpush1.msra.mxu0 %v2551
      %2589 = vmatprep.subr.mxu0 0.0
      %2590 = vmatpush1.msra.mxu0 %v2552
      %2591 = vmatprep.subr.mxu0 0.0
      %2592 = vmatpush1.msra.mxu0 %v2553
      %2593 = vmatprep.subr.mxu0 0.0
      %2594 = vmatpush1.msra.mxu0 %v2554
      %2595 = vmatprep.subr.mxu0 0.0
      %2596 = vmatpush1.msra.mxu0 %v2555
      %2597 = vmatprep.subr.mxu0 0.0
      %2598 = vmatpush1.msra.mxu0 %v2556
      %2599 = vmatprep.subr.mxu0 0.0
      %2600 = vmatpush1.msra.mxu0 %v2557
      %2601 = vmatprep.subr.mxu0 0.0
      %2602 = vmatpush1.msra.mxu0 %v2558
      %2603 = vmatprep.subr.mxu0 0.0
      %2604 = vmatpush1.msra.mxu0 %v2559
      %2605 = vmatprep.subr.mxu0 0.0
      %2606 = vmatpush1.msra.mxu0 %v2560
      %2607 = vmatprep.subr.mxu0 0.0
      %2608 = vmatpush1.msra.mxu0 %v2561
      %2609 = vmatprep.subr.mxu0 0.0
      %2610 = vmatpush1.msra.mxu0 %v2562
      %2611 = vmatprep.subr.mxu0 0.0
      %2612 = vmatpush1.msra.mxu0 0.0
      %2613 = vmatprep.subr.mxu0 0.0
      %2614 = vmatpush1.msra.mxu0 0.0
      %2615 = vmatprep.subr.mxu0 0.0
      %2616 = vmatpush1.msra.mxu0 0.0
      %2617 = vmatprep.subr.mxu0 0.0
      %2618 = vmatpush1.msra.mxu0 0.0
      %2619 = vmatprep.subr.mxu0 0.0
      %2620 = vmatpush1.msra.mxu0 0.0
      %2621 = vmatprep.subr.mxu0 0.0
      %2622 = vmatpush1.msra.mxu0 0.0
      %2623 = vmatprep.subr.mxu0 0.0
      %2624 = vmatpush1.msra.mxu0 0.0
      %2625 = vmatprep.subr.mxu0 0.0
      %2626 = vmatpush1.msra.mxu0 0.0
      %2627 = vmatprep.subr.mxu0 0.0
      %2628 = vmatpush1.msra.mxu0 0.0
      %2629 = vmatprep.subr.mxu0 0.0
      %2630 = vmatpush1.msra.mxu0 0.0
      %2631 = vmatprep.subr.mxu0 0.0
      %2632 = vmatpush1.msra.mxu0 0.0
      %2633 = vmatprep.subr.mxu0 0.0
      %2634 = vmatpush1.msra.mxu0 0.0
      %2635 = vmatprep.subr.mxu0 0.0
      %2636 = vmatpush1.msra.mxu0 0.0
      %2637 = vmatprep.subr.mxu0 0.0
      %2638 = vmatpush1.msra.mxu0 0.0
      %2639 = vmatprep.subr.mxu0 0.0
      %2640 = vmatpush1.msra.mxu0 0.0
      %2641 = vmatprep.subr.mxu0 0.0
      %2642 = vmatpush1.msra.mxu0 0.0
      %2643 = vmatprep.mubr.f32.mxu0 0.0
      %2644 = vmatmul.mubr.f32.gmra.mrb[0].mxu0 %v2386
      %v2645 = vpop.f32.mrb[0].mxu0
      %v2646 = vadd.f32 0.0, %v2645
      %v2647 = vpop.f32.mrb[0].mxu0
      %2648 = vmatprep.mubr.f32.mxu0 0.0
      %2649 = vmatmul.mubr.f32.gmra.mrb[0].mxu0 %v2387
      %v2650 = vpop.f32.mrb[0].mxu0
      %v2651 = vadd.f32 0.0, %v2650
      %v2652 = vpop.f32.mrb[0].mxu0
      %2653 = vmatprep.mubr.f32.mxu0 0.0
      %2654 = vmatmul.mubr.f32.gmra.mrb[0].mxu0 %v2388
      %v2655 = vpop.f32.mrb[0].mxu0
      %v2656 = vadd.f32 0.0, %v2655
      %v2657 = vpop.f32.mrb[0].mxu0
      %2658 = vmatprep.mubr.f32.mxu0 0.0
      %2659 = vmatmul.mubr.f32.gmra.mrb[0].mxu0 %v2389
      %v2660 = vpop.f32.mrb[0].mxu0
      %v2661 = vadd.f32 0.0, %v2660
      %v2662 = vpop.f32.mrb[0].mxu0
      %2663 = vmatprep.mubr.f32.mxu0 0.0
      %2664 = vmatmul.mubr.f32.gmra.mrb[0].mxu0 %v2390
      %v2665 = vpop.f32.mrb[0].mxu0
      %v2666 = vadd.f32 0.0, %v2665
      %v2667 = vpop.f32.mrb[0].mxu0
      %2668 = vmatprep.mubr.f32.mxu0 0.0
      %2669 = vmatmul.mubr.f32.gmra.mrb[0].mxu0 %v2391
      %v2670 = vpop.f32.mrb[0].mxu0
      %v2671 = vadd.f32 0.0, %v2670
      %v2672 = vpop.f32.mrb[0].mxu0
      %2673 = vmatprep.mubr.f32.mxu0 0.0
      %2674 = vmatmul.mubr.f32.gmra.mrb[0].mxu0 %v2392
      %v2675 = vpop.f32.mrb[0].mxu0
      %v2676 = vadd.f32 0.0, %v2675
      %v2677 = vpop.f32.mrb[0].mxu0
      %2678 = vmatprep.mubr.f32.mxu0 0.0
      %2679 = vmatmul.mubr.f32.gmra.mrb[0].mxu0 %v2393
      %v2680 = vpop.f32.mrb[0].mxu0
      %v2681 = vadd.f32 0.0, %v2680
      %v2682 = vpop.f32.mrb[0].mxu0
      %2683 = vmatprep.mubr.f32.mxu0 0.0
      %2684 = vmatmul.mubr.f32.gmra.mrb[0].mxu0 %v2394
      %v2685 = vpop.f32.mrb[0].mxu0
      %v2686 = vadd.f32 0.0, %v2685
      %v2687 = vpop.f32.mrb[0].mxu0
      %2688 = vmatprep.mubr.f32.mxu0 0.0
      %2689 = vmatmul.mubr.f32.gmra.mrb[0].mxu0 %v2395
      %v2690 = vpop.f32.mrb[0].mxu0
      %v2691 = vadd.f32 0.0, %v2690
      %v2692 = vpop.f32.mrb[0].mxu0
      %2693 = vmatprep.mubr.f32.mxu0 0.0
      %2694 = vmatmul.mubr.f32.gmra.mrb[0].mxu0 %v2396
      %v2695 = vpop.f32.mrb[0].mxu0
      %v2696 = vadd.f32 0.0, %v2695
      %v2697 = vpop.f32.mrb[0].mxu0
      %2698 = vmatprep.mubr.f32.mxu0 0.0
      %2699 = vmatmul.mubr.f32.gmra.mrb[0].mxu0 %v2397
      %v2700 = vpop.f32.mrb[0].mxu0
      %v2701 = vadd.f32 0.0, %v2700
      %v2702 = vpop.f32.mrb[0].mxu0
      %2703 = vmatprep.mubr.f32.mxu0 0.0
      %2704 = vmatmul.mubr.f32.gmra.mrb[0].mxu0 %v2398
      %v2705 = vpop.f32.mrb[0].mxu0
      %v2706 = vadd.f32 0.0, %v2705
      %v2707 = vpop.f32.mrb[0].mxu0
      %2708 = vmatprep.mubr.f32.mxu0 0.0
      %2709 = vmatmul.mubr.f32.gmra.mrb[0].mxu0 %v2399
      %v2710 = vpop.f32.mrb[0].mxu0
      %v2711 = vadd.f32 0.0, %v2710
      %v2712 = vpop.f32.mrb[0].mxu0
      %2713 = vmatprep.mubr.f32.mxu0 0.0
      %2714 = vmatmul.mubr.f32.gmra.mrb[0].mxu0 %v2400
      %v2715 = vpop.f32.mrb[0].mxu0
      %v2716 = vadd.f32 0.0, %v2715
      %v2717 = vpop.f32.mrb[0].mxu0
      %2718 = vmatprep.mubr.f32.mxu0 0.0
      %2719 = vmatmul.mubr.f32.gmra.mrb[0].mxu0 %v2401
      %v2720 = vpop.f32.mrb[0].mxu0
      %v2721 = vadd.f32 0.0, %v2720
      %v2722 = vpop.f32.mrb[0].mxu0
      %2723 = vmatprep.mubr.f32.mxu0 0.0
      %2724 = vmatmul.mubr.f32.gmra.mrb[0].mxu0 %v2402
      %v2725 = vpop.f32.mrb[0].mxu0
      %v2726 = vadd.f32 0.0, %v2725
      %v2727 = vpop.f32.mrb[0].mxu0
      %2728 = vmatprep.mubr.f32.mxu0 0.0
      %2729 = vmatmul.mubr.f32.gmra.mrb[0].mxu0 %v2403
      %v2730 = vpop.f32.mrb[0].mxu0
      %v2731 = vadd.f32 0.0, %v2730
      %v2732 = vpop.f32.mrb[0].mxu0
      %2733 = vmatprep.mubr.f32.mxu0 0.0
      %2734 = vmatmul.mubr.f32.gmra.mrb[0].mxu0 %v2404
      %v2735 = vpop.f32.mrb[0].mxu0
      %v2736 = vadd.f32 0.0, %v2735
      %v2737 = vpop.f32.mrb[0].mxu0
      %2738 = vmatprep.mubr.f32.mxu0 0.0
      %2739 = vmatmul.mubr.f32.gmra.mrb[0].mxu0 %v2405
      %v2740 = vpop.f32.mrb[0].mxu0
      %v2741 = vadd.f32 0.0, %v2740
      %v2742 = vpop.f32.mrb[0].mxu0
      %2743 = vmatprep.mubr.f32.mxu0 0.0
      %2744 = vmatmul.mubr.f32.gmra.mrb[0].mxu0 %v2406
      %v2745 = vpop.f32.mrb[0].mxu0
      %v2746 = vadd.f32 0.0, %v2745
      %v2747 = vpop.f32.mrb[0].mxu0
      %2748 = vmatprep.mubr.f32.mxu0 0.0
      %2749 = vmatmul.mubr.f32.gmra.mrb[0].mxu0 %v2407
      %v2750 = vpop.f32.mrb[0].mxu0
      %v2751 = vadd.f32 0.0, %v2750
      %v2752 = vpop.f32.mrb[0].mxu0
      %2753 = vmatprep.mubr.f32.mxu0 0.0
      %2754 = vmatmul.mubr.f32.gmra.mrb[0].mxu0 %v2408
      %v2755 = vpop.f32.mrb[0].mxu0
      %v2756 = vadd.f32 0.0, %v2755
      %v2757 = vpop.f32.mrb[0].mxu0
      %2758 = vmatprep.mubr.f32.mxu0 0.0
      %2759 = vmatmul.mubr.f32.gmra.mrb[0].mxu0 %v2409
      %v2760 = vpop.f32.mrb[0].mxu0
      %v2761 = vadd.f32 0.0, %v2760
      %v2762 = vpop.f32.mrb[0].mxu0
      %2763 = vmatprep.mubr.f32.mxu0 0.0
      %2764 = vmatmul.mubr.f32.gmra.mrb[0].mxu0 %v2410
      %v2765 = vpop.f32.mrb[0].mxu0
      %v2766 = vadd.f32 0.0, %v2765
      %v2767 = vpop.f32.mrb[0].mxu0
      %2768 = vmatprep.mubr.f32.mxu0 0.0
      %2769 = vmatmul.mubr.f32.gmra.mrb[0].mxu0 %v2411
      %v2770 = vpop.f32.mrb[0].mxu0
      %v2771 = vadd.f32 0.0, %v2770
      %v2772 = vpop.f32.mrb[0].mxu0
      %2773 = vmatprep.mubr.f32.mxu0 0.0
      %2774 = vmatmul.mubr.f32.gmra.mrb[0].mxu0 %v2412
      %v2775 = vpop.f32.mrb[0].mxu0
      %v2776 = vadd.f32 0.0, %v2775
      %v2777 = vpop.f32.mrb[0].mxu0
      %2778 = vmatprep.mubr.f32.mxu0 0.0
      %2779 = vmatmul.mubr.f32.gmra.mrb[0].mxu0 %v2413
      %v2780 = vpop.f32.mrb[0].mxu0
      %v2781 = vadd.f32 0.0, %v2780
      %v2782 = vpop.f32.mrb[0].mxu0
      %2783 = vmatprep.mubr.f32.mxu0 0.0
      %2784 = vmatmul.mubr.f32.gmra.mrb[0].mxu0 %v2414
      %v2785 = vpop.f32.mrb[0].mxu0
      %v2786 = vadd.f32 0.0, %v2785
      %v2787 = vpop.f32.mrb[0].mxu0
      %2788 = vmatprep.mubr.f32.mxu0 0.0
      %2789 = vmatmul.mubr.f32.gmra.mrb[0].mxu0 %v2415
      %v2790 = vpop.f32.mrb[0].mxu0
      %v2791 = vadd.f32 0.0, %v2790
      %v2792 = vpop.f32.mrb[0].mxu0
      %2793 = vmatprep.mubr.f32.mxu0 0.0
      %2794 = vmatmul.mubr.f32.gmra.mrb[0].mxu0 %v2416
      %v2795 = vpop.f32.mrb[0].mxu0
      %v2796 = vadd.f32 0.0, %v2795
      %v2797 = vpop.f32.mrb[0].mxu0
      %2798 = vmatprep.mubr.f32.mxu0 0.0
      %2799 = vmatmul.mubr.f32.gmra.mrb[0].mxu0 %v2417
      %v2800 = vpop.f32.mrb[0].mxu0
      %v2801 = vadd.f32 0.0, %v2800
      %v2802 = vpop.f32.mrb[0].mxu0
      %2803 = vmatprep.mubr.f32.mxu0 0.0
      %2804 = vmatmul.mubr.f32.gmra.mrb[0].mxu0 %v2418
      %v2805 = vpop.f32.mrb[0].mxu0
      %v2806 = vadd.f32 0.0, %v2805
      %v2807 = vpop.f32.mrb[0].mxu0
      %2808 = vmatprep.mubr.f32.mxu0 0.0
      %2809 = vmatmul.mubr.f32.gmra.mrb[0].mxu0 %v2419
      %v2810 = vpop.f32.mrb[0].mxu0
      %v2811 = vpop.f32.mrb[0].mxu0
      %2812 = vmatprep.mubr.f32.mxu0 0.0
      %2813 = vmatmul.mubr.f32.gmra.mrb[0].mxu0 %v2420
      %v2814 = vpop.f32.mrb[0].mxu0
      %v2815 = vpop.f32.mrb[0].mxu0
      %2816 = vmatprep.mubr.f32.mxu0 0.0
      %2817 = vmatmul.mubr.f32.gmra.mrb[0].mxu0 %v2421
      %v2818 = vpop.f32.mrb[0].mxu0
      %v2819 = vpop.f32.mrb[0].mxu0
      %2820 = vmatprep.mubr.f32.mxu0 0.0
      %2821 = vmatmul.mubr.f32.gmra.mrb[0].mxu0 %v2422
      %v2822 = vpop.f32.mrb[0].mxu0
      %v2823 = vpop.f32.mrb[0].mxu0
      %2824 = vmatprep.mubr.f32.mxu0 0.0
      %2825 = vmatmul.mubr.f32.gmra.mrb[0].mxu0 %v2423
      %v2826 = vpop.f32.mrb[0].mxu0
      %v2827 = vpop.f32.mrb[0].mxu0
      %2828 = vmatprep.mubr.f32.mxu0 0.0
      %2829 = vmatmul.mubr.f32.gmra.mrb[0].mxu0 %v2424
      %v2830 = vpop.f32.mrb[0].mxu0
      %v2831 = vpop.f32.mrb[0].mxu0
      %2832 = vmatprep.mubr.f32.mxu0 0.0
      %2833 = vmatmul.mubr.f32.gmra.mrb[0].mxu0 %v2425
      %v2834 = vpop.f32.mrb[0].mxu0
      %v2835 = vpop.f32.mrb[0].mxu0
      %2836 = vmatprep.mubr.f32.mxu0 0.0
      %2837 = vmatmul.mubr.f32.gmra.mrb[0].mxu0 %v2426
      %v2838 = vpop.f32.mrb[0].mxu0
      %v2839 = vpop.f32.mrb[0].mxu0
      %2840 = vmatprep.mubr.f32.mxu0 0.0
      %2841 = vmatmul.mubr.f32.gmra.mrb[0].mxu0 %v2427
      %v2842 = vpop.f32.mrb[0].mxu0
      %v2843 = vpop.f32.mrb[0].mxu0
      %2844 = vmatprep.mubr.f32.mxu0 0.0
      %2845 = vmatmul.mubr.f32.gmra.mrb[0].mxu0 %v2428
      %v2846 = vpop.f32.mrb[0].mxu0
      %v2847 = vpop.f32.mrb[0].mxu0
      %2848 = vmatprep.mubr.f32.mxu0 0.0
      %2849 = vmatmul.mubr.f32.gmra.mrb[0].mxu0 %v2429
      %v2850 = vpop.f32.mrb[0].mxu0
      %v2851 = vpop.f32.mrb[0].mxu0
      %2852 = vmatprep.mubr.f32.mxu0 0.0
      %2853 = vmatmul.mubr.f32.gmra.mrb[0].mxu0 %v2430
      %v2854 = vpop.f32.mrb[0].mxu0
      %v2855 = vpop.f32.mrb[0].mxu0
      %2856 = vmatprep.mubr.f32.mxu0 0.0
      %2857 = vmatmul.mubr.f32.gmra.mrb[0].mxu0 %v2431
      %v2858 = vpop.f32.mrb[0].mxu0
      %v2859 = vpop.f32.mrb[0].mxu0
      %2860 = vmatprep.mubr.f32.mxu0 0.0
      %2861 = vmatmul.mubr.f32.gmra.mrb[0].mxu0 %v2432
      %v2862 = vpop.f32.mrb[0].mxu0
      %v2863 = vpop.f32.mrb[0].mxu0
      %2864 = vmatprep.mubr.f32.mxu0 0.0
      %2865 = vmatmul.mubr.f32.gmra.mrb[0].mxu0 %v2433
      %v2866 = vpop.f32.mrb[0].mxu0
      %v2867 = vpop.f32.mrb[0].mxu0
      %2868 = vmatprep.mubr.f32.mxu0 0.0
      %2869 = vmatmul.mubr.f32.gmra.mrb[0].mxu0 %v2434
      %v2870 = vpop.f32.mrb[0].mxu0
      %v2871 = vadd.f32 0.0, %v2870
      %v2872 = vpop.f32.mrb[0].mxu0
      %2873 = vmatprep.mubr.f32.mxu0 0.0
      %2874 = vmatmul.mubr.f32.gmra.mrb[0].mxu0 %v2435
      %v2875 = vpop.f32.mrb[0].mxu0
      %v2876 = vadd.f32 0.0, %v2875
      %v2877 = vpop.f32.mrb[0].mxu0
      %2878 = vmatprep.mubr.f32.mxu0 0.0
      %2879 = vmatmul.mubr.f32.gmra.mrb[0].mxu0 %v2436
      %v2880 = vpop.f32.mrb[0].mxu0
      %v2881 = vadd.f32 0.0, %v2880
      %v2882 = vpop.f32.mrb[0].mxu0
      %2883 = vmatprep.mubr.f32.mxu0 0.0
      %2884 = vmatmul.mubr.f32.gmra.mrb[0].mxu0 %v2437
      %v2885 = vpop.f32.mrb[0].mxu0
      %v2886 = vadd.f32 0.0, %v2885
      %v2887 = vpop.f32.mrb[0].mxu0
      %2888 = vmatprep.mubr.f32.mxu0 0.0
      %2889 = vmatmul.mubr.f32.gmra.mrb[0].mxu0 %v2438
      %v2890 = vpop.f32.mrb[0].mxu0
      %v2891 = vadd.f32 0.0, %v2890
      %v2892 = vpop.f32.mrb[0].mxu0
      %2893 = vmatprep.mubr.f32.mxu0 0.0
      %2894 = vmatmul.mubr.f32.gmra.mrb[0].mxu0 %v2439
      %v2895 = vpop.f32.mrb[0].mxu0
      %v2896 = vadd.f32 0.0, %v2895
      %v2897 = vpop.f32.mrb[0].mxu0
      %2898 = vmatprep.mubr.f32.mxu0 0.0
      %2899 = vmatmul.mubr.f32.gmra.mrb[0].mxu0 %v2440
      %v2900 = vpop.f32.mrb[0].mxu0
      %v2901 = vadd.f32 0.0, %v2900
      %v2902 = vpop.f32.mrb[0].mxu0
      %2903 = vmatprep.mubr.f32.mxu0 0.0
      %2904 = vmatmul.mubr.f32.gmra.mrb[0].mxu0 %v2441
      %v2905 = vpop.f32.mrb[0].mxu0
      %v2906 = vadd.f32 0.0, %v2905
      %v2907 = vpop.f32.mrb[0].mxu0
      %2908 = vmatprep.mubr.f32.mxu0 0.0
      %2909 = vmatmul.mubr.f32.gmra.mrb[0].mxu0 %v2442
      %v2910 = vpop.f32.mrb[0].mxu0
      %v2911 = vadd.f32 0.0, %v2910
      %v2912 = vpop.f32.mrb[0].mxu0
      %2913 = vmatprep.mubr.f32.mxu0 0.0
      %2914 = vmatmul.mubr.f32.gmra.mrb[0].mxu0 %v2443
      %v2915 = vpop.f32.mrb[0].mxu0
      %v2916 = vadd.f32 0.0, %v2915
      %v2917 = vpop.f32.mrb[0].mxu0
      %2918 = vmatprep.mubr.f32.mxu0 0.0
      %2919 = vmatmul.mubr.f32.gmra.mrb[0].mxu0 %v2444
      %v2920 = vpop.f32.mrb[0].mxu0
      %v2921 = vadd.f32 0.0, %v2920
      %v2922 = vpop.f32.mrb[0].mxu0
      %2923 = vmatprep.mubr.f32.mxu0 0.0
      %2924 = vmatmul.mubr.f32.gmra.mrb[0].mxu0 %v2445
      %v2925 = vpop.f32.mrb[0].mxu0
      %v2926 = vadd.f32 0.0, %v2925
      %v2927 = vpop.f32.mrb[0].mxu0
      %2928 = vmatprep.mubr.f32.mxu0 0.0
      %2929 = vmatmul.mubr.f32.gmra.mrb[0].mxu0 %v2446
      %v2930 = vpop.f32.mrb[0].mxu0
      %v2931 = vadd.f32 0.0, %v2930
      %v2932 = vpop.f32.mrb[0].mxu0
      %2933 = vmatprep.mubr.f32.mxu0 0.0
      %2934 = vmatmul.mubr.f32.gmra.mrb[0].mxu0 %v2447
      %v2935 = vpop.f32.mrb[0].mxu0
      %v2936 = vadd.f32 0.0, %v2935
      %v2937 = vpop.f32.mrb[0].mxu0
      %2938 = vmatprep.mubr.f32.mxu0 0.0
      %2939 = vmatmul.mubr.f32.gmra.mrb[0].mxu0 %v2448
      %v2940 = vpop.f32.mrb[0].mxu0
      %v2941 = vadd.f32 0.0, %v2940
      %v2942 = vpop.f32.mrb[0].mxu0
      %2943 = vmatprep.mubr.f32.mxu0 0.0
      %2944 = vmatmul.mubr.f32.gmra.mrb[0].mxu0 %v2449
      %v2945 = vpop.f32.mrb[0].mxu0
      %v2946 = vadd.f32 0.0, %v2945
      %v2947 = vpop.f32.mrb[0].mxu0
      %2948 = vmatprep.mubr.f32.mxu0 0.0
      %2949 = vmatmul.mubr.f32.gmra.mrb[0].mxu0 %v2450
      %v2950 = vpop.f32.mrb[0].mxu0
      %v2951 = vadd.f32 0.0, %v2950
      %v2952 = vpop.f32.mrb[0].mxu0
      %2953 = vmatprep.mubr.f32.mxu0 0.0
      %2954 = vmatmul.mubr.f32.gmra.mrb[0].mxu0 %v2451
      %v2955 = vpop.f32.mrb[0].mxu0
      %v2956 = vadd.f32 0.0, %v2955
      %v2957 = vpop.f32.mrb[0].mxu0
      %2958 = vmatprep.mubr.f32.mxu0 0.0
      %2959 = vmatmul.mubr.f32.gmra.mrb[0].mxu0 %v2452
      %v2960 = vpop.f32.mrb[0].mxu0
      %v2961 = vadd.f32 0.0, %v2960
      %v2962 = vpop.f32.mrb[0].mxu0
      %2963 = vmatprep.mubr.f32.mxu0 0.0
      %2964 = vmatmul.mubr.f32.gmra.mrb[0].mxu0 %v2453
      %v2965 = vpop.f32.mrb[0].mxu0
      %v2966 = vadd.f32 0.0, %v2965
      %v2967 = vpop.f32.mrb[0].mxu0
      %2968 = vmatprep.mubr.f32.mxu0 0.0
      %2969 = vmatmul.mubr.f32.gmra.mrb[0].mxu0 %v2454
      %v2970 = vpop.f32.mrb[0].mxu0
      %v2971 = vadd.f32 0.0, %v2970
      %v2972 = vpop.f32.mrb[0].mxu0
      %2973 = vmatprep.mubr.f32.mxu0 0.0
      %2974 = vmatmul.mubr.f32.gmra.mrb[0].mxu0 %v2455
      %v2975 = vpop.f32.mrb[0].mxu0
      %v2976 = vadd.f32 0.0, %v2975
      %v2977 = vpop.f32.mrb[0].mxu0
      %2978 = vmatprep.mubr.f32.mxu0 0.0
      %2979 = vmatmul.mubr.f32.gmra.mrb[0].mxu0 %v2456
      %v2980 = vpop.f32.mrb[0].mxu0
      %v2981 = vadd.f32 0.0, %v2980
      %v2982 = vpop.f32.mrb[0].mxu0
      %2983 = vmatprep.mubr.f32.mxu0 0.0
      %2984 = vmatmul.mubr.f32.gmra.mrb[0].mxu0 %v2457
      %v2985 = vpop.f32.mrb[0].mxu0
      %v2986 = vadd.f32 0.0, %v2985
      %v2987 = vpop.f32.mrb[0].mxu0
      %2988 = vmatprep.mubr.f32.mxu0 0.0
      %2989 = vmatmul.mubr.f32.gmra.mrb[0].mxu0 %v2458
      %v2990 = vpop.f32.mrb[0].mxu0
      %v2991 = vadd.f32 0.0, %v2990
      %v2992 = vpop.f32.mrb[0].mxu0
      %2993 = vmatprep.mubr.f32.mxu0 0.0
      %2994 = vmatmul.mubr.f32.gmra.mrb[0].mxu0 %v2459
      %v2995 = vpop.f32.mrb[0].mxu0
      %v2996 = vadd.f32 0.0, %v2995
      %v2997 = vpop.f32.mrb[0].mxu0
      %2998 = vmatprep.mubr.f32.mxu0 0.0
      %2999 = vmatmul.mubr.f32.gmra.mrb[0].mxu0 %v2460
      %v3000 = vpop.f32.mrb[0].mxu0
      %v3001 = vadd.f32 0.0, %v3000
      %v3002 = vpop.f32.mrb[0].mxu0
      %3003 = vmatprep.mubr.f32.mxu0 0.0
      %3004 = vmatmul.mubr.f32.gmra.mrb[0].mxu0 %v2461
      %v3005 = vpop.f32.mrb[0].mxu0
      %v3006 = vadd.f32 0.0, %v3005
      %v3007 = vpop.f32.mrb[0].mxu0
      %3008 = vmatprep.mubr.f32.mxu0 0.0
      %3009 = vmatmul.mubr.f32.gmra.mrb[0].mxu0 %v2462
      %v3010 = vpop.f32.mrb[0].mxu0
      %v3011 = vadd.f32 0.0, %v3010
      %v3012 = vpop.f32.mrb[0].mxu0
      %3013 = vmatprep.mubr.f32.mxu0 0.0
      %3014 = vmatmul.mubr.f32.gmra.mrb[0].mxu0 %v2463
      %v3015 = vpop.f32.mrb[0].mxu0
      %v3016 = vadd.f32 0.0, %v3015
      %v3017 = vpop.f32.mrb[0].mxu0
      %3018 = vmatprep.mubr.f32.mxu0 0.0
      %3019 = vmatmul.mubr.f32.gmra.mrb[0].mxu0 %v2464
      %v3020 = vpop.f32.mrb[0].mxu0
      %v3021 = vadd.f32 0.0, %v3020
      %v3022 = vpop.f32.mrb[0].mxu0
      %3023 = vmatprep.mubr.f32.mxu0 0.0
      %3024 = vmatmul.mubr.f32.gmra.mrb[0].mxu0 %v2465
      %v3025 = vpop.f32.mrb[0].mxu0
      %v3026 = vadd.f32 0.0, %v3025
      %v3027 = vpop.f32.mrb[0].mxu0
      %3028 = vmatprep.mubr.f32.mxu0 0.0
      %3029 = vmatmul.mubr.f32.gmra.mrb[0].mxu0 %v2466
      %v3030 = vpop.f32.mrb[0].mxu0
      %v3031 = vadd.f32 0.0, %v3030
      %v3032 = vpop.f32.mrb[0].mxu0
      %3033 = vmatprep.mubr.f32.mxu0 0.0
      %3034 = vmatmul.mubr.f32.gmra.mrb[0].mxu0 %v2467
      %v3035 = vpop.f32.mrb[0].mxu0
      %v3036 = vpop.f32.mrb[0].mxu0
      %3037 = vmatprep.mubr.f32.mxu0 0.0
      %3038 = vmatmul.mubr.f32.gmra.mrb[0].mxu0 %v2468
      %v3039 = vpop.f32.mrb[0].mxu0
      %v3040 = vpop.f32.mrb[0].mxu0
      %3041 = vmatprep.mubr.f32.mxu0 0.0
      %3042 = vmatmul.mubr.f32.gmra.mrb[0].mxu0 %v2469
      %v3043 = vpop.f32.mrb[0].mxu0
      %v3044 = vpop.f32.mrb[0].mxu0
      %3045 = vmatprep.mubr.f32.mxu0 0.0
      %3046 = vmatmul.mubr.f32.gmra.mrb[0].mxu0 %v2470
      %v3047 = vpop.f32.mrb[0].mxu0
      %v3048 = vpop.f32.mrb[0].mxu0
      %3049 = vmatprep.mubr.f32.mxu0 0.0
      %3050 = vmatmul.mubr.f32.gmra.mrb[0].mxu0 %v2471
      %v3051 = vpop.f32.mrb[0].mxu0
      %v3052 = vpop.f32.mrb[0].mxu0
      %3053 = vmatprep.mubr.f32.mxu0 0.0
      %3054 = vmatmul.mubr.f32.gmra.mrb[0].mxu0 %v2472
      %v3055 = vpop.f32.mrb[0].mxu0
      %v3056 = vpop.f32.mrb[0].mxu0
      %3057 = vmatprep.mubr.f32.mxu0 0.0
      %3058 = vmatmul.mubr.f32.gmra.mrb[0].mxu0 %v2473
      %v3059 = vpop.f32.mrb[0].mxu0
      %v3060 = vpop.f32.mrb[0].mxu0
      %3061 = vmatprep.mubr.f32.mxu0 0.0
      %3062 = vmatmul.mubr.f32.gmra.mrb[0].mxu0 %v2474
      %v3063 = vpop.f32.mrb[0].mxu0
      %v3064 = vpop.f32.mrb[0].mxu0
      %3065 = vmatprep.mubr.f32.mxu0 0.0
      %3066 = vmatmul.mubr.f32.gmra.mrb[0].mxu0 %v2475
      %v3067 = vpop.f32.mrb[0].mxu0
      %v3068 = vpop.f32.mrb[0].mxu0
      %3069 = vmatprep.mubr.f32.mxu0 0.0
      %3070 = vmatmul.mubr.f32.gmra.mrb[0].mxu0 %v2476
      %v3071 = vpop.f32.mrb[0].mxu0
      %v3072 = vpop.f32.mrb[0].mxu0
      %3073 = vmatprep.mubr.f32.mxu0 0.0
      %3074 = vmatmul.mubr.f32.gmra.mrb[0].mxu0 %v2477
      %v3075 = vpop.f32.mrb[0].mxu0
      %v3076 = vpop.f32.mrb[0].mxu0
      %3077 = vmatprep.mubr.f32.mxu0 0.0
      %3078 = vmatmul.mubr.f32.gmra.mrb[0].mxu0 %v2478
      %v3079 = vpop.f32.mrb[0].mxu0
      %v3080 = vpop.f32.mrb[0].mxu0
      %3081 = vmatprep.mubr.f32.mxu0 0.0
      %3082 = vmatmul.mubr.f32.gmra.mrb[0].mxu0 %v2479
      %v3083 = vpop.f32.mrb[0].mxu0
      %v3084 = vpop.f32.mrb[0].mxu0
      %3085 = vmatprep.mubr.f32.mxu0 0.0
      %3086 = vmatmul.mubr.f32.gmra.mrb[0].mxu0 %v2480
      %v3087 = vpop.f32.mrb[0].mxu0
      %v3088 = vpop.f32.mrb[0].mxu0
      %3089 = vmatprep.mubr.f32.mxu0 0.0
      %3090 = vmatmul.mubr.f32.gmra.mrb[0].mxu0 %v2481
      %v3091 = vpop.f32.mrb[0].mxu0
      %v3092 = vpop.f32.mrb[0].mxu0
      %3093 = vdwg.mxu0
      %v3094 = vadd.f32 %v2319, %v2646
      %v3095 = vadd.f32 %v2320, %v2651
      %v3096 = vadd.f32 %v2321, %v2656
      %v3097 = vadd.f32 %v2322, %v2661
      %v3098 = vadd.f32 %v2323, %v2666
      %v3099 = vadd.f32 %v2324, %v2671
      %v3100 = vadd.f32 %v2325, %v2676
      %v3101 = vadd.f32 %v2326, %v2681
      %v3102 = vadd.f32 %v2327, %v2686
      %v3103 = vadd.f32 %v2328, %v2691
      %v3104 = vadd.f32 %v2329, %v2696
      %v3105 = vadd.f32 %v2330, %v2701
      %v3106 = vadd.f32 %v2331, %v2706
      %v3107 = vadd.f32 %v2332, %v2711
      %v3108 = vadd.f32 %v2333, %v2716
      %v3109 = vadd.f32 %v2334, %v2721
      %v3110 = vadd.f32 %v2335, %v2726
      %v3111 = vadd.f32 %v2336, %v2731
      %v3112 = vadd.f32 %v2337, %v2736
      %v3113 = vadd.f32 %v2338, %v2741
      %v3114 = vadd.f32 %v2339, %v2746
      %v3115 = vadd.f32 %v2340, %v2751
      %v3116 = vadd.f32 %v2341, %v2756
      %v3117 = vadd.f32 %v2342, %v2761
      %v3118 = vadd.f32 %v2343, %v2766
      %v3119 = vadd.f32 %v2344, %v2771
      %v3120 = vadd.f32 %v2345, %v2776
      %v3121 = vadd.f32 %v2346, %v2781
      %v3122 = vadd.f32 %v2347, %v2786
      %v3123 = vadd.f32 %v2348, %v2791
      %v3124 = vadd.f32 %v2349, %v2796
      %v3125 = vadd.f32 %v2350, %v2801
      %v3126 = vadd.f32 %v2351, %v2806
      %v3127 = vadd.f32 %v2352, %v2871
      %v3128 = vadd.f32 %v2353, %v2876
      %v3129 = vadd.f32 %v2354, %v2881
      %v3130 = vadd.f32 %v2355, %v2886
      %v3131 = vadd.f32 %v2356, %v2891
      %v3132 = vadd.f32 %v2357, %v2896
      %v3133 = vadd.f32 %v2358, %v2901
      %v3134 = vadd.f32 %v2359, %v2906
      %v3135 = vadd.f32 %v2360, %v2911
      %v3136 = vadd.f32 %v2361, %v2916
      %v3137 = vadd.f32 %v2362, %v2921
      %v3138 = vadd.f32 %v2363, %v2926
      %v3139 = vadd.f32 %v2364, %v2931
      %v3140 = vadd.f32 %v2365, %v2936
      %v3141 = vadd.f32 %v2366, %v2941
      %v3142 = vadd.f32 %v2367, %v2946
      %v3143 = vadd.f32 %v2368, %v2951
      %v3144 = vadd.f32 %v2369, %v2956
      %v3145 = vadd.f32 %v2370, %v2961
      %v3146 = vadd.f32 %v2371, %v2966
      %v3147 = vadd.f32 %v2372, %v2971
      %v3148 = vadd.f32 %v2373, %v2976
      %v3149 = vadd.f32 %v2374, %v2981
      %v3150 = vadd.f32 %v2375, %v2986
      %v3151 = vadd.f32 %v2376, %v2991
      %v3152 = vadd.f32 %v2377, %v2996
      %v3153 = vadd.f32 %v2378, %v3001
      %v3154 = vadd.f32 %v2379, %v3006
      %v3155 = vadd.f32 %v2380, %v3011
      %v3156 = vadd.f32 %v2381, %v3016
      %v3157 = vadd.f32 %v2382, %v3021
      %v3158 = vadd.f32 %v2383, %v3026
      %v3159 = vadd.f32 %v2384, %v3031
      %v3160 = vmul.f32 %v3094, %v3094
      %v3161 = vmul.f32 %v3095, %v3095
      %v3162 = vmul.f32 %v3096, %v3096
      %v3163 = vmul.f32 %v3097, %v3097
      %v3164 = vmul.f32 %v3098, %v3098
      %v3165 = vmul.f32 %v3099, %v3099
      %v3166 = vmul.f32 %v3100, %v3100
      %v3167 = vmul.f32 %v3101, %v3101
      %v3168 = vmul.f32 %v3102, %v3102
      %v3169 = vmul.f32 %v3103, %v3103
      %v3170 = vmul.f32 %v3104, %v3104
      %v3171 = vmul.f32 %v3105, %v3105
      %v3172 = vmul.f32 %v3106, %v3106
      %v3173 = vmul.f32 %v3107, %v3107
      %v3174 = vmul.f32 %v3108, %v3108
      %v3175 = vmul.f32 %v3109, %v3109
      %v3176 = vmul.f32 %v3110, %v3110
      %v3177 = vmul.f32 %v3111, %v3111
      %v3178 = vmul.f32 %v3112, %v3112
      %v3179 = vmul.f32 %v3113, %v3113
      %v3180 = vmul.f32 %v3114, %v3114
      %v3181 = vmul.f32 %v3115, %v3115
      %v3182 = vmul.f32 %v3116, %v3116
      %v3183 = vmul.f32 %v3117, %v3117
      %v3184 = vmul.f32 %v3118, %v3118
      %v3185 = vmul.f32 %v3119, %v3119
      %v3186 = vmul.f32 %v3120, %v3120
      %v3187 = vmul.f32 %v3121, %v3121
      %v3188 = vmul.f32 %v3122, %v3122
      %v3189 = vmul.f32 %v3123, %v3123
      %v3190 = vmul.f32 %v3124, %v3124
      %v3191 = vmul.f32 %v3125, %v3125
      %v3192 = vmul.f32 %v3126, %v3126
      %v3193 = vmul.f32 %v3127, %v3127
      %v3194 = vmul.f32 %v3128, %v3128
      %v3195 = vmul.f32 %v3129, %v3129
      %v3196 = vmul.f32 %v3130, %v3130
      %v3197 = vmul.f32 %v3131, %v3131
      %v3198 = vmul.f32 %v3132, %v3132
      %v3199 = vmul.f32 %v3133, %v3133
      %v3200 = vmul.f32 %v3134, %v3134
      %v3201 = vmul.f32 %v3135, %v3135
      %v3202 = vmul.f32 %v3136, %v3136
      %v3203 = vmul.f32 %v3137, %v3137
      %v3204 = vmul.f32 %v3138, %v3138
      %v3205 = vmul.f32 %v3139, %v3139
      %v3206 = vmul.f32 %v3140, %v3140
      %v3207 = vmul.f32 %v3141, %v3141
      %v3208 = vmul.f32 %v3142, %v3142
      %v3209 = vmul.f32 %v3143, %v3143
      %v3210 = vmul.f32 %v3144, %v3144
      %v3211 = vmul.f32 %v3145, %v3145
      %v3212 = vmul.f32 %v3146, %v3146
      %v3213 = vmul.f32 %v3147, %v3147
      %v3214 = vmul.f32 %v3148, %v3148
      %v3215 = vmul.f32 %v3149, %v3149
      %v3216 = vmul.f32 %v3150, %v3150
      %v3217 = vmul.f32 %v3151, %v3151
      %v3218 = vmul.f32 %v3152, %v3152
      %v3219 = vmul.f32 %v3153, %v3153
      %v3220 = vmul.f32 %v3154, %v3154
      %v3221 = vmul.f32 %v3155, %v3155
      %v3222 = vmul.f32 %v3156, %v3156
      %v3223 = vmul.f32 %v3157, %v3157
      %v3224 = vmul.f32 %v3158, %v3158
      %v3225 = vmul.f32 %v3159, %v3159
      %v3226 = vadd.f32 %v3160, %v3193
      %v3227 = vadd.f32 %v3161, %v3194
      %v3228 = vadd.f32 %v3162, %v3195
      %v3229 = vadd.f32 %v3163, %v3196
      %v3230 = vadd.f32 %v3164, %v3197
      %v3231 = vadd.f32 %v3165, %v3198
      %v3232 = vadd.f32 %v3166, %v3199
      %v3233 = vadd.f32 %v3167, %v3200
      %v3234 = vadd.f32 %v3168, %v3201
      %v3235 = vadd.f32 %v3169, %v3202
      %v3236 = vadd.f32 %v3170, %v3203
      %v3237 = vadd.f32 %v3171, %v3204
      %v3238 = vadd.f32 %v3172, %v3205
      %v3239 = vadd.f32 %v3173, %v3206
      %v3240 = vadd.f32 %v3174, %v3207
      %v3241 = vadd.f32 %v3175, %v3208
      %v3242 = vadd.f32 %v3176, %v3209
      %v3243 = vadd.f32 %v3177, %v3210
      %v3244 = vadd.f32 %v3178, %v3211
      %v3245 = vadd.f32 %v3179, %v3212
      %v3246 = vadd.f32 %v3180, %v3213
      %v3247 = vadd.f32 %v3181, %v3214
      %v3248 = vadd.f32 %v3182, %v3215
      %v3249 = vadd.f32 %v3183, %v3216
      %v3250 = vadd.f32 %v3184, %v3217
      %v3251 = vadd.f32 %v3185, %v3218
      %v3252 = vadd.f32 %v3186, %v3219
      %v3253 = vadd.f32 %v3187, %v3220
      %v3254 = vadd.f32 %v3188, %v3221
      %v3255 = vadd.f32 %v3189, %v3222
      %v3256 = vadd.f32 %v3190, %v3223
      %v3257 = vadd.f32 %v3191, %v3224
      %v3258 = vadd.f32 %v3192, %v3225
      %v3259 = vmax.f32 %v3226, 1.1920929e-07
      %v3260 = vmax.f32 %v3227, 1.1920929e-07
      %v3261 = vmax.f32 %v3228, 1.1920929e-07
      %v3262 = vmax.f32 %v3229, 1.1920929e-07
      %v3263 = vmax.f32 %v3230, 1.1920929e-07
      %v3264 = vmax.f32 %v3231, 1.1920929e-07
      %v3265 = vmax.f32 %v3232, 1.1920929e-07
      %v3266 = vmax.f32 %v3233, 1.1920929e-07
      %v3267 = vmax.f32 %v3234, 1.1920929e-07
      %v3268 = vmax.f32 %v3235, 1.1920929e-07
      %v3269 = vmax.f32 %v3236, 1.1920929e-07
      %v3270 = vmax.f32 %v3237, 1.1920929e-07
      %v3271 = vmax.f32 %v3238, 1.1920929e-07
      %v3272 = vmax.f32 %v3239, 1.1920929e-07
      %v3273 = vmax.f32 %v3240, 1.1920929e-07
      %v3274 = vmax.f32 %v3241, 1.1920929e-07
      %v3275 = vmax.f32 %v3242, 1.1920929e-07
      %v3276 = vmax.f32 %v3243, 1.1920929e-07
      %v3277 = vmax.f32 %v3244, 1.1920929e-07
      %v3278 = vmax.f32 %v3245, 1.1920929e-07
      %v3279 = vmax.f32 %v3246, 1.1920929e-07
      %v3280 = vmax.f32 %v3247, 1.1920929e-07
      %v3281 = vmax.f32 %v3248, 1.1920929e-07
      %v3282 = vmax.f32 %v3249, 1.1920929e-07
      %v3283 = vmax.f32 %v3250, 1.1920929e-07
      %v3284 = vmax.f32 %v3251, 1.1920929e-07
      %v3285 = vmax.f32 %v3252, 1.1920929e-07
      %v3286 = vmax.f32 %v3253, 1.1920929e-07
      %v3287 = vmax.f32 %v3254, 1.1920929e-07
      %v3288 = vmax.f32 %v3255, 1.1920929e-07
      %v3289 = vmax.f32 %v3256, 1.1920929e-07
      %v3290 = vmax.f32 %v3257, 1.1920929e-07
      %v3291 = vmax.f32 %v3258, 1.1920929e-07
      %v3292 = vrsqrt.pop %v3259
      %v3293 = vmul.f32 %v3259, %v3292
      %vm3294 = vcmp.eq.f32.partialorder %v3259, inf
      %v3295 = vsel %vm3294, %v3259, %v3293
      %vm3296 = vcmp.eq.f32.partialorder %v3259, 0.0
      %v3297 = vand.u32 %v3259, 2147483648
      %v3298 = vsel %vm3296, %v3297, %v3295
      %v3299 = vrsqrt.pop %v3260
      %v3300 = vmul.f32 %v3260, %v3299
      %vm3301 = vcmp.eq.f32.partialorder %v3260, inf
      %v3302 = vsel %vm3301, %v3260, %v3300
      %vm3303 = vcmp.eq.f32.partialorder %v3260, 0.0
      %v3304 = vand.u32 %v3260, 2147483648
      %v3305 = vsel %vm3303, %v3304, %v3302
      %v3306 = vrsqrt.pop %v3261
      %v3307 = vmul.f32 %v3261, %v3306
      %vm3308 = vcmp.eq.f32.partialorder %v3261, inf
      %v3309 = vsel %vm3308, %v3261, %v3307
      %vm3310 = vcmp.eq.f32.partialorder %v3261, 0.0
      %v3311 = vand.u32 %v3261, 2147483648
      %v3312 = vsel %vm3310, %v3311, %v3309
      %v3313 = vrsqrt.pop %v3262
      %v3314 = vmul.f32 %v3262, %v3313
      %vm3315 = vcmp.eq.f32.partialorder %v3262, inf
      %v3316 = vsel %vm3315, %v3262, %v3314
      %vm3317 = vcmp.eq.f32.partialorder %v3262, 0.0
      %v3318 = vand.u32 %v3262, 2147483648
      %v3319 = vsel %vm3317, %v3318, %v3316
      %v3320 = vrsqrt.pop %v3263
      %v3321 = vmul.f32 %v3263, %v3320
      %vm3322 = vcmp.eq.f32.partialorder %v3263, inf
      %v3323 = vsel %vm3322, %v3263, %v3321
      %vm3324 = vcmp.eq.f32.partialorder %v3263, 0.0
      %v3325 = vand.u32 %v3263, 2147483648
      %v3326 = vsel %vm3324, %v3325, %v3323
      %v3327 = vrsqrt.pop %v3264
      %v3328 = vmul.f32 %v3264, %v3327
      %vm3329 = vcmp.eq.f32.partialorder %v3264, inf
      %v3330 = vsel %vm3329, %v3264, %v3328
      %vm3331 = vcmp.eq.f32.partialorder %v3264, 0.0
      %v3332 = vand.u32 %v3264, 2147483648
      %v3333 = vsel %vm3331, %v3332, %v3330
      %v3334 = vrsqrt.pop %v3265
      %v3335 = vmul.f32 %v3265, %v3334
      %vm3336 = vcmp.eq.f32.partialorder %v3265, inf
      %v3337 = vsel %vm3336, %v3265, %v3335
      %vm3338 = vcmp.eq.f32.partialorder %v3265, 0.0
      %v3339 = vand.u32 %v3265, 2147483648
      %v3340 = vsel %vm3338, %v3339, %v3337
      %v3341 = vrsqrt.pop %v3266
      %v3342 = vmul.f32 %v3266, %v3341
      %vm3343 = vcmp.eq.f32.partialorder %v3266, inf
      %v3344 = vsel %vm3343, %v3266, %v3342
      %vm3345 = vcmp.eq.f32.partialorder %v3266, 0.0
      %v3346 = vand.u32 %v3266, 2147483648
      %v3347 = vsel %vm3345, %v3346, %v3344
      %v3348 = vrsqrt.pop %v3267
      %v3349 = vmul.f32 %v3267, %v3348
      %vm3350 = vcmp.eq.f32.partialorder %v3267, inf
      %v3351 = vsel %vm3350, %v3267, %v3349
      %vm3352 = vcmp.eq.f32.partialorder %v3267, 0.0
      %v3353 = vand.u32 %v3267, 2147483648
      %v3354 = vsel %vm3352, %v3353, %v3351
      %v3355 = vrsqrt.pop %v3268
      %v3356 = vmul.f32 %v3268, %v3355
      %vm3357 = vcmp.eq.f32.partialorder %v3268, inf
      %v3358 = vsel %vm3357, %v3268, %v3356
      %vm3359 = vcmp.eq.f32.partialorder %v3268, 0.0
      %v3360 = vand.u32 %v3268, 2147483648
      %v3361 = vsel %vm3359, %v3360, %v3358
      %v3362 = vrsqrt.pop %v3269
      %v3363 = vmul.f32 %v3269, %v3362
      %vm3364 = vcmp.eq.f32.partialorder %v3269, inf
      %v3365 = vsel %vm3364, %v3269, %v3363
      %vm3366 = vcmp.eq.f32.partialorder %v3269, 0.0
      %v3367 = vand.u32 %v3269, 2147483648
      %v3368 = vsel %vm3366, %v3367, %v3365
      %v3369 = vrsqrt.pop %v3270
      %v3370 = vmul.f32 %v3270, %v3369
      %vm3371 = vcmp.eq.f32.partialorder %v3270, inf
      %v3372 = vsel %vm3371, %v3270, %v3370
      %vm3373 = vcmp.eq.f32.partialorder %v3270, 0.0
      %v3374 = vand.u32 %v3270, 2147483648
      %v3375 = vsel %vm3373, %v3374, %v3372
      %v3376 = vrsqrt.pop %v3271
      %v3377 = vmul.f32 %v3271, %v3376
      %vm3378 = vcmp.eq.f32.partialorder %v3271, inf
      %v3379 = vsel %vm3378, %v3271, %v3377
      %vm3380 = vcmp.eq.f32.partialorder %v3271, 0.0
      %v3381 = vand.u32 %v3271, 2147483648
      %v3382 = vsel %vm3380, %v3381, %v3379
      %v3383 = vrsqrt.pop %v3272
      %v3384 = vmul.f32 %v3272, %v3383
      %vm3385 = vcmp.eq.f32.partialorder %v3272, inf
      %v3386 = vsel %vm3385, %v3272, %v3384
      %vm3387 = vcmp.eq.f32.partialorder %v3272, 0.0
      %v3388 = vand.u32 %v3272, 2147483648
      %v3389 = vsel %vm3387, %v3388, %v3386
      %v3390 = vrsqrt.pop %v3273
      %v3391 = vmul.f32 %v3273, %v3390
      %vm3392 = vcmp.eq.f32.partialorder %v3273, inf
      %v3393 = vsel %vm3392, %v3273, %v3391
      %vm3394 = vcmp.eq.f32.partialorder %v3273, 0.0
      %v3395 = vand.u32 %v3273, 2147483648
      %v3396 = vsel %vm3394, %v3395, %v3393
      %v3397 = vrsqrt.pop %v3274
      %v3398 = vmul.f32 %v3274, %v3397
      %vm3399 = vcmp.eq.f32.partialorder %v3274, inf
      %v3400 = vsel %vm3399, %v3274, %v3398
      %vm3401 = vcmp.eq.f32.partialorder %v3274, 0.0
      %v3402 = vand.u32 %v3274, 2147483648
      %v3403 = vsel %vm3401, %v3402, %v3400
      %v3404 = vrsqrt.pop %v3275
      %v3405 = vmul.f32 %v3275, %v3404
      %vm3406 = vcmp.eq.f32.partialorder %v3275, inf
      %v3407 = vsel %vm3406, %v3275, %v3405
      %vm3408 = vcmp.eq.f32.partialorder %v3275, 0.0
      %v3409 = vand.u32 %v3275, 2147483648
      %v3410 = vsel %vm3408, %v3409, %v3407
      %v3411 = vrsqrt.pop %v3276
      %v3412 = vmul.f32 %v3276, %v3411
      %vm3413 = vcmp.eq.f32.partialorder %v3276, inf
      %v3414 = vsel %vm3413, %v3276, %v3412
      %vm3415 = vcmp.eq.f32.partialorder %v3276, 0.0
      %v3416 = vand.u32 %v3276, 2147483648
      %v3417 = vsel %vm3415, %v3416, %v3414
      %v3418 = vrsqrt.pop %v3277
      %v3419 = vmul.f32 %v3277, %v3418
      %vm3420 = vcmp.eq.f32.partialorder %v3277, inf
      %v3421 = vsel %vm3420, %v3277, %v3419
      %vm3422 = vcmp.eq.f32.partialorder %v3277, 0.0
      %v3423 = vand.u32 %v3277, 2147483648
      %v3424 = vsel %vm3422, %v3423, %v3421
      %v3425 = vrsqrt.pop %v3278
      %v3426 = vmul.f32 %v3278, %v3425
      %vm3427 = vcmp.eq.f32.partialorder %v3278, inf
      %v3428 = vsel %vm3427, %v3278, %v3426
      %vm3429 = vcmp.eq.f32.partialorder %v3278, 0.0
      %v3430 = vand.u32 %v3278, 2147483648
      %v3431 = vsel %vm3429, %v3430, %v3428
      %v3432 = vrsqrt.pop %v3279
      %v3433 = vmul.f32 %v3279, %v3432
      %vm3434 = vcmp.eq.f32.partialorder %v3279, inf
      %v3435 = vsel %vm3434, %v3279, %v3433
      %vm3436 = vcmp.eq.f32.partialorder %v3279, 0.0
      %v3437 = vand.u32 %v3279, 2147483648
      %v3438 = vsel %vm3436, %v3437, %v3435
      %v3439 = vrsqrt.pop %v3280
      %v3440 = vmul.f32 %v3280, %v3439
      %vm3441 = vcmp.eq.f32.partialorder %v3280, inf
      %v3442 = vsel %vm3441, %v3280, %v3440
      %vm3443 = vcmp.eq.f32.partialorder %v3280, 0.0
      %v3444 = vand.u32 %v3280, 2147483648
      %v3445 = vsel %vm3443, %v3444, %v3442
      %v3446 = vrsqrt.pop %v3281
      %v3447 = vmul.f32 %v3281, %v3446
      %vm3448 = vcmp.eq.f32.partialorder %v3281, inf
      %v3449 = vsel %vm3448, %v3281, %v3447
      %vm3450 = vcmp.eq.f32.partialorder %v3281, 0.0
      %v3451 = vand.u32 %v3281, 2147483648
      %v3452 = vsel %vm3450, %v3451, %v3449
      %v3453 = vrsqrt.pop %v3282
      %v3454 = vmul.f32 %v3282, %v3453
      %vm3455 = vcmp.eq.f32.partialorder %v3282, inf
      %v3456 = vsel %vm3455, %v3282, %v3454
      %vm3457 = vcmp.eq.f32.partialorder %v3282, 0.0
      %v3458 = vand.u32 %v3282, 2147483648
      %v3459 = vsel %vm3457, %v3458, %v3456
      %v3460 = vrsqrt.pop %v3283
      %v3461 = vmul.f32 %v3283, %v3460
      %vm3462 = vcmp.eq.f32.partialorder %v3283, inf
      %v3463 = vsel %vm3462, %v3283, %v3461
      %vm3464 = vcmp.eq.f32.partialorder %v3283, 0.0
      %v3465 = vand.u32 %v3283, 2147483648
      %v3466 = vsel %vm3464, %v3465, %v3463
      %v3467 = vrsqrt.pop %v3284
      %v3468 = vmul.f32 %v3284, %v3467
      %vm3469 = vcmp.eq.f32.partialorder %v3284, inf
      %v3470 = vsel %vm3469, %v3284, %v3468
      %vm3471 = vcmp.eq.f32.partialorder %v3284, 0.0
      %v3472 = vand.u32 %v3284, 2147483648
      %v3473 = vsel %vm3471, %v3472, %v3470
      %v3474 = vrsqrt.pop %v3285
      %v3475 = vmul.f32 %v3285, %v3474
      %vm3476 = vcmp.eq.f32.partialorder %v3285, inf
      %v3477 = vsel %vm3476, %v3285, %v3475
      %vm3478 = vcmp.eq.f32.partialorder %v3285, 0.0
      %v3479 = vand.u32 %v3285, 2147483648
      %v3480 = vsel %vm3478, %v3479, %v3477
      %v3481 = vrsqrt.pop %v3286
      %v3482 = vmul.f32 %v3286, %v3481
      %vm3483 = vcmp.eq.f32.partialorder %v3286, inf
      %v3484 = vsel %vm3483, %v3286, %v3482
      %vm3485 = vcmp.eq.f32.partialorder %v3286, 0.0
      %v3486 = vand.u32 %v3286, 2147483648
      %v3487 = vsel %vm3485, %v3486, %v3484
      %v3488 = vrsqrt.pop %v3287
      %v3489 = vmul.f32 %v3287, %v3488
      %vm3490 = vcmp.eq.f32.partialorder %v3287, inf
      %v3491 = vsel %vm3490, %v3287, %v3489
      %vm3492 = vcmp.eq.f32.partialorder %v3287, 0.0
      %v3493 = vand.u32 %v3287, 2147483648
      %v3494 = vsel %vm3492, %v3493, %v3491
      %v3495 = vrsqrt.pop %v3288
      %v3496 = vmul.f32 %v3288, %v3495
      %vm3497 = vcmp.eq.f32.partialorder %v3288, inf
      %v3498 = vsel %vm3497, %v3288, %v3496
      %vm3499 = vcmp.eq.f32.partialorder %v3288, 0.0
      %v3500 = vand.u32 %v3288, 2147483648
      %v3501 = vsel %vm3499, %v3500, %v3498
      %v3502 = vrsqrt.pop %v3289
      %v3503 = vmul.f32 %v3289, %v3502
      %vm3504 = vcmp.eq.f32.partialorder %v3289, inf
      %v3505 = vsel %vm3504, %v3289, %v3503
      %vm3506 = vcmp.eq.f32.partialorder %v3289, 0.0
      %v3507 = vand.u32 %v3289, 2147483648
      %v3508 = vsel %vm3506, %v3507, %v3505
      %v3509 = vrsqrt.pop %v3290
      %v3510 = vmul.f32 %v3290, %v3509
      %vm3511 = vcmp.eq.f32.partialorder %v3290, inf
      %v3512 = vsel %vm3511, %v3290, %v3510
      %vm3513 = vcmp.eq.f32.partialorder %v3290, 0.0
      %v3514 = vand.u32 %v3290, 2147483648
      %v3515 = vsel %vm3513, %v3514, %v3512
      %v3516 = vrsqrt.pop %v3291
      %v3517 = vmul.f32 %v3291, %v3516
      %vm3518 = vcmp.eq.f32.partialorder %v3291, inf
      %v3519 = vsel %vm3518, %v3291, %v3517
      %vm3520 = vcmp.eq.f32.partialorder %v3291, 0.0
      %v3521 = vand.u32 %v3291, 2147483648
      %v3522 = vsel %vm3520, %v3521, %v3519
      %3523 = vst [vmem:[%s217] sm:$0xff] %v3298
      %3524 = vst [vmem:[%s217 + $0x8] sm:$0xff] %v3305
      %3525 = vst [vmem:[%s217 + $0x10] sm:$0xff] %v3312
      %3526 = vst [vmem:[%s217 + $0x18] sm:$0xff] %v3319
      %3527 = vst [vmem:[%s217 + $0x20] sm:$0xff] %v3326
      %3528 = vst [vmem:[%s217 + $0x28] sm:$0xff] %v3333
      %3529 = vst [vmem:[%s217 + $0x30] sm:$0xff] %v3340
      %3530 = vst [vmem:[%s217 + $0x38] sm:$0xff] %v3347
      %3531 = vst [vmem:[%s217 + $0x40] sm:$0xff] %v3354
      %3532 = vst [vmem:[%s217 + $0x48] sm:$0xff] %v3361
      %3533 = vst [vmem:[%s217 + $0x50] sm:$0xff] %v3368
      %3534 = vst [vmem:[%s217 + $0x58] sm:$0xff] %v3375
      %3535 = vst [vmem:[%s217 + $0x60] sm:$0xff] %v3382
      %3536 = vst [vmem:[%s217 + $0x68] sm:$0xff] %v3389
      %3537 = vst [vmem:[%s217 + $0x70] sm:$0xff] %v3396
      %3538 = vst [vmem:[%s217 + $0x78] sm:$0xff] %v3403
      %3539 = vst [vmem:[%s217 + $0x80] sm:$0xff] %v3410
      %3540 = vst [vmem:[%s217 + $0x88] sm:$0xff] %v3417
      %3541 = vst [vmem:[%s217 + $0x90] sm:$0xff] %v3424
      %3542 = vst [vmem:[%s217 + $0x98] sm:$0xff] %v3431
      %3543 = vst [vmem:[%s217 + $0xa0] sm:$0xff] %v3438
      %3544 = vst [vmem:[%s217 + $0xa8] sm:$0xff] %v3445
      %3545 = vst [vmem:[%s217 + $0xb0] sm:$0xff] %v3452
      %3546 = vst [vmem:[%s217 + $0xb8] sm:$0xff] %v3459
      %3547 = vst [vmem:[%s217 + $0xc0] sm:$0xff] %v3466
      %3548 = vst [vmem:[%s217 + $0xc8] sm:$0xff] %v3473
      %3549 = vst [vmem:[%s217 + $0xd0] sm:$0xff] %v3480
      %3550 = vst [vmem:[%s217 + $0xd8] sm:$0xff] %v3487
      %3551 = vst [vmem:[%s217 + $0xe0] sm:$0xff] %v3494
      %3552 = vst [vmem:[%s217 + $0xe8] sm:$0xff] %v3501
      %3553 = vst [vmem:[%s217 + $0xf0] sm:$0xff] %v3508
      %3554 = vst [vmem:[%s217 + $0xf8] sm:$0xff] %v3515
      %3555 = vst [vmem:[%s217 + $0x100] sm:$0x1] %v3522
      %v3556 = vadd.f32 %v3127, 1.1920929e-07
      %v3557 = vadd.f32 %v3128, 1.1920929e-07
      %v3558 = vadd.f32 %v3129, 1.1920929e-07
      %v3559 = vadd.f32 %v3130, 1.1920929e-07
      %v3560 = vadd.f32 %v3131, 1.1920929e-07
      %v3561 = vadd.f32 %v3132, 1.1920929e-07
      %v3562 = vadd.f32 %v3133, 1.1920929e-07
      %v3563 = vadd.f32 %v3134, 1.1920929e-07
      %v3564 = vadd.f32 %v3135, 1.1920929e-07
      %v3565 = vadd.f32 %v3136, 1.1920929e-07
      %v3566 = vadd.f32 %v3137, 1.1920929e-07
      %v3567 = vadd.f32 %v3138, 1.1920929e-07
      %v3568 = vadd.f32 %v3139, 1.1920929e-07
      %v3569 = vadd.f32 %v3140, 1.1920929e-07
      %v3570 = vadd.f32 %v3141, 1.1920929e-07
      %v3571 = vadd.f32 %v3142, 1.1920929e-07
      %v3572 = vadd.f32 %v3143, 1.1920929e-07
      %v3573 = vadd.f32 %v3144, 1.1920929e-07
      %v3574 = vadd.f32 %v3145, 1.1920929e-07
      %v3575 = vadd.f32 %v3146, 1.1920929e-07
      %v3576 = vadd.f32 %v3147, 1.1920929e-07
      %v3577 = vadd.f32 %v3148, 1.1920929e-07
      %v3578 = vadd.f32 %v3149, 1.1920929e-07
      %v3579 = vadd.f32 %v3150, 1.1920929e-07
      %v3580 = vadd.f32 %v3151, 1.1920929e-07
      %v3581 = vadd.f32 %v3152, 1.1920929e-07
      %v3582 = vadd.f32 %v3153, 1.1920929e-07
      %v3583 = vadd.f32 %v3154, 1.1920929e-07
      %v3584 = vadd.f32 %v3155, 1.1920929e-07
      %v3585 = vadd.f32 %v3156, 1.1920929e-07
      %v3586 = vadd.f32 %v3157, 1.1920929e-07
      %v3587 = vadd.f32 %v3158, 1.1920929e-07
      %v3588 = vadd.f32 %v3159, 1.1920929e-07
      %v3589 = vadd.f32 %v3094, 1.1920929e-07
      %v3590 = vadd.f32 %v3095, 1.1920929e-07
      %v3591 = vadd.f32 %v3096, 1.1920929e-07
      %v3592 = vadd.f32 %v3097, 1.1920929e-07
      %v3593 = vadd.f32 %v3098, 1.1920929e-07
      %v3594 = vadd.f32 %v3099, 1.1920929e-07
      %v3595 = vadd.f32 %v3100, 1.1920929e-07
      %v3596 = vadd.f32 %v3101, 1.1920929e-07
      %v3597 = vadd.f32 %v3102, 1.1920929e-07
      %v3598 = vadd.f32 %v3103, 1.1920929e-07
      %v3599 = vadd.f32 %v3104, 1.1920929e-07
      %v3600 = vadd.f32 %v3105, 1.1920929e-07
      %v3601 = vadd.f32 %v3106, 1.1920929e-07
      %v3602 = vadd.f32 %v3107, 1.1920929e-07
      %v3603 = vadd.f32 %v3108, 1.1920929e-07
      %v3604 = vadd.f32 %v3109, 1.1920929e-07
      %v3605 = vadd.f32 %v3110, 1.1920929e-07
      %v3606 = vadd.f32 %v3111, 1.1920929e-07
      %v3607 = vadd.f32 %v3112, 1.1920929e-07
      %v3608 = vadd.f32 %v3113, 1.1920929e-07
      %v3609 = vadd.f32 %v3114, 1.1920929e-07
      %v3610 = vadd.f32 %v3115, 1.1920929e-07
      %v3611 = vadd.f32 %v3116, 1.1920929e-07
      %v3612 = vadd.f32 %v3117, 1.1920929e-07
      %v3613 = vadd.f32 %v3118, 1.1920929e-07
      %v3614 = vadd.f32 %v3119, 1.1920929e-07
      %v3615 = vadd.f32 %v3120, 1.1920929e-07
      %v3616 = vadd.f32 %v3121, 1.1920929e-07
      %v3617 = vadd.f32 %v3122, 1.1920929e-07
      %v3618 = vadd.f32 %v3123, 1.1920929e-07
      %v3619 = vadd.f32 %v3124, 1.1920929e-07
      %v3620 = vadd.f32 %v3125, 1.1920929e-07
      %v3621 = vadd.f32 %v3126, 1.1920929e-07
      %v3622 = vand.u32 2147483647, %v3556
      %v3623 = vand.u32 2147483647, %v3557
      %v3624 = vand.u32 2147483647, %v3558
      %v3625 = vand.u32 2147483647, %v3559
      %v3626 = vand.u32 2147483647, %v3560
      %v3627 = vand.u32 2147483647, %v3561
      %v3628 = vand.u32 2147483647, %v3562
      %v3629 = vand.u32 2147483647, %v3563
      %v3630 = vand.u32 2147483647, %v3564
      %v3631 = vand.u32 2147483647, %v3565
      %v3632 = vand.u32 2147483647, %v3566
      %v3633 = vand.u32 2147483647, %v3567
      %v3634 = vand.u32 2147483647, %v3568
      %v3635 = vand.u32 2147483647, %v3569
      %v3636 = vand.u32 2147483647, %v3570
      %v3637 = vand.u32 2147483647, %v3571
      %v3638 = vand.u32 2147483647, %v3572
      %v3639 = vand.u32 2147483647, %v3573
      %v3640 = vand.u32 2147483647, %v3574
      %v3641 = vand.u32 2147483647, %v3575
      %v3642 = vand.u32 2147483647, %v3576
      %v3643 = vand.u32 2147483647, %v3577
      %v3644 = vand.u32 2147483647, %v3578
      %v3645 = vand.u32 2147483647, %v3579
      %v3646 = vand.u32 2147483647, %v3580
      %v3647 = vand.u32 2147483647, %v3581
      %v3648 = vand.u32 2147483647, %v3582
      %v3649 = vand.u32 2147483647, %v3583
      %v3650 = vand.u32 2147483647, %v3584
      %v3651 = vand.u32 2147483647, %v3585
      %v3652 = vand.u32 2147483647, %v3586
      %v3653 = vand.u32 2147483647, %v3587
      %v3654 = vand.u32 2147483647, %v3588
      %v3655 = vand.u32 2147483647, %v3589
      %v3656 = vand.u32 2147483647, %v3590
      %v3657 = vand.u32 2147483647, %v3591
      %v3658 = vand.u32 2147483647, %v3592
      %v3659 = vand.u32 2147483647, %v3593
      %v3660 = vand.u32 2147483647, %v3594
      %v3661 = vand.u32 2147483647, %v3595
      %v3662 = vand.u32 2147483647, %v3596
      %v3663 = vand.u32 2147483647, %v3597
      %v3664 = vand.u32 2147483647, %v3598
      %v3665 = vand.u32 2147483647, %v3599
      %v3666 = vand.u32 2147483647, %v3600
      %v3667 = vand.u32 2147483647, %v3601
      %v3668 = vand.u32 2147483647, %v3602
      %v3669 = vand.u32 2147483647, %v3603
      %v3670 = vand.u32 2147483647, %v3604
      %v3671 = vand.u32 2147483647, %v3605
      %v3672 = vand.u32 2147483647, %v3606
      %v3673 = vand.u32 2147483647, %v3607
      %v3674 = vand.u32 2147483647, %v3608
      %v3675 = vand.u32 2147483647, %v3609
      %v3676 = vand.u32 2147483647, %v3610
      %v3677 = vand.u32 2147483647, %v3611
      %v3678 = vand.u32 2147483647, %v3612
      %v3679 = vand.u32 2147483647, %v3613
      %v3680 = vand.u32 2147483647, %v3614
      %v3681 = vand.u32 2147483647, %v3615
      %v3682 = vand.u32 2147483647, %v3616
      %v3683 = vand.u32 2147483647, %v3617
      %v3684 = vand.u32 2147483647, %v3618
      %v3685 = vand.u32 2147483647, %v3619
      %v3686 = vand.u32 2147483647, %v3620
      %v3687 = vand.u32 2147483647, %v3621
      %vm3688 = vcmp.gt.f32.partialorder %v3622, %v3655
      %vm3689 = vcmp.gt.f32.partialorder %v3623, %v3656
      %vm3690 = vcmp.gt.f32.partialorder %v3624, %v3657
      %vm3691 = vcmp.gt.f32.partialorder %v3625, %v3658
      %vm3692 = vcmp.gt.f32.partialorder %v3626, %v3659
      %vm3693 = vcmp.gt.f32.partialorder %v3627, %v3660
      %vm3694 = vcmp.gt.f32.partialorder %v3628, %v3661
      %vm3695 = vcmp.gt.f32.partialorder %v3629, %v3662
      %vm3696 = vcmp.gt.f32.partialorder %v3630, %v3663
      %vm3697 = vcmp.gt.f32.partialorder %v3631, %v3664
      %vm3698 = vcmp.gt.f32.partialorder %v3632, %v3665
      %vm3699 = vcmp.gt.f32.partialorder %v3633, %v3666
      %vm3700 = vcmp.gt.f32.partialorder %v3634, %v3667
      %vm3701 = vcmp.gt.f32.partialorder %v3635, %v3668
      %vm3702 = vcmp.gt.f32.partialorder %v3636, %v3669
      %vm3703 = vcmp.gt.f32.partialorder %v3637, %v3670
      %vm3704 = vcmp.gt.f32.partialorder %v3638, %v3671
      %vm3705 = vcmp.gt.f32.partialorder %v3639, %v3672
      %vm3706 = vcmp.gt.f32.partialorder %v3640, %v3673
      %vm3707 = vcmp.gt.f32.partialorder %v3641, %v3674
      %vm3708 = vcmp.gt.f32.partialorder %v3642, %v3675
      %vm3709 = vcmp.gt.f32.partialorder %v3643, %v3676
      %vm3710 = vcmp.gt.f32.partialorder %v3644, %v3677
      %vm3711 = vcmp.gt.f32.partialorder %v3645, %v3678
      %vm3712 = vcmp.gt.f32.partialorder %v3646, %v3679
      %vm3713 = vcmp.gt.f32.partialorder %v3647, %v3680
      %vm3714 = vcmp.gt.f32.partialorder %v3648, %v3681
      %vm3715 = vcmp.gt.f32.partialorder %v3649, %v3682
      %vm3716 = vcmp.gt.f32.partialorder %v3650, %v3683
      %vm3717 = vcmp.gt.f32.partialorder %v3651, %v3684
      %vm3718 = vcmp.gt.f32.partialorder %v3652, %v3685
      %vm3719 = vcmp.gt.f32.partialorder %v3653, %v3686
      %vm3720 = vcmp.gt.f32.partialorder %v3654, %v3687
      %v3721 = vsel %vm3688, %v3655, %v3622
      %v3722 = vsel %vm3689, %v3656, %v3623
      %v3723 = vsel %vm3690, %v3657, %v3624
      %v3724 = vsel %vm3691, %v3658, %v3625
      %v3725 = vsel %vm3692, %v3659, %v3626
      %v3726 = vsel %vm3693, %v3660, %v3627
      %v3727 = vsel %vm3694, %v3661, %v3628
      %v3728 = vsel %vm3695, %v3662, %v3629
      %v3729 = vsel %vm3696, %v3663, %v3630
      %v3730 = vsel %vm3697, %v3664, %v3631
      %v3731 = vsel %vm3698, %v3665, %v3632
      %v3732 = vsel %vm3699, %v3666, %v3633
      %v3733 = vsel %vm3700, %v3667, %v3634
      %v3734 = vsel %vm3701, %v3668, %v3635
      %v3735 = vsel %vm3702, %v3669, %v3636
      %v3736 = vsel %vm3703, %v3670, %v3637
      %v3737 = vsel %vm3704, %v3671, %v3638
      %v3738 = vsel %vm3705, %v3672, %v3639
      %v3739 = vsel %vm3706, %v3673, %v3640
      %v3740 = vsel %vm3707, %v3674, %v3641
      %v3741 = vsel %vm3708, %v3675, %v3642
      %v3742 = vsel %vm3709, %v3676, %v3643
      %v3743 = vsel %vm3710, %v3677, %v3644
      %v3744 = vsel %vm3711, %v3678, %v3645
      %v3745 = vsel %vm3712, %v3679, %v3646
      %v3746 = vsel %vm3713, %v3680, %v3647
      %v3747 = vsel %vm3714, %v3681, %v3648
      %v3748 = vsel %vm3715, %v3682, %v3649
      %v3749 = vsel %vm3716, %v3683, %v3650
      %v3750 = vsel %vm3717, %v3684, %v3651
      %v3751 = vsel %vm3718, %v3685, %v3652
      %v3752 = vsel %vm3719, %v3686, %v3653
      %v3753 = vsel %vm3720, %v3687, %v3654
      %v3754 = vsel %vm3688, %v3622, %v3655
      %v3755 = vsel %vm3689, %v3623, %v3656
      %v3756 = vsel %vm3690, %v3624, %v3657
      %v3757 = vsel %vm3691, %v3625, %v3658
      %v3758 = vsel %vm3692, %v3626, %v3659
      %v3759 = vsel %vm3693, %v3627, %v3660
      %v3760 = vsel %vm3694, %v3628, %v3661
      %v3761 = vsel %vm3695, %v3629, %v3662
      %v3762 = vsel %vm3696, %v3630, %v3663
      %v3763 = vsel %vm3697, %v3631, %v3664
      %v3764 = vsel %vm3698, %v3632, %v3665
      %v3765 = vsel %vm3699, %v3633, %v3666
      %v3766 = vsel %vm3700, %v3634, %v3667
      %v3767 = vsel %vm3701, %v3635, %v3668
      %v3768 = vsel %vm3702, %v3636, %v3669
      %v3769 = vsel %vm3703, %v3637, %v3670
      %v3770 = vsel %vm3704, %v3638, %v3671
      %v3771 = vsel %vm3705, %v3639, %v3672
      %v3772 = vsel %vm3706, %v3640, %v3673
      %v3773 = vsel %vm3707, %v3641, %v3674
      %v3774 = vsel %vm3708, %v3642, %v3675
      %v3775 = vsel %vm3709, %v3643, %v3676
      %v3776 = vsel %vm3710, %v3644, %v3677
      %v3777 = vsel %vm3711, %v3645, %v3678
      %v3778 = vsel %vm3712, %v3646, %v3679
      %v3779 = vsel %vm3713, %v3647, %v3680
      %v3780 = vsel %vm3714, %v3648, %v3681
      %v3781 = vsel %vm3715, %v3649, %v3682
      %v3782 = vsel %vm3716, %v3650, %v3683
      %v3783 = vsel %vm3717, %v3651, %v3684
      %v3784 = vsel %vm3718, %v3652, %v3685
      %v3785 = vsel %vm3719, %v3653, %v3686
      %v3786 = vsel %vm3720, %v3654, %v3687
      %v3787 = vrcp.pop %v3754
      %v3788 = vrcp.pop %v3755
      %v3789 = vrcp.pop %v3756
      %v3790 = vrcp.pop %v3757
      %v3791 = vrcp.pop %v3758
      %v3792 = vrcp.pop %v3759
      %v3793 = vrcp.pop %v3760
      %v3794 = vrcp.pop %v3761
      %v3795 = vrcp.pop %v3762
      %v3796 = vrcp.pop %v3763
      %v3797 = vrcp.pop %v3764
      %v3798 = vrcp.pop %v3765
      %v3799 = vrcp.pop %v3766
      %v3800 = vrcp.pop %v3767
      %v3801 = vrcp.pop %v3768
      %v3802 = vrcp.pop %v3769
      %v3803 = vrcp.pop %v3770
      %v3804 = vrcp.pop %v3771
      %v3805 = vrcp.pop %v3772
      %v3806 = vrcp.pop %v3773
      %v3807 = vrcp.pop %v3774
      %v3808 = vrcp.pop %v3775
      %v3809 = vrcp.pop %v3776
      %v3810 = vrcp.pop %v3777
      %v3811 = vrcp.pop %v3778
      %v3812 = vrcp.pop %v3779
      %v3813 = vrcp.pop %v3780
      %v3814 = vrcp.pop %v3781
      %v3815 = vrcp.pop %v3782
      %v3816 = vrcp.pop %v3783
      %v3817 = vrcp.pop %v3784
      %v3818 = vrcp.pop %v3785
      %v3819 = vrcp.pop %v3786
      %v3820 = vmul.f32 %v3721, %v3787
      %v3821 = vmul.f32 %v3722, %v3788
      %v3822 = vmul.f32 %v3723, %v3789
      %v3823 = vmul.f32 %v3724, %v3790
      %v3824 = vmul.f32 %v3725, %v3791
      %v3825 = vmul.f32 %v3726, %v3792
      %v3826 = vmul.f32 %v3727, %v3793
      %v3827 = vmul.f32 %v3728, %v3794
      %v3828 = vmul.f32 %v3729, %v3795
      %v3829 = vmul.f32 %v3730, %v3796
      %v3830 = vmul.f32 %v3731, %v3797
      %v3831 = vmul.f32 %v3732, %v3798
      %v3832 = vmul.f32 %v3733, %v3799
      %v3833 = vmul.f32 %v3734, %v3800
      %v3834 = vmul.f32 %v3735, %v3801
      %v3835 = vmul.f32 %v3736, %v3802
      %v3836 = vmul.f32 %v3737, %v3803
      %v3837 = vmul.f32 %v3738, %v3804
      %v3838 = vmul.f32 %v3739, %v3805
      %v3839 = vmul.f32 %v3740, %v3806
      %v3840 = vmul.f32 %v3741, %v3807
      %v3841 = vmul.f32 %v3742, %v3808
      %v3842 = vmul.f32 %v3743, %v3809
      %v3843 = vmul.f32 %v3744, %v3810
      %v3844 = vmul.f32 %v3745, %v3811
      %v3845 = vmul.f32 %v3746, %v3812
      %v3846 = vmul.f32 %v3747, %v3813
      %v3847 = vmul.f32 %v3748, %v3814
      %v3848 = vmul.f32 %v3749, %v3815
      %v3849 = vmul.f32 %v3750, %v3816
      %v3850 = vmul.f32 %v3751, %v3817
      %v3851 = vmul.f32 %v3752, %v3818
      %v3852 = vmul.f32 %v3753, %v3819
      %v3853 = vmul.f32 %v3820, %v3820
      %v3854 = vmul.f32 %v3821, %v3821
      %v3855 = vmul.f32 %v3822, %v3822
      %v3856 = vmul.f32 %v3823, %v3823
      %v3857 = vmul.f32 %v3824, %v3824
      %v3858 = vmul.f32 %v3825, %v3825
      %v3859 = vmul.f32 %v3826, %v3826
      %v3860 = vmul.f32 %v3827, %v3827
      %v3861 = vmul.f32 %v3828, %v3828
      %v3862 = vmul.f32 %v3829, %v3829
      %v3863 = vmul.f32 %v3830, %v3830
      %v3864 = vmul.f32 %v3831, %v3831
      %v3865 = vmul.f32 %v3832, %v3832
      %v3866 = vmul.f32 %v3833, %v3833
      %v3867 = vmul.f32 %v3834, %v3834
      %v3868 = vmul.f32 %v3835, %v3835
      %v3869 = vmul.f32 %v3836, %v3836
      %v3870 = vmul.f32 %v3837, %v3837
      %v3871 = vmul.f32 %v3838, %v3838
      %v3872 = vmul.f32 %v3839, %v3839
      %v3873 = vmul.f32 %v3840, %v3840
      %v3874 = vmul.f32 %v3841, %v3841
      %v3875 = vmul.f32 %v3842, %v3842
      %v3876 = vmul.f32 %v3843, %v3843
      %v3877 = vmul.f32 %v3844, %v3844
      %v3878 = vmul.f32 %v3845, %v3845
      %v3879 = vmul.f32 %v3846, %v3846
      %v3880 = vmul.f32 %v3847, %v3847
      %v3881 = vmul.f32 %v3848, %v3848
      %v3882 = vmul.f32 %v3849, %v3849
      %v3883 = vmul.f32 %v3850, %v3850
      %v3884 = vmul.f32 %v3851, %v3851
      %v3885 = vmul.f32 %v3852, %v3852
      %v3886 = vmul.f32 %v3853, 0.002823639
      %v3887 = vmul.f32 %v3854, 0.002823639
      %v3888 = vmul.f32 %v3855, 0.002823639
      %v3889 = vmul.f32 %v3856, 0.002823639
      %v3890 = vmul.f32 %v3857, 0.002823639
      %v3891 = vmul.f32 %v3858, 0.002823639
      %v3892 = vmul.f32 %v3859, 0.002823639
      %v3893 = vmul.f32 %v3860, 0.002823639
      %v3894 = vmul.f32 %v3861, 0.002823639
      %v3895 = vmul.f32 %v3862, 0.002823639
      %v3896 = vmul.f32 %v3863, 0.002823639
      %v3897 = vmul.f32 %v3864, 0.002823639
      %v3898 = vmul.f32 %v3865, 0.002823639
      %v3899 = vmul.f32 %v3866, 0.002823639
      %v3900 = vmul.f32 %v3867, 0.002823639
      %v3901 = vmul.f32 %v3868, 0.002823639
      %v3902 = vmul.f32 %v3869, 0.002823639
      %v3903 = vmul.f32 %v3870, 0.002823639
      %v3904 = vmul.f32 %v3871, 0.002823639
      %v3905 = vmul.f32 %v3872, 0.002823639
      %v3906 = vmul.f32 %v3873, 0.002823639
      %v3907 = vmul.f32 %v3874, 0.002823639
      %v3908 = vmul.f32 %v3875, 0.002823639
      %v3909 = vmul.f32 %v3876, 0.002823639
      %v3910 = vmul.f32 %v3877, 0.002823639
      %v3911 = vmul.f32 %v3878, 0.002823639
      %v3912 = vmul.f32 %v3879, 0.002823639
      %v3913 = vmul.f32 %v3880, 0.002823639
      %v3914 = vmul.f32 %v3881, 0.002823639
      %v3915 = vmul.f32 %v3882, 0.002823639
      %v3916 = vmul.f32 %v3883, 0.002823639
      %v3917 = vmul.f32 %v3884, 0.002823639
      %v3918 = vmul.f32 %v3885, 0.002823639
      %v3919 = vadd.f32 %v3886, -0.015956903
      %v3920 = vadd.f32 %v3887, -0.015956903
      %v3921 = vadd.f32 %v3888, -0.015956903
      %v3922 = vadd.f32 %v3889, -0.015956903
      %v3923 = vadd.f32 %v3890, -0.015956903
      %v3924 = vadd.f32 %v3891, -0.015956903
      %v3925 = vadd.f32 %v3892, -0.015956903
      %v3926 = vadd.f32 %v3893, -0.015956903
      %v3927 = vadd.f32 %v3894, -0.015956903
      %v3928 = vadd.f32 %v3895, -0.015956903
      %v3929 = vadd.f32 %v3896, -0.015956903
      %v3930 = vadd.f32 %v3897, -0.015956903
      %v3931 = vadd.f32 %v3898, -0.015956903
      %v3932 = vadd.f32 %v3899, -0.015956903
      %v3933 = vadd.f32 %v3900, -0.015956903
      %v3934 = vadd.f32 %v3901, -0.015956903
      %v3935 = vadd.f32 %v3902, -0.015956903
      %v3936 = vadd.f32 %v3903, -0.015956903
      %v3937 = vadd.f32 %v3904, -0.015956903
      %v3938 = vadd.f32 %v3905, -0.015956903
      %v3939 = vadd.f32 %v3906, -0.015956903
      %v3940 = vadd.f32 %v3907, -0.015956903
      %v3941 = vadd.f32 %v3908, -0.015956903
      %v3942 = vadd.f32 %v3909, -0.015956903
      %v3943 = vadd.f32 %v3910, -0.015956903
      %v3944 = vadd.f32 %v3911, -0.015956903
      %v3945 = vadd.f32 %v3912, -0.015956903
      %v3946 = vadd.f32 %v3913, -0.015956903
      %v3947 = vadd.f32 %v3914, -0.015956903
      %v3948 = vadd.f32 %v3915, -0.015956903
      %v3949 = vadd.f32 %v3916, -0.015956903
      %v3950 = vadd.f32 %v3917, -0.015956903
      %v3951 = vadd.f32 %v3918, -0.015956903
      %v3952 = vmul.f32 %v3919, %v3853
      %v3953 = vmul.f32 %v3920, %v3854
      %v3954 = vmul.f32 %v3921, %v3855
      %v3955 = vmul.f32 %v3922, %v3856
      %v3956 = vmul.f32 %v3923, %v3857
      %v3957 = vmul.f32 %v3924, %v3858
      %v3958 = vmul.f32 %v3925, %v3859
      %v3959 = vmul.f32 %v3926, %v3860
      %v3960 = vmul.f32 %v3927, %v3861
      %v3961 = vmul.f32 %v3928, %v3862
      %v3962 = vmul.f32 %v3929, %v3863
      %v3963 = vmul.f32 %v3930, %v3864
      %v3964 = vmul.f32 %v3931, %v3865
      %v3965 = vmul.f32 %v3932, %v3866
      %v3966 = vmul.f32 %v3933, %v3867
      %v3967 = vmul.f32 %v3934, %v3868
      %v3968 = vmul.f32 %v3935, %v3869
      %v3969 = vmul.f32 %v3936, %v3870
      %v3970 = vmul.f32 %v3937, %v3871
      %v3971 = vmul.f32 %v3938, %v3872
      %v3972 = vmul.f32 %v3939, %v3873
      %v3973 = vmul.f32 %v3940, %v3874
      %v3974 = vmul.f32 %v3941, %v3875
      %v3975 = vmul.f32 %v3942, %v3876
      %v3976 = vmul.f32 %v3943, %v3877
      %v3977 = vmul.f32 %v3944, %v3878
      %v3978 = vmul.f32 %v3945, %v3879
      %v3979 = vmul.f32 %v3946, %v3880
      %v3980 = vmul.f32 %v3947, %v3881
      %v3981 = vmul.f32 %v3948, %v3882
      %v3982 = vmul.f32 %v3949, %v3883
      %v3983 = vmul.f32 %v3950, %v3884
      %v3984 = vmul.f32 %v3951, %v3885
      %v3985 = vadd.f32 %v3952, 0.04250499
      %v3986 = vadd.f32 %v3953, 0.04250499
      %v3987 = vadd.f32 %v3954, 0.04250499
      %v3988 = vadd.f32 %v3955, 0.04250499
      %v3989 = vadd.f32 %v3956, 0.04250499
      %v3990 = vadd.f32 %v3957, 0.04250499
      %v3991 = vadd.f32 %v3958, 0.04250499
      %v3992 = vadd.f32 %v3959, 0.04250499
      %v3993 = vadd.f32 %v3960, 0.04250499
      %v3994 = vadd.f32 %v3961, 0.04250499
      %v3995 = vadd.f32 %v3962, 0.04250499
      %v3996 = vadd.f32 %v3963, 0.04250499
      %v3997 = vadd.f32 %v3964, 0.04250499
      %v3998 = vadd.f32 %v3965, 0.04250499
      %v3999 = vadd.f32 %v3966, 0.04250499
      %v4000 = vadd.f32 %v3967, 0.04250499
      %v4001 = vadd.f32 %v3968, 0.04250499
      %v4002 = vadd.f32 %v3969, 0.04250499
      %v4003 = vadd.f32 %v3970, 0.04250499
      %v4004 = vadd.f32 %v3971, 0.04250499
      %v4005 = vadd.f32 %v3972, 0.04250499
      %v4006 = vadd.f32 %v3973, 0.04250499
      %v4007 = vadd.f32 %v3974, 0.04250499
      %v4008 = vadd.f32 %v3975, 0.04250499
      %v4009 = vadd.f32 %v3976, 0.04250499
      %v4010 = vadd.f32 %v3977, 0.04250499
      %v4011 = vadd.f32 %v3978, 0.04250499
      %v4012 = vadd.f32 %v3979, 0.04250499
      %v4013 = vadd.f32 %v3980, 0.04250499
      %v4014 = vadd.f32 %v3981, 0.04250499
      %v4015 = vadd.f32 %v3982, 0.04250499
      %v4016 = vadd.f32 %v3983, 0.04250499
      %v4017 = vadd.f32 %v3984, 0.04250499
      %v4018 = vmul.f32 %v3985, %v3853
      %v4019 = vmul.f32 %v3986, %v3854
      %v4020 = vmul.f32 %v3987, %v3855
      %v4021 = vmul.f32 %v3988, %v3856
      %v4022 = vmul.f32 %v3989, %v3857
      %v4023 = vmul.f32 %v3990, %v3858
      %v4024 = vmul.f32 %v3991, %v3859
      %v4025 = vmul.f32 %v3992, %v3860
      %v4026 = vmul.f32 %v3993, %v3861
      %v4027 = vmul.f32 %v3994, %v3862
      %v4028 = vmul.f32 %v3995, %v3863
      %v4029 = vmul.f32 %v3996, %v3864
      %v4030 = vmul.f32 %v3997, %v3865
      %v4031 = vmul.f32 %v3998, %v3866
      %v4032 = vmul.f32 %v3999, %v3867
      %v4033 = vmul.f32 %v4000, %v3868
      %v4034 = vmul.f32 %v4001, %v3869
      %v4035 = vmul.f32 %v4002, %v3870
      %v4036 = vmul.f32 %v4003, %v3871
      %v4037 = vmul.f32 %v4004, %v3872
      %v4038 = vmul.f32 %v4005, %v3873
      %v4039 = vmul.f32 %v4006, %v3874
      %v4040 = vmul.f32 %v4007, %v3875
      %v4041 = vmul.f32 %v4008, %v3876
      %v4042 = vmul.f32 %v4009, %v3877
      %v4043 = vmul.f32 %v4010, %v3878
      %v4044 = vmul.f32 %v4011, %v3879
      %v4045 = vmul.f32 %v4012, %v3880
      %v4046 = vmul.f32 %v4013, %v3881
      %v4047 = vmul.f32 %v4014, %v3882
      %v4048 = vmul.f32 %v4015, %v3883
      %v4049 = vmul.f32 %v4016, %v3884
      %v4050 = vmul.f32 %v4017, %v3885
      %v4051 = vadd.f32 %v4018, -0.07489009
      %v4052 = vadd.f32 %v4019, -0.07489009
      %v4053 = vadd.f32 %v4020, -0.07489009
      %v4054 = vadd.f32 %v4021, -0.07489009
      %v4055 = vadd.f32 %v4022, -0.07489009
      %v4056 = vadd.f32 %v4023, -0.07489009
      %v4057 = vadd.f32 %v4024, -0.07489009
      %v4058 = vadd.f32 %v4025, -0.07489009
      %v4059 = vadd.f32 %v4026, -0.07489009
      %v4060 = vadd.f32 %v4027, -0.07489009
      %v4061 = vadd.f32 %v4028, -0.07489009
      %v4062 = vadd.f32 %v4029, -0.07489009
      %v4063 = vadd.f32 %v4030, -0.07489009
      %v4064 = vadd.f32 %v4031, -0.07489009
      %v4065 = vadd.f32 %v4032, -0.07489009
      %v4066 = vadd.f32 %v4033, -0.07489009
      %v4067 = vadd.f32 %v4034, -0.07489009
      %v4068 = vadd.f32 %v4035, -0.07489009
      %v4069 = vadd.f32 %v4036, -0.07489009
      %v4070 = vadd.f32 %v4037, -0.07489009
      %v4071 = vadd.f32 %v4038, -0.07489009
      %v4072 = vadd.f32 %v4039, -0.07489009
      %v4073 = vadd.f32 %v4040, -0.07489009
      %v4074 = vadd.f32 %v4041, -0.07489009
      %v4075 = vadd.f32 %v4042, -0.07489009
      %v4076 = vadd.f32 %v4043, -0.07489009
      %v4077 = vadd.f32 %v4044, -0.07489009
      %v4078 = vadd.f32 %v4045, -0.07489009
      %v4079 = vadd.f32 %v4046, -0.07489009
      %v4080 = vadd.f32 %v4047, -0.07489009
      %v4081 = vadd.f32 %v4048, -0.07489009
      %v4082 = vadd.f32 %v4049, -0.07489009
      %v4083 = vadd.f32 %v4050, -0.07489009
      %v4084 = vmul.f32 %v4051, %v3853
      %v4085 = vmul.f32 %v4052, %v3854
      %v4086 = vmul.f32 %v4053, %v3855
      %v4087 = vmul.f32 %v4054, %v3856
      %v4088 = vmul.f32 %v4055, %v3857
      %v4089 = vmul.f32 %v4056, %v3858
      %v4090 = vmul.f32 %v4057, %v3859
      %v4091 = vmul.f32 %v4058, %v3860
      %v4092 = vmul.f32 %v4059, %v3861
      %v4093 = vmul.f32 %v4060, %v3862
      %v4094 = vmul.f32 %v4061, %v3863
      %v4095 = vmul.f32 %v4062, %v3864
      %v4096 = vmul.f32 %v4063, %v3865
      %v4097 = vmul.f32 %v4064, %v3866
      %v4098 = vmul.f32 %v4065, %v3867
      %v4099 = vmul.f32 %v4066, %v3868
      %v4100 = vmul.f32 %v4067, %v3869
      %v4101 = vmul.f32 %v4068, %v3870
      %v4102 = vmul.f32 %v4069, %v3871
      %v4103 = vmul.f32 %v4070, %v3872
      %v4104 = vmul.f32 %v4071, %v3873
      %v4105 = vmul.f32 %v4072, %v3874
      %v4106 = vmul.f32 %v4073, %v3875
      %v4107 = vmul.f32 %v4074, %v3876
      %v4108 = vmul.f32 %v4075, %v3877
      %v4109 = vmul.f32 %v4076, %v3878
      %v4110 = vmul.f32 %v4077, %v3879
      %v4111 = vmul.f32 %v4078, %v3880
      %v4112 = vmul.f32 %v4079, %v3881
      %v4113 = vmul.f32 %v4080, %v3882
      %v4114 = vmul.f32 %v4081, %v3883
      %v4115 = vmul.f32 %v4082, %v3884
      %v4116 = vmul.f32 %v4083, %v3885
      %v4117 = vadd.f32 %v4084, 0.10634793
      %v4118 = vadd.f32 %v4085, 0.10634793
      %v4119 = vadd.f32 %v4086, 0.10634793
      %v4120 = vadd.f32 %v4087, 0.10634793
      %v4121 = vadd.f32 %v4088, 0.10634793
      %v4122 = vadd.f32 %v4089, 0.10634793
      %v4123 = vadd.f32 %v4090, 0.10634793
      %v4124 = vadd.f32 %v4091, 0.10634793
      %v4125 = vadd.f32 %v4092, 0.10634793
      %v4126 = vadd.f32 %v4093, 0.10634793
      %v4127 = vadd.f32 %v4094, 0.10634793
      %v4128 = vadd.f32 %v4095, 0.10634793
      %v4129 = vadd.f32 %v4096, 0.10634793
      %v4130 = vadd.f32 %v4097, 0.10634793
      %v4131 = vadd.f32 %v4098, 0.10634793
      %v4132 = vadd.f32 %v4099, 0.10634793
      %v4133 = vadd.f32 %v4100, 0.10634793
      %v4134 = vadd.f32 %v4101, 0.10634793
      %v4135 = vadd.f32 %v4102, 0.10634793
      %v4136 = vadd.f32 %v4103, 0.10634793
      %v4137 = vadd.f32 %v4104, 0.10634793
      %v4138 = vadd.f32 %v4105, 0.10634793
      %v4139 = vadd.f32 %v4106, 0.10634793
      %v4140 = vadd.f32 %v4107, 0.10634793
      %v4141 = vadd.f32 %v4108, 0.10634793
      %v4142 = vadd.f32 %v4109, 0.10634793
      %v4143 = vadd.f32 %v4110, 0.10634793
      %v4144 = vadd.f32 %v4111, 0.10634793
      %v4145 = vadd.f32 %v4112, 0.10634793
      %v4146 = vadd.f32 %v4113, 0.10634793
      %v4147 = vadd.f32 %v4114, 0.10634793
      %v4148 = vadd.f32 %v4115, 0.10634793
      %v4149 = vadd.f32 %v4116, 0.10634793
      %v4150 = vmul.f32 %v4117, %v3853
      %v4151 = vmul.f32 %v4118, %v3854
      %v4152 = vmul.f32 %v4119, %v3855
      %v4153 = vmul.f32 %v4120, %v3856
      %v4154 = vmul.f32 %v4121, %v3857
      %v4155 = vmul.f32 %v4122, %v3858
      %v4156 = vmul.f32 %v4123, %v3859
      %v4157 = vmul.f32 %v4124, %v3860
      %v4158 = vmul.f32 %v4125, %v3861
      %v4159 = vmul.f32 %v4126, %v3862
      %v4160 = vmul.f32 %v4127, %v3863
      %v4161 = vmul.f32 %v4128, %v3864
      %v4162 = vmul.f32 %v4129, %v3865
      %v4163 = vmul.f32 %v4130, %v3866
      %v4164 = vmul.f32 %v4131, %v3867
      %v4165 = vmul.f32 %v4132, %v3868
      %v4166 = vmul.f32 %v4133, %v3869
      %v4167 = vmul.f32 %v4134, %v3870
      %v4168 = vmul.f32 %v4135, %v3871
      %v4169 = vmul.f32 %v4136, %v3872
      %v4170 = vmul.f32 %v4137, %v3873
      %v4171 = vmul.f32 %v4138, %v3874
      %v4172 = vmul.f32 %v4139, %v3875
      %v4173 = vmul.f32 %v4140, %v3876
      %v4174 = vmul.f32 %v4141, %v3877
      %v4175 = vmul.f32 %v4142, %v3878
      %v4176 = vmul.f32 %v4143, %v3879
      %v4177 = vmul.f32 %v4144, %v3880
      %v4178 = vmul.f32 %v4145, %v3881
      %v4179 = vmul.f32 %v4146, %v3882
      %v4180 = vmul.f32 %v4147, %v3883
      %v4181 = vmul.f32 %v4148, %v3884
      %v4182 = vmul.f32 %v4149, %v3885
      %v4183 = vadd.f32 %v4150, -0.14202736
      %v4184 = vadd.f32 %v4151, -0.14202736
      %v4185 = vadd.f32 %v4152, -0.14202736
      %v4186 = vadd.f32 %v4153, -0.14202736
      %v4187 = vadd.f32 %v4154, -0.14202736
      %v4188 = vadd.f32 %v4155, -0.14202736
      %v4189 = vadd.f32 %v4156, -0.14202736
      %v4190 = vadd.f32 %v4157, -0.14202736
      %v4191 = vadd.f32 %v4158, -0.14202736
      %v4192 = vadd.f32 %v4159, -0.14202736
      %v4193 = vadd.f32 %v4160, -0.14202736
      %v4194 = vadd.f32 %v4161, -0.14202736
      %v4195 = vadd.f32 %v4162, -0.14202736
      %v4196 = vadd.f32 %v4163, -0.14202736
      %v4197 = vadd.f32 %v4164, -0.14202736
      %v4198 = vadd.f32 %v4165, -0.14202736
      %v4199 = vadd.f32 %v4166, -0.14202736
      %v4200 = vadd.f32 %v4167, -0.14202736
      %v4201 = vadd.f32 %v4168, -0.14202736
      %v4202 = vadd.f32 %v4169, -0.14202736
      %v4203 = vadd.f32 %v4170, -0.14202736
      %v4204 = vadd.f32 %v4171, -0.14202736
      %v4205 = vadd.f32 %v4172, -0.14202736
      %v4206 = vadd.f32 %v4173, -0.14202736
      %v4207 = vadd.f32 %v4174, -0.14202736
      %v4208 = vadd.f32 %v4175, -0.14202736
      %v4209 = vadd.f32 %v4176, -0.14202736
      %v4210 = vadd.f32 %v4177, -0.14202736
      %v4211 = vadd.f32 %v4178, -0.14202736
      %v4212 = vadd.f32 %v4179, -0.14202736
      %v4213 = vadd.f32 %v4180, -0.14202736
      %v4214 = vadd.f32 %v4181, -0.14202736
      %v4215 = vadd.f32 %v4182, -0.14202736
      %v4216 = vmul.f32 %v4183, %v3853
      %v4217 = vmul.f32 %v4184, %v3854
      %v4218 = vmul.f32 %v4185, %v3855
      %v4219 = vmul.f32 %v4186, %v3856
      %v4220 = vmul.f32 %v4187, %v3857
      %v4221 = vmul.f32 %v4188, %v3858
      %v4222 = vmul.f32 %v4189, %v3859
      %v4223 = vmul.f32 %v4190, %v3860
      %v4224 = vmul.f32 %v4191, %v3861
      %v4225 = vmul.f32 %v4192, %v3862
      %v4226 = vmul.f32 %v4193, %v3863
      %v4227 = vmul.f32 %v4194, %v3864
      %v4228 = vmul.f32 %v4195, %v3865
      %v4229 = vmul.f32 %v4196, %v3866
      %v4230 = vmul.f32 %v4197, %v3867
      %v4231 = vmul.f32 %v4198, %v3868
      %v4232 = vmul.f32 %v4199, %v3869
      %v4233 = vmul.f32 %v4200, %v3870
      %v4234 = vmul.f32 %v4201, %v3871
      %v4235 = vmul.f32 %v4202, %v3872
      %v4236 = vmul.f32 %v4203, %v3873
      %v4237 = vmul.f32 %v4204, %v3874
      %v4238 = vmul.f32 %v4205, %v3875
      %v4239 = vmul.f32 %v4206, %v3876
      %v4240 = vmul.f32 %v4207, %v3877
      %v4241 = vmul.f32 %v4208, %v3878
      %v4242 = vmul.f32 %v4209, %v3879
      %v4243 = vmul.f32 %v4210, %v3880
      %v4244 = vmul.f32 %v4211, %v3881
      %v4245 = vmul.f32 %v4212, %v3882
      %v4246 = vmul.f32 %v4213, %v3883
      %v4247 = vmul.f32 %v4214, %v3884
      %v4248 = vmul.f32 %v4215, %v3885
      %v4249 = vadd.f32 %v4216, 0.19992696
      %v4250 = vadd.f32 %v4217, 0.19992696
      %v4251 = vadd.f32 %v4218, 0.19992696
      %v4252 = vadd.f32 %v4219, 0.19992696
      %v4253 = vadd.f32 %v4220, 0.19992696
      %v4254 = vadd.f32 %v4221, 0.19992696
      %v4255 = vadd.f32 %v4222, 0.19992696
      %v4256 = vadd.f32 %v4223, 0.19992696
      %v4257 = vadd.f32 %v4224, 0.19992696
      %v4258 = vadd.f32 %v4225, 0.19992696
      %v4259 = vadd.f32 %v4226, 0.19992696
      %v4260 = vadd.f32 %v4227, 0.19992696
      %v4261 = vadd.f32 %v4228, 0.19992696
      %v4262 = vadd.f32 %v4229, 0.19992696
      %v4263 = vadd.f32 %v4230, 0.19992696
      %v4264 = vadd.f32 %v4231, 0.19992696
      %v4265 = vadd.f32 %v4232, 0.19992696
      %v4266 = vadd.f32 %v4233, 0.19992696
      %v4267 = vadd.f32 %v4234, 0.19992696
      %v4268 = vadd.f32 %v4235, 0.19992696
      %v4269 = vadd.f32 %v4236, 0.19992696
      %v4270 = vadd.f32 %v4237, 0.19992696
      %v4271 = vadd.f32 %v4238, 0.19992696
      %v4272 = vadd.f32 %v4239, 0.19992696
      %v4273 = vadd.f32 %v4240, 0.19992696
      %v4274 = vadd.f32 %v4241, 0.19992696
      %v4275 = vadd.f32 %v4242, 0.19992696
      %v4276 = vadd.f32 %v4243, 0.19992696
      %v4277 = vadd.f32 %v4244, 0.19992696
      %v4278 = vadd.f32 %v4245, 0.19992696
      %v4279 = vadd.f32 %v4246, 0.19992696
      %v4280 = vadd.f32 %v4247, 0.19992696
      %v4281 = vadd.f32 %v4248, 0.19992696
      %v4282 = vmul.f32 %v4249, %v3853
      %v4283 = vmul.f32 %v4250, %v3854
      %v4284 = vmul.f32 %v4251, %v3855
      %v4285 = vmul.f32 %v4252, %v3856
      %v4286 = vmul.f32 %v4253, %v3857
      %v4287 = vmul.f32 %v4254, %v3858
      %v4288 = vmul.f32 %v4255, %v3859
      %v4289 = vmul.f32 %v4256, %v3860
      %v4290 = vmul.f32 %v4257, %v3861
      %v4291 = vmul.f32 %v4258, %v3862
      %v4292 = vmul.f32 %v4259, %v3863
      %v4293 = vmul.f32 %v4260, %v3864
      %v4294 = vmul.f32 %v4261, %v3865
      %v4295 = vmul.f32 %v4262, %v3866
      %v4296 = vmul.f32 %v4263, %v3867
      %v4297 = vmul.f32 %v4264, %v3868
      %v4298 = vmul.f32 %v4265, %v3869
      %v4299 = vmul.f32 %v4266, %v3870
      %v4300 = vmul.f32 %v4267, %v3871
      %v4301 = vmul.f32 %v4268, %v3872
      %v4302 = vmul.f32 %v4269, %v3873
      %v4303 = vmul.f32 %v4270, %v3874
      %v4304 = vmul.f32 %v4271, %v3875
      %v4305 = vmul.f32 %v4272, %v3876
      %v4306 = vmul.f32 %v4273, %v3877
      %v4307 = vmul.f32 %v4274, %v3878
      %v4308 = vmul.f32 %v4275, %v3879
      %v4309 = vmul.f32 %v4276, %v3880
      %v4310 = vmul.f32 %v4277, %v3881
      %v4311 = vmul.f32 %v4278, %v3882
      %v4312 = vmul.f32 %v4279, %v3883
      %v4313 = vmul.f32 %v4280, %v3884
      %v4314 = vmul.f32 %v4281, %v3885
      %v4315 = vadd.f32 %v4282, -0.33333102
      %v4316 = vadd.f32 %v4283, -0.33333102
      %v4317 = vadd.f32 %v4284, -0.33333102
      %v4318 = vadd.f32 %v4285, -0.33333102
      %v4319 = vadd.f32 %v4286, -0.33333102
      %v4320 = vadd.f32 %v4287, -0.33333102
      %v4321 = vadd.f32 %v4288, -0.33333102
      %v4322 = vadd.f32 %v4289, -0.33333102
      %v4323 = vadd.f32 %v4290, -0.33333102
      %v4324 = vadd.f32 %v4291, -0.33333102
      %v4325 = vadd.f32 %v4292, -0.33333102
      %v4326 = vadd.f32 %v4293, -0.33333102
      %v4327 = vadd.f32 %v4294, -0.33333102
      %v4328 = vadd.f32 %v4295, -0.33333102
      %v4329 = vadd.f32 %v4296, -0.33333102
      %v4330 = vadd.f32 %v4297, -0.33333102
      %v4331 = vadd.f32 %v4298, -0.33333102
      %v4332 = vadd.f32 %v4299, -0.33333102
      %v4333 = vadd.f32 %v4300, -0.33333102
      %v4334 = vadd.f32 %v4301, -0.33333102
      %v4335 = vadd.f32 %v4302, -0.33333102
      %v4336 = vadd.f32 %v4303, -0.33333102
      %v4337 = vadd.f32 %v4304, -0.33333102
      %v4338 = vadd.f32 %v4305, -0.33333102
      %v4339 = vadd.f32 %v4306, -0.33333102
      %v4340 = vadd.f32 %v4307, -0.33333102
      %v4341 = vadd.f32 %v4308, -0.33333102
      %v4342 = vadd.f32 %v4309, -0.33333102
      %v4343 = vadd.f32 %v4310, -0.33333102
      %v4344 = vadd.f32 %v4311, -0.33333102
      %v4345 = vadd.f32 %v4312, -0.33333102
      %v4346 = vadd.f32 %v4313, -0.33333102
      %v4347 = vadd.f32 %v4314, -0.33333102
      %v4348 = vmul.f32 %v3820, %v3853
      %v4349 = vmul.f32 %v3821, %v3854
      %v4350 = vmul.f32 %v3822, %v3855
      %v4351 = vmul.f32 %v3823, %v3856
      %v4352 = vmul.f32 %v3824, %v3857
      %v4353 = vmul.f32 %v3825, %v3858
      %v4354 = vmul.f32 %v3826, %v3859
      %v4355 = vmul.f32 %v3827, %v3860
      %v4356 = vmul.f32 %v3828, %v3861
      %v4357 = vmul.f32 %v3829, %v3862
      %v4358 = vmul.f32 %v3830, %v3863
      %v4359 = vmul.f32 %v3831, %v3864
      %v4360 = vmul.f32 %v3832, %v3865
      %v4361 = vmul.f32 %v3833, %v3866
      %v4362 = vmul.f32 %v3834, %v3867
      %v4363 = vmul.f32 %v3835, %v3868
      %v4364 = vmul.f32 %v3836, %v3869
      %v4365 = vmul.f32 %v3837, %v3870
      %v4366 = vmul.f32 %v3838, %v3871
      %v4367 = vmul.f32 %v3839, %v3872
      %v4368 = vmul.f32 %v3840, %v3873
      %v4369 = vmul.f32 %v3841, %v3874
      %v4370 = vmul.f32 %v3842, %v3875
      %v4371 = vmul.f32 %v3843, %v3876
      %v4372 = vmul.f32 %v3844, %v3877
      %v4373 = vmul.f32 %v3845, %v3878
      %v4374 = vmul.f32 %v3846, %v3879
      %v4375 = vmul.f32 %v3847, %v3880
      %v4376 = vmul.f32 %v3848, %v3881
      %v4377 = vmul.f32 %v3849, %v3882
      %v4378 = vmul.f32 %v3850, %v3883
      %v4379 = vmul.f32 %v3851, %v3884
      %v4380 = vmul.f32 %v3852, %v3885
      %v4381 = vmul.f32 %v4348, %v4315
      %v4382 = vmul.f32 %v4349, %v4316
      %v4383 = vmul.f32 %v4350, %v4317
      %v4384 = vmul.f32 %v4351, %v4318
      %v4385 = vmul.f32 %v4352, %v4319
      %v4386 = vmul.f32 %v4353, %v4320
      %v4387 = vmul.f32 %v4354, %v4321
      %v4388 = vmul.f32 %v4355, %v4322
      %v4389 = vmul.f32 %v4356, %v4323
      %v4390 = vmul.f32 %v4357, %v4324
      %v4391 = vmul.f32 %v4358, %v4325
      %v4392 = vmul.f32 %v4359, %v4326
      %v4393 = vmul.f32 %v4360, %v4327
      %v4394 = vmul.f32 %v4361, %v4328
      %v4395 = vmul.f32 %v4362, %v4329
      %v4396 = vmul.f32 %v4363, %v4330
      %v4397 = vmul.f32 %v4364, %v4331
      %v4398 = vmul.f32 %v4365, %v4332
      %v4399 = vmul.f32 %v4366, %v4333
      %v4400 = vmul.f32 %v4367, %v4334
      %v4401 = vmul.f32 %v4368, %v4335
      %v4402 = vmul.f32 %v4369, %v4336
      %v4403 = vmul.f32 %v4370, %v4337
      %v4404 = vmul.f32 %v4371, %v4338
      %v4405 = vmul.f32 %v4372, %v4339
      %v4406 = vmul.f32 %v4373, %v4340
      %v4407 = vmul.f32 %v4374, %v4341
      %v4408 = vmul.f32 %v4375, %v4342
      %v4409 = vmul.f32 %v4376, %v4343
      %v4410 = vmul.f32 %v4377, %v4344
      %v4411 = vmul.f32 %v4378, %v4345
      %v4412 = vmul.f32 %v4379, %v4346
      %v4413 = vmul.f32 %v4380, %v4347
      %v4414 = vadd.f32 %v3820, %v4381
      %v4415 = vadd.f32 %v3821, %v4382
      %v4416 = vadd.f32 %v3822, %v4383
      %v4417 = vadd.f32 %v3823, %v4384
      %v4418 = vadd.f32 %v3824, %v4385
      %v4419 = vadd.f32 %v3825, %v4386
      %v4420 = vadd.f32 %v3826, %v4387
      %v4421 = vadd.f32 %v3827, %v4388
      %v4422 = vadd.f32 %v3828, %v4389
      %v4423 = vadd.f32 %v3829, %v4390
      %v4424 = vadd.f32 %v3830, %v4391
      %v4425 = vadd.f32 %v3831, %v4392
      %v4426 = vadd.f32 %v3832, %v4393
      %v4427 = vadd.f32 %v3833, %v4394
      %v4428 = vadd.f32 %v3834, %v4395
      %v4429 = vadd.f32 %v3835, %v4396
      %v4430 = vadd.f32 %v3836, %v4397
      %v4431 = vadd.f32 %v3837, %v4398
      %v4432 = vadd.f32 %v3838, %v4399
      %v4433 = vadd.f32 %v3839, %v4400
      %v4434 = vadd.f32 %v3840, %v4401
      %v4435 = vadd.f32 %v3841, %v4402
      %v4436 = vadd.f32 %v3842, %v4403
      %v4437 = vadd.f32 %v3843, %v4404
      %v4438 = vadd.f32 %v3844, %v4405
      %v4439 = vadd.f32 %v3845, %v4406
      %v4440 = vadd.f32 %v3846, %v4407
      %v4441 = vadd.f32 %v3847, %v4408
      %v4442 = vadd.f32 %v3848, %v4409
      %v4443 = vadd.f32 %v3849, %v4410
      %v4444 = vadd.f32 %v3850, %v4411
      %v4445 = vadd.f32 %v3851, %v4412
      %v4446 = vadd.f32 %v3852, %v4413
      %v4447 = vsub.f32 1.5707964, %v4414
      %v4448 = vsub.f32 1.5707964, %v4415
      %v4449 = vsub.f32 1.5707964, %v4416
      %v4450 = vsub.f32 1.5707964, %v4417
      %v4451 = vsub.f32 1.5707964, %v4418
      %v4452 = vsub.f32 1.5707964, %v4419
      %v4453 = vsub.f32 1.5707964, %v4420
      %v4454 = vsub.f32 1.5707964, %v4421
      %v4455 = vsub.f32 1.5707964, %v4422
      %v4456 = vsub.f32 1.5707964, %v4423
      %v4457 = vsub.f32 1.5707964, %v4424
      %v4458 = vsub.f32 1.5707964, %v4425
      %v4459 = vsub.f32 1.5707964, %v4426
      %v4460 = vsub.f32 1.5707964, %v4427
      %v4461 = vsub.f32 1.5707964, %v4428
      %v4462 = vsub.f32 1.5707964, %v4429
      %v4463 = vsub.f32 1.5707964, %v4430
      %v4464 = vsub.f32 1.5707964, %v4431
      %v4465 = vsub.f32 1.5707964, %v4432
      %v4466 = vsub.f32 1.5707964, %v4433
      %v4467 = vsub.f32 1.5707964, %v4434
      %v4468 = vsub.f32 1.5707964, %v4435
      %v4469 = vsub.f32 1.5707964, %v4436
      %v4470 = vsub.f32 1.5707964, %v4437
      %v4471 = vsub.f32 1.5707964, %v4438
      %v4472 = vsub.f32 1.5707964, %v4439
      %v4473 = vsub.f32 1.5707964, %v4440
      %v4474 = vsub.f32 1.5707964, %v4441
      %v4475 = vsub.f32 1.5707964, %v4442
      %v4476 = vsub.f32 1.5707964, %v4443
      %v4477 = vsub.f32 1.5707964, %v4444
      %v4478 = vsub.f32 1.5707964, %v4445
      %v4479 = vsub.f32 1.5707964, %v4446
      %v4480 = vsel %vm3688, %v4447, %v4414
      %v4481 = vsel %vm3689, %v4448, %v4415
      %v4482 = vsel %vm3690, %v4449, %v4416
      %v4483 = vsel %vm3691, %v4450, %v4417
      %v4484 = vsel %vm3692, %v4451, %v4418
      %v4485 = vsel %vm3693, %v4452, %v4419
      %v4486 = vsel %vm3694, %v4453, %v4420
      %v4487 = vsel %vm3695, %v4454, %v4421
      %v4488 = vsel %vm3696, %v4455, %v4422
      %v4489 = vsel %vm3697, %v4456, %v4423
      %v4490 = vsel %vm3698, %v4457, %v4424
      %v4491 = vsel %vm3699, %v4458, %v4425
      %v4492 = vsel %vm3700, %v4459, %v4426
      %v4493 = vsel %vm3701, %v4460, %v4427
      %v4494 = vsel %vm3702, %v4461, %v4428
      %v4495 = vsel %vm3703, %v4462, %v4429
      %v4496 = vsel %vm3704, %v4463, %v4430
      %v4497 = vsel %vm3705, %v4464, %v4431
      %v4498 = vsel %vm3706, %v4465, %v4432
      %v4499 = vsel %vm3707, %v4466, %v4433
      %v4500 = vsel %vm3708, %v4467, %v4434
      %v4501 = vsel %vm3709, %v4468, %v4435
      %v4502 = vsel %vm3710, %v4469, %v4436
      %v4503 = vsel %vm3711, %v4470, %v4437
      %v4504 = vsel %vm3712, %v4471, %v4438
      %v4505 = vsel %vm3713, %v4472, %v4439
      %v4506 = vsel %vm3714, %v4473, %v4440
      %v4507 = vsel %vm3715, %v4474, %v4441
      %v4508 = vsel %vm3716, %v4475, %v4442
      %v4509 = vsel %vm3717, %v4476, %v4443
      %v4510 = vsel %vm3718, %v4477, %v4444
      %v4511 = vsel %vm3719, %v4478, %v4445
      %v4512 = vsel %vm3720, %v4479, %v4446
      %vm4513 = vcmp.lt.f32.partialorder %v3589, 0.0
      %vm4514 = vcmp.lt.f32.partialorder %v3590, 0.0
      %vm4515 = vcmp.lt.f32.partialorder %v3591, 0.0
      %vm4516 = vcmp.lt.f32.partialorder %v3592, 0.0
      %vm4517 = vcmp.lt.f32.partialorder %v3593, 0.0
      %vm4518 = vcmp.lt.f32.partialorder %v3594, 0.0
      %vm4519 = vcmp.lt.f32.partialorder %v3595, 0.0
      %vm4520 = vcmp.lt.f32.partialorder %v3596, 0.0
      %vm4521 = vcmp.lt.f32.partialorder %v3597, 0.0
      %vm4522 = vcmp.lt.f32.partialorder %v3598, 0.0
      %vm4523 = vcmp.lt.f32.partialorder %v3599, 0.0
      %vm4524 = vcmp.lt.f32.partialorder %v3600, 0.0
      %vm4525 = vcmp.lt.f32.partialorder %v3601, 0.0
      %vm4526 = vcmp.lt.f32.partialorder %v3602, 0.0
      %vm4527 = vcmp.lt.f32.partialorder %v3603, 0.0
      %vm4528 = vcmp.lt.f32.partialorder %v3604, 0.0
      %vm4529 = vcmp.lt.f32.partialorder %v3605, 0.0
      %vm4530 = vcmp.lt.f32.partialorder %v3606, 0.0
      %vm4531 = vcmp.lt.f32.partialorder %v3607, 0.0
      %vm4532 = vcmp.lt.f32.partialorder %v3608, 0.0
      %vm4533 = vcmp.lt.f32.partialorder %v3609, 0.0
      %vm4534 = vcmp.lt.f32.partialorder %v3610, 0.0
      %vm4535 = vcmp.lt.f32.partialorder %v3611, 0.0
      %vm4536 = vcmp.lt.f32.partialorder %v3612, 0.0
      %vm4537 = vcmp.lt.f32.partialorder %v3613, 0.0
      %vm4538 = vcmp.lt.f32.partialorder %v3614, 0.0
      %vm4539 = vcmp.lt.f32.partialorder %v3615, 0.0
      %vm4540 = vcmp.lt.f32.partialorder %v3616, 0.0
      %vm4541 = vcmp.lt.f32.partialorder %v3617, 0.0
      %vm4542 = vcmp.lt.f32.partialorder %v3618, 0.0
      %vm4543 = vcmp.lt.f32.partialorder %v3619, 0.0
      %vm4544 = vcmp.lt.f32.partialorder %v3620, 0.0
      %vm4545 = vcmp.lt.f32.partialorder %v3621, 0.0
      %v4546 = vsub.f32 3.1415927, %v4480
      %v4547 = vsub.f32 3.1415927, %v4481
      %v4548 = vsub.f32 3.1415927, %v4482
      %v4549 = vsub.f32 3.1415927, %v4483
      %v4550 = vsub.f32 3.1415927, %v4484
      %v4551 = vsub.f32 3.1415927, %v4485
      %v4552 = vsub.f32 3.1415927, %v4486
      %v4553 = vsub.f32 3.1415927, %v4487
      %v4554 = vsub.f32 3.1415927, %v4488
      %v4555 = vsub.f32 3.1415927, %v4489
      %v4556 = vsub.f32 3.1415927, %v4490
      %v4557 = vsub.f32 3.1415927, %v4491
      %v4558 = vsub.f32 3.1415927, %v4492
      %v4559 = vsub.f32 3.1415927, %v4493
      %v4560 = vsub.f32 3.1415927, %v4494
      %v4561 = vsub.f32 3.1415927, %v4495
      %v4562 = vsub.f32 3.1415927, %v4496
      %v4563 = vsub.f32 3.1415927, %v4497
      %v4564 = vsub.f32 3.1415927, %v4498
      %v4565 = vsub.f32 3.1415927, %v4499
      %v4566 = vsub.f32 3.1415927, %v4500
      %v4567 = vsub.f32 3.1415927, %v4501
      %v4568 = vsub.f32 3.1415927, %v4502
      %v4569 = vsub.f32 3.1415927, %v4503
      %v4570 = vsub.f32 3.1415927, %v4504
      %v4571 = vsub.f32 3.1415927, %v4505
      %v4572 = vsub.f32 3.1415927, %v4506
      %v4573 = vsub.f32 3.1415927, %v4507
      %v4574 = vsub.f32 3.1415927, %v4508
      %v4575 = vsub.f32 3.1415927, %v4509
      %v4576 = vsub.f32 3.1415927, %v4510
      %v4577 = vsub.f32 3.1415927, %v4511
      %v4578 = vsub.f32 3.1415927, %v4512
      %v4579 = vsel %vm4513, %v4546, %v4480
      %v4580 = vsel %vm4514, %v4547, %v4481
      %v4581 = vsel %vm4515, %v4548, %v4482
      %v4582 = vsel %vm4516, %v4549, %v4483
      %v4583 = vsel %vm4517, %v4550, %v4484
      %v4584 = vsel %vm4518, %v4551, %v4485
      %v4585 = vsel %vm4519, %v4552, %v4486
      %v4586 = vsel %vm4520, %v4553, %v4487
      %v4587 = vsel %vm4521, %v4554, %v4488
      %v4588 = vsel %vm4522, %v4555, %v4489
      %v4589 = vsel %vm4523, %v4556, %v4490
      %v4590 = vsel %vm4524, %v4557, %v4491
      %v4591 = vsel %vm4525, %v4558, %v4492
      %v4592 = vsel %vm4526, %v4559, %v4493
      %v4593 = vsel %vm4527, %v4560, %v4494
      %v4594 = vsel %vm4528, %v4561, %v4495
      %v4595 = vsel %vm4529, %v4562, %v4496
      %v4596 = vsel %vm4530, %v4563, %v4497
      %v4597 = vsel %vm4531, %v4564, %v4498
      %v4598 = vsel %vm4532, %v4565, %v4499
      %v4599 = vsel %vm4533, %v4566, %v4500
      %v4600 = vsel %vm4534, %v4567, %v4501
      %v4601 = vsel %vm4535, %v4568, %v4502
      %v4602 = vsel %vm4536, %v4569, %v4503
      %v4603 = vsel %vm4537, %v4570, %v4504
      %v4604 = vsel %vm4538, %v4571, %v4505
      %v4605 = vsel %vm4539, %v4572, %v4506
      %v4606 = vsel %vm4540, %v4573, %v4507
      %v4607 = vsel %vm4541, %v4574, %v4508
      %v4608 = vsel %vm4542, %v4575, %v4509
      %v4609 = vsel %vm4543, %v4576, %v4510
      %v4610 = vsel %vm4544, %v4577, %v4511
      %v4611 = vsel %vm4545, %v4578, %v4512
      %vm4612 = vcmp.lt.f32.partialorder %v3556, 0.0
      %vm4613 = vcmp.lt.f32.partialorder %v3557, 0.0
      %vm4614 = vcmp.lt.f32.partialorder %v3558, 0.0
      %vm4615 = vcmp.lt.f32.partialorder %v3559, 0.0
      %vm4616 = vcmp.lt.f32.partialorder %v3560, 0.0
      %vm4617 = vcmp.lt.f32.partialorder %v3561, 0.0
      %vm4618 = vcmp.lt.f32.partialorder %v3562, 0.0
      %vm4619 = vcmp.lt.f32.partialorder %v3563, 0.0
      %vm4620 = vcmp.lt.f32.partialorder %v3564, 0.0
      %vm4621 = vcmp.lt.f32.partialorder %v3565, 0.0
      %vm4622 = vcmp.lt.f32.partialorder %v3566, 0.0
      %vm4623 = vcmp.lt.f32.partialorder %v3567, 0.0
      %vm4624 = vcmp.lt.f32.partialorder %v3568, 0.0
      %vm4625 = vcmp.lt.f32.partialorder %v3569, 0.0
      %vm4626 = vcmp.lt.f32.partialorder %v3570, 0.0
      %vm4627 = vcmp.lt.f32.partialorder %v3571, 0.0
      %vm4628 = vcmp.lt.f32.partialorder %v3572, 0.0
      %vm4629 = vcmp.lt.f32.partialorder %v3573, 0.0
      %vm4630 = vcmp.lt.f32.partialorder %v3574, 0.0
      %vm4631 = vcmp.lt.f32.partialorder %v3575, 0.0
      %vm4632 = vcmp.lt.f32.partialorder %v3576, 0.0
      %vm4633 = vcmp.lt.f32.partialorder %v3577, 0.0
      %vm4634 = vcmp.lt.f32.partialorder %v3578, 0.0
      %vm4635 = vcmp.lt.f32.partialorder %v3579, 0.0
      %vm4636 = vcmp.lt.f32.partialorder %v3580, 0.0
      %vm4637 = vcmp.lt.f32.partialorder %v3581, 0.0
      %vm4638 = vcmp.lt.f32.partialorder %v3582, 0.0
      %vm4639 = vcmp.lt.f32.partialorder %v3583, 0.0
      %vm4640 = vcmp.lt.f32.partialorder %v3584, 0.0
      %vm4641 = vcmp.lt.f32.partialorder %v3585, 0.0
      %vm4642 = vcmp.lt.f32.partialorder %v3586, 0.0
      %vm4643 = vcmp.lt.f32.partialorder %v3587, 0.0
      %vm4644 = vcmp.lt.f32.partialorder %v3588, 0.0
      %v4645 = vsub.f32 0.0, %v4579
      %v4646 = vsub.f32 0.0, %v4580
      %v4647 = vsub.f32 0.0, %v4581
      %v4648 = vsub.f32 0.0, %v4582
      %v4649 = vsub.f32 0.0, %v4583
      %v4650 = vsub.f32 0.0, %v4584
      %v4651 = vsub.f32 0.0, %v4585
      %v4652 = vsub.f32 0.0, %v4586
      %v4653 = vsub.f32 0.0, %v4587
      %v4654 = vsub.f32 0.0, %v4588
      %v4655 = vsub.f32 0.0, %v4589
      %v4656 = vsub.f32 0.0, %v4590
      %v4657 = vsub.f32 0.0, %v4591
      %v4658 = vsub.f32 0.0, %v4592
      %v4659 = vsub.f32 0.0, %v4593
      %v4660 = vsub.f32 0.0, %v4594
      %v4661 = vsub.f32 0.0, %v4595
      %v4662 = vsub.f32 0.0, %v4596
      %v4663 = vsub.f32 0.0, %v4597
      %v4664 = vsub.f32 0.0, %v4598
      %v4665 = vsub.f32 0.0, %v4599
      %v4666 = vsub.f32 0.0, %v4600
      %v4667 = vsub.f32 0.0, %v4601
      %v4668 = vsub.f32 0.0, %v4602
      %v4669 = vsub.f32 0.0, %v4603
      %v4670 = vsub.f32 0.0, %v4604
      %v4671 = vsub.f32 0.0, %v4605
      %v4672 = vsub.f32 0.0, %v4606
      %v4673 = vsub.f32 0.0, %v4607
      %v4674 = vsub.f32 0.0, %v4608
      %v4675 = vsub.f32 0.0, %v4609
      %v4676 = vsub.f32 0.0, %v4610
      %v4677 = vsub.f32 0.0, %v4611
      %v4678 = vsel %vm4612, %v4645, %v4579
      %v4679 = vsel %vm4613, %v4646, %v4580
      %v4680 = vsel %vm4614, %v4647, %v4581
      %v4681 = vsel %vm4615, %v4648, %v4582
      %v4682 = vsel %vm4616, %v4649, %v4583
      %v4683 = vsel %vm4617, %v4650, %v4584
      %v4684 = vsel %vm4618, %v4651, %v4585
      %v4685 = vsel %vm4619, %v4652, %v4586
      %v4686 = vsel %vm4620, %v4653, %v4587
      %v4687 = vsel %vm4621, %v4654, %v4588
      %v4688 = vsel %vm4622, %v4655, %v4589
      %v4689 = vsel %vm4623, %v4656, %v4590
      %v4690 = vsel %vm4624, %v4657, %v4591
      %v4691 = vsel %vm4625, %v4658, %v4592
      %v4692 = vsel %vm4626, %v4659, %v4593
      %v4693 = vsel %vm4627, %v4660, %v4594
      %v4694 = vsel %vm4628, %v4661, %v4595
      %v4695 = vsel %vm4629, %v4662, %v4596
      %v4696 = vsel %vm4630, %v4663, %v4597
      %v4697 = vsel %vm4631, %v4664, %v4598
      %v4698 = vsel %vm4632, %v4665, %v4599
      %v4699 = vsel %vm4633, %v4666, %v4600
      %v4700 = vsel %vm4634, %v4667, %v4601
      %v4701 = vsel %vm4635, %v4668, %v4602
      %v4702 = vsel %vm4636, %v4669, %v4603
      %v4703 = vsel %vm4637, %v4670, %v4604
      %v4704 = vsel %vm4638, %v4671, %v4605
      %v4705 = vsel %vm4639, %v4672, %v4606
      %v4706 = vsel %vm4640, %v4673, %v4607
      %v4707 = vsel %vm4641, %v4674, %v4608
      %v4708 = vsel %vm4642, %v4675, %v4609
      %v4709 = vsel %vm4643, %v4676, %v4610
      %v4710 = vsel %vm4644, %v4677, %v4611
      %4711 = vst [vmem:[%s225] sm:$0xff] %v4678
      %4712 = vst [vmem:[%s225 + $0x8] sm:$0xff] %v4679
      %4713 = vst [vmem:[%s225 + $0x10] sm:$0xff] %v4680
      %4714 = vst [vmem:[%s225 + $0x18] sm:$0xff] %v4681
      %4715 = vst [vmem:[%s225 + $0x20] sm:$0xff] %v4682
      %4716 = vst [vmem:[%s225 + $0x28] sm:$0xff] %v4683
      %4717 = vst [vmem:[%s225 + $0x30] sm:$0xff] %v4684
      %4718 = vst [vmem:[%s225 + $0x38] sm:$0xff] %v4685
      %4719 = vst [vmem:[%s225 + $0x40] sm:$0xff] %v4686
      %4720 = vst [vmem:[%s225 + $0x48] sm:$0xff] %v4687
      %4721 = vst [vmem:[%s225 + $0x50] sm:$0xff] %v4688
      %4722 = vst [vmem:[%s225 + $0x58] sm:$0xff] %v4689
      %4723 = vst [vmem:[%s225 + $0x60] sm:$0xff] %v4690
      %4724 = vst [vmem:[%s225 + $0x68] sm:$0xff] %v4691
      %4725 = vst [vmem:[%s225 + $0x70] sm:$0xff] %v4692
      %4726 = vst [vmem:[%s225 + $0x78] sm:$0xff] %v4693
      %4727 = vst [vmem:[%s225 + $0x80] sm:$0xff] %v4694
      %4728 = vst [vmem:[%s225 + $0x88] sm:$0xff] %v4695
      %4729 = vst [vmem:[%s225 + $0x90] sm:$0xff] %v4696
      %4730 = vst [vmem:[%s225 + $0x98] sm:$0xff] %v4697
      %4731 = vst [vmem:[%s225 + $0xa0] sm:$0xff] %v4698
      %4732 = vst [vmem:[%s225 + $0xa8] sm:$0xff] %v4699
      %4733 = vst [vmem:[%s225 + $0xb0] sm:$0xff] %v4700
      %4734 = vst [vmem:[%s225 + $0xb8] sm:$0xff] %v4701
      %4735 = vst [vmem:[%s225 + $0xc0] sm:$0xff] %v4702
      %4736 = vst [vmem:[%s225 + $0xc8] sm:$0xff] %v4703
      %4737 = vst [vmem:[%s225 + $0xd0] sm:$0xff] %v4704
      %4738 = vst [vmem:[%s225 + $0xd8] sm:$0xff] %v4705
      %4739 = vst [vmem:[%s225 + $0xe0] sm:$0xff] %v4706
      %4740 = vst [vmem:[%s225 + $0xe8] sm:$0xff] %v4707
      %4741 = vst [vmem:[%s225 + $0xf0] sm:$0xff] %v4708
      %4742 = vst [vmem:[%s225 + $0xf8] sm:$0xff] %v4709
      %4743 = vst [vmem:[%s225 + $0x100] sm:$0x1] %v4710
      %p4744 = scmp.lt.s32.totalorder %s19, 1
      %s4745 = scalar_select %p4744, %s19, 1
      %p4746 = scmp.lt.s32.totalorder %s20, 0
      %s4747 = scalar_select %p4746, %s20, 0
      %s4748 = smul.addr %s4745, 33
      %s4749 = sadd.s32 %s4747, %s4748
      %s4750 = smul.addr %s4749, 8
      %s4751 = scalar_lea.vmem %s2, %s4750
      %p4752 = scmp.lt.s32.totalorder %s19, 1
      %s4753 = scalar_select %p4752, %s19, 1
      %p4754 = scmp.lt.s32.totalorder %s20, 0
      %s4755 = scalar_select %p4754, %s20, 0
      %s4756 = smul.addr %s4753, 33
      %s4757 = sadd.s32 %s4755, %s4756
      %s4758 = smul.addr %s4757, 8
      %s4759 = scalar_lea.vmem %s3, %s4758
      // Predicated region
      $region29: #{forward.1} parent=27 // pred_check
        %p4760 = pneg %p96
      $region30: #{forward.1} parent=27 // pred_check_branch
        %4762 = sbr.rel (%p4760) target = $region32
      $region31: #{forward.1} parent=27 // pred_region
        _
      $region32: #{forward.1} parent=27 // pred_fallthru
        _
      // Predicated region
      $region33: #{forward.1} parent=27 // pred_check
        %p4763 = pneg %p124
      $region34: #{forward.1} parent=27 // pred_check_branch
        %4765 = sbr.rel (%p4763) target = $region36
      $region35: #{forward.1} parent=27 // pred_region
        _
      $region36: #{forward.1} parent=27 // pred_fallthru
        _
    $region28: #{forward.1} parent=5 // pred_fallthru
      _
    %p4766 = scmp.le.s32.totalorder 2, %s10
    // Predicated region
    $region37: #{forward.1} parent=5 // pred_check
      %p4767 = pneg %p4766
    $region38: #{forward.1} parent=5 // pred_check_branch
      %4769 = sbr.rel (%p4767) target = $region40
    $region39: #{forward.1} parent=5 // pred_region
      %s4770 = ssub.s32 %s10, 2
      // Predicated region
      $region41: #{forward.1} parent=39 // pred_check
        %p4771 = pneg %p102
      $region42: #{forward.1} parent=39 // pred_check_branch
        %4773 = sbr.rel (%p4771) target = $region44
      $region43: #{forward.1} parent=39 // pred_region
        %p4774 = scmp.lt.s32.totalorder %s21, 1
        %s4775 = scalar_select %p4774, %s21, 1
        %p4776 = scmp.lt.s32.totalorder %s22, 0
        %s4777 = scalar_select %p4776, %s22, 0
        %s4778 = smul.addr %s4775, 33
        %s4779 = sadd.s32 %s4777, %s4778
        %s4780 = smul.addr %s4779, 8
        %s4781 = scalar_lea.vmem %s2, %s4780
      $region44: #{forward.1} parent=39 // pred_fallthru
        _
      // Predicated region
      $region45: #{forward.1} parent=39 // pred_check
        %p4782 = pneg %p130
      $region46: #{forward.1} parent=39 // pred_check_branch
        %4784 = sbr.rel (%p4782) target = $region48
      $region47: #{forward.1} parent=39 // pred_region
        %p4785 = scmp.lt.s32.totalorder %s21, 1
        %s4786 = scalar_select %p4785, %s21, 1
        %p4787 = scmp.lt.s32.totalorder %s22, 0
        %s4788 = scalar_select %p4787, %s22, 0
        %s4789 = smul.addr %s4786, 33
        %s4790 = sadd.s32 %s4788, %s4789
        %s4791 = smul.addr %s4790, 8
        %s4792 = scalar_lea.vmem %s3, %s4791
      $region48: #{forward.1} parent=39 // pred_fallthru
        _
    $region40: #{forward.1} parent=5 // pred_fallthru
      _
  $region6: #{forward.1} parent=0 // loop_footer
    %s14 = sadd.s32 1, %s10
  $region7: #{forward.1} parent=0 // loop_footer_branch
    %9 = sbr.rel target = $region3
  $region8: #{forward.1} parent=0 // loop_exit
    _

</llo_original>
